<compile_context>
chip_gen: v6e
topology: v6e:2x2x1
jax: 0.10.0
libtpu: 0.0.40
codegen_flags: <defaults>
</compile_context>

<pallas_src>
import functools

import jax
import jax.numpy as jnp
from jax.experimental import pallas as pl
from jax.experimental.pallas import tpu as pltpu

EPS = 1e-5
LANE = 128
VMEM_LIMIT = 32 * 1024 * 1024  # safe on v5e/v6e/v7x; blocks stay well below it


def _round_up(v, m):
    return ((v + m - 1) // m) * m


def _pad_last(x, size):
    pad = size - x.shape[-1]
    if pad == 0:
        return x
    cfg = [(0, 0)] * (x.ndim - 1) + [(0, pad)]
    return jnp.pad(x, cfg)


def _compiler_params():
    return pltpu.CompilerParams(dimension_semantics=("parallel",),
                                vmem_limit_bytes=VMEM_LIMIT)


# ----------------------------- Pallas kernels -----------------------------

def _conv_tap_kernel(*refs, n_phase, tap_plan, ho, wo, co):
    """One grid step = one image.  Accumulates all conv taps as bf16 MXU
    matmuls into an fp32 accumulator, stores the conv output and the
    per-channel sum / sum-of-squares partials (pass 1 of two-pass BN)."""
    phase_refs = refs[:n_phase]
    w_ref = refs[n_phase]
    y_ref, sum_ref, sq_ref = refs[n_phase + 1:]

    acc = jnp.zeros((ho * wo, co), jnp.float32)
    for t, (p, oy, ox) in enumerate(tap_plan):
        win = phase_refs[p][0, oy:oy + ho, ox:ox + wo, :]        # (ho, wo, cin_p) bf16
        acc = acc + jnp.dot(win.reshape(ho * wo, win.shape[-1]),
                            w_ref[t],
                            preferred_element_type=jnp.float32)

    y_ref[...] = acc
    s = jnp.sum(acc, axis=0, keepdims=True)                      # (1, co)
    sq = jnp.sum(acc * acc, axis=0, keepdims=True)
    sum_ref[...] = jnp.broadcast_to(s, (8, co)).reshape(1, 8, co)
    sq_ref[...] = jnp.broadcast_to(sq, (8, co)).reshape(1, 8, co)


def _bn_apply_kernel(*refs, n_branch, relu):
    """Pass 2: y*scale+shift per branch, summed across branches (residual
    fusion), optional ReLU.  All math in fp32."""
    out_ref = refs[-1]
    acc = None
    for b in range(n_branch):
        y = refs[3 * b][...].astype(jnp.float32)
        scale = refs[3 * b + 1][...]
        shift = refs[3 * b + 2][...]
        v = y * scale + shift
        acc = v if acc is None else acc + v
    if relu:
        acc = jnp.maximum(acc, 0.0)
    out_ref[...] = acc.astype(out_ref.dtype)


# ----------------------------- Pallas wrappers -----------------------------

def conv_pallas(phases, w_taps, tap_plan, ho, wo):
    """phases: list of (N, Hp, Wp, Cin_p) bf16 slabs; w_taps: (T, Cin_p, Cout_p)
    bf16.  Returns conv output (N*ho*wo, Cout_p) fp32 plus per-image channel
    sum / sum-of-squares partials."""
    n = phases[0].shape[0]
    co = w_taps.shape[-1]
    m_img = ho * wo
    kernel = functools.partial(_conv_tap_kernel, n_phase=len(phases),
                               tap_plan=tuple(tap_plan), ho=ho, wo=wo, co=co)
    in_specs = [pl.BlockSpec((1,) + p.shape[1:], lambda i: (i, 0, 0, 0))
                for p in phases]
    in_specs.append(pl.BlockSpec(w_taps.shape, lambda i: (0, 0, 0)))
    out_shape = (jax.ShapeDtypeStruct((n * m_img, co), jnp.float32),
                 jax.ShapeDtypeStruct((n, 8, co), jnp.float32),
                 jax.ShapeDtypeStruct((n, 8, co), jnp.float32))
    out_specs = (pl.BlockSpec((m_img, co), lambda i: (i, 0)),
                 pl.BlockSpec((1, 8, co), lambda i: (i, 0, 0)),
                 pl.BlockSpec((1, 8, co), lambda i: (i, 0, 0)))
    return pl.pallas_call(
        kernel, grid=(n,), out_shape=out_shape,
        in_specs=in_specs, out_specs=out_specs,
        compiler_params=_compiler_params(),
    )(*phases, w_taps)


def _pick_row_tile(m):
    for cand in (1024, 512, 256, 128, 64, 32, 16, 8):
        if m % cand == 0:
            return cand
    return m


def bn_apply(branches, *, relu, out_dtype):
    """branches: list of (y (M,C), scale (1,C), shift (1,C)).  Row-tiled."""
    m, c = branches[0][0].shape
    tm = _pick_row_tile(m)
    in_specs, args = [], []
    for (y, scale, shift) in branches:
        in_specs += [pl.BlockSpec((tm, c), lambda i: (i, 0)),
                     pl.BlockSpec((1, c), lambda i: (0, 0)),
                     pl.BlockSpec((1, c), lambda i: (0, 0))]
        args += [y, scale, shift]
    kernel = functools.partial(_bn_apply_kernel, n_branch=len(branches),
                               relu=relu)
    return pl.pallas_call(
        kernel, grid=(m // tm,),
        out_shape=jax.ShapeDtypeStruct((m, c), out_dtype),
        in_specs=in_specs,
        out_specs=pl.BlockSpec((tm, c), lambda i: (i, 0)),
        compiler_params=_compiler_params(),
    )(*args)


# ------------------------------ JAX glue ----------------------------------

def _make_3x3_phases(x_bf16, stride):
    """x: (N, H, W, Cp) bf16.  Returns (phases, tap_plan, Ho, Wo) such that tap
    (dy, dx) of the 3x3/pad=1 conv is phases[p][:, oy:oy+Ho, ox:ox+Wo, :]."""
    n, h, w, c = x_bf16.shape
    ho = (h - 1) // stride + 1
    wo = (w - 1) // stride + 1
    xp = jnp.pad(x_bf16, ((0, 0), (1, 1), (1, 1), (0, 0)))
    if stride == 1:
        plan = [(0, dy, dx) for dy in range(3) for dx in range(3)]
        return [xp], plan, ho, wo
    assert stride == 2, "only stride 1 / 2 supported"
    phases = []
    for py in (0, 1):
        for px in (0, 1):
            ph = xp[:, py::2, px::2, :][:, :ho + 1, :wo + 1, :]
            pad_h = ho + 1 - ph.shape[1]
            pad_w = wo + 1 - ph.shape[2]
            if pad_h or pad_w:
                ph = jnp.pad(ph, ((0, 0), (0, pad_h), (0, pad_w), (0, 0)))
            phases.append(ph)
    plan = [((dy % 2) * 2 + (dx % 2), dy // 2, dx // 2)
            for dy in range(3) for dx in range(3)]
    return phases, plan, ho, wo


def _prep_w3x3(w, cin_p, cout_p):
    cout, cin = w.shape[:2]
    wt = jnp.transpose(w, (2, 3, 1, 0)).reshape(9, cin, cout)  # [dy*3+dx, ci, co]
    wt = jnp.pad(wt, ((0, 0), (0, cin_p - cin), (0, cout_p - cout)))
    return wt.astype(jnp.bfloat16)


def _prep_w1x1(w, cin_p, cout_p):
    cout, cin = w.shape[:2]
    wt = w.reshape(cout, cin).T                                 # (ci, co)
    wt = jnp.pad(wt, ((0, cin_p - cin), (0, cout_p - cout)))
    return wt.astype(jnp.bfloat16)[None]                        # (1, ci_p, co_p)


def _bn_scale_shift(sum_out, sq_out, count, gamma, beta, c_pad):
    """Reduce the per-image partials into per-channel scale/shift (fp32)."""
    s = jnp.sum(sum_out[:, 0, :], axis=0)
    sq = jnp.sum(sq_out[:, 0, :], axis=0)
    mean = s / count
    var = jnp.maximum(sq / count - mean * mean, 0.0)            # biased (train-mode)
    g = jnp.pad(gamma.astype(jnp.float32), (0, c_pad - gamma.shape[0]),
                constant_values=1.0)
    b = jnp.pad(beta.astype(jnp.float32), (0, c_pad - beta.shape[0]))
    scale = g * jax.lax.rsqrt(var + EPS)
    shift = b - mean * scale
    return scale.reshape(1, c_pad), shift.reshape(1, c_pad)


def basic_block_forward(x_nchw, params, stride):
    x = jnp.transpose(x_nchw, (0, 2, 3, 1)).astype(jnp.float32)   # NHWC
    n, h, w, cin = x.shape
    cout = params["w1"].shape[0]
    cin_p = _round_up(cin, LANE)
    cout_p = _round_up(cout, LANE)

    x_b = _pad_last(x, cin_p).astype(jnp.bfloat16)                # bf16 MXU feed

    # ---- conv1 (3x3, stride) + bn1 + relu ----
    phases1, plan1, ho, wo = _make_3x3_phases(x_b, stride)
    w1 = _prep_w3x3(params["w1"], cin_p, cout_p)
    y1, s1, q1 = conv_pallas(phases1, w1, plan1, ho, wo)
    sc1, sh1 = _bn_scale_shift(s1, q1, n * ho * wo,
                               params["g1"], params["b1"], cout_p)
    a1 = bn_apply([(y1, sc1, sh1)], relu=True, out_dtype=jnp.bfloat16)

    # ---- conv2 (3x3, stride 1) + bn2 (applied in the fused epilogue) ----
    a1_img = a1.reshape(n, ho, wo, cout_p)
    phases2, plan2, ho2, wo2 = _make_3x3_phases(a1_img, 1)
    w2 = _prep_w3x3(params["w2"], cout_p, cout_p)
    y2, s2, q2 = conv_pallas(phases2, w2, plan2, ho2, wo2)
    sc2, sh2 = _bn_scale_shift(s2, q2, n * ho2 * wo2,
                               params["g2"], params["b2"], cout_p)

    # ---- shortcut branch ----
    if stride != 1 or cin != cout:
        xs = x_b[:, ::stride, ::stride, :]                        # (n, ho, wo, cin_p)
        ws = _prep_w1x1(params["ws"], cin_p, cout_p)
        ys, ss, qs = conv_pallas([xs], ws, [(0, 0, 0)], ho, wo)
        scs, shs = _bn_scale_shift(ss, qs, n * ho * wo,
                                   params["gs"], params["bs"], cout_p)
        shortcut = (ys, scs, shs)
    else:
        x_flat = _pad_last(x, cout_p).reshape(n * h * w, cout_p)  # identity, fp32
        shortcut = (x_flat,
                    jnp.ones((1, cout_p), jnp.float32),
                    jnp.zeros((1, cout_p), jnp.float32))

    # ---- bn2 apply + residual add + relu, fused in one kernel ----
    out = bn_apply([(y2, sc2, sh2), shortcut], relu=True,
                   out_dtype=jnp.float32)
    out = out.reshape(n, ho, wo, cout_p)[:, :, :, :cout]
    return jnp.transpose(out, (0, 3, 1, 2))                       # back to NCHW


# --------------------------- reference & test ------------------------------

def init_params(key, in_ch, out_ch, stride):
    k1, k2, k3 = jax.random.split(key, 3)
    params = {
        "w1": jax.random.normal(k1, (out_ch, in_ch, 3, 3), jnp.float32) * 0.1,
        "g1": jnp.ones((out_ch,), jnp.float32),
        "b1": jnp.zeros((out_ch,), jnp.float32),
        "w2": jax.random.normal(k2, (out_ch, out_ch, 3, 3), jnp.float32) * 0.1,
        "g2": jnp.ones((out_ch,), jnp.float32),
        "b2": jnp.zeros((out_ch,), jnp.float32),
    }
    if stride != 1 or in_ch != out_ch:
        params["ws"] = jax.random.normal(k3, (out_ch, in_ch, 1, 1),
                                         jnp.float32) * 0.1
        params["gs"] = jnp.ones((out_ch,), jnp.float32)
        params["bs"] = jnp.zeros((out_ch,), jnp.float32)
    return params


def reference_forward(x_nchw, params, stride):
    """Pure-JAX fp32 reference with identical (train-mode BN) semantics."""
    x = x_nchw.astype(jnp.float32)

    def conv(v, w, s, pad):
        return jax.lax.conv_general_dilated(
            v, w, (s, s), pad, dimension_numbers=("NCHW", "OIHW", "NCHW"))

    def bn(y, g, b):
        mean = jnp.mean(y, axis=(0, 2, 3), keepdims=True)
        var = jnp.mean(jnp.square(y - mean), axis=(0, 2, 3), keepdims=True)
        return ((y - mean) * jax.lax.rsqrt(var + EPS) * g.reshape(1, -1, 1, 1)
                + b.reshape(1, -1, 1, 1))

    out = jax.nn.relu(bn(conv(x, params["w1"], stride, [(1, 1), (1, 1)]),
                         params["g1"], params["b1"]))
    out = bn(conv(out, params["w2"], 1, [(1, 1), (1, 1)]),
             params["g2"], params["b2"])
    if "ws" in params:
        sc = bn(conv(x, params["ws"], stride, [(0, 0), (0, 0)]),
                params["gs"], params["bs"])
    else:
        sc = x
    return jax.nn.relu(out + sc)


if __name__ == "__main__":
    key = jax.random.PRNGKey(0)
    configs = [
        (4, 8, 2),    # projection shortcut (1x1 conv + BN), stride 2
        (8, 8, 1),    # identity shortcut, stride 1
    ]
    for idx, (in_ch, out_ch, stride) in enumerate(configs):
        kx, kp, key = jax.random.split(key, 3)
        x = jax.random.normal(kx, (2, in_ch, 16, 16), jnp.float32)  # NCHW
        params = init_params(kp, in_ch, out_ch, stride)

        fwd = jax.jit(functools.partial(basic_block_forward, stride=stride))
        out = fwd(x, params)
        jax.block_until_ready(out)

        ho = (16 - 1) // stride + 1
        assert out.shape == (2, out_ch, ho, ho), out.shape
        assert bool(jnp.all(out >= 0.0))                 # final ReLU
        ref = reference_forward(x, params, stride)
        err = float(jnp.max(jnp.abs(out - ref)))
        assert err < 2e-1, f"config {idx}: max abs err {err}"  # bf16 MXU tolerance

    print("KERNEL_OK")
</pallas_src>

<mosaic_0001>
module attributes {stable_mosaic.version = 11 : i64} {
  func.func @_conv_tap_kernel(%arg0: i32, %arg1: memref<1x9x9x128xbf16, #tpu.memory_space<vmem>>, %arg2: memref<1x9x9x128xbf16, #tpu.memory_space<vmem>>, %arg3: memref<1x9x9x128xbf16, #tpu.memory_space<vmem>>, %arg4: memref<1x9x9x128xbf16, #tpu.memory_space<vmem>>, %arg5: memref<9x128x128xbf16, #tpu.memory_space<vmem>>, %arg6: memref<64x128xf32, #tpu.memory_space<vmem>>, %arg7: memref<1x8x128xf32, #tpu.memory_space<vmem>>, %arg8: memref<1x8x128xf32, #tpu.memory_space<vmem>>) attributes {dimension_semantics = [#tpu.dimension_semantics<parallel>], iteration_bounds = array<i64: 2>, scalar_prefetch = 0 : i64, scratch_operands = 0 : i64, tpu.core_type = #tpu.core_type<tc>, window_params = [{transform_indices = @transform_0, window_bounds = array<i64: 1, 9, 9, 128>}, {transform_indices = @transform_1, window_bounds = array<i64: 1, 9, 9, 128>}, {transform_indices = @transform_2, window_bounds = array<i64: 1, 9, 9, 128>}, {transform_indices = @transform_3, window_bounds = array<i64: 1, 9, 9, 128>}, {pipeline_mode = #tpu.pipeline_mode<synchronous>, transform_indices = @transform_4, window_bounds = array<i64: 9, 128, 128>}, {transform_indices = @transform_5, window_bounds = array<i64: 64, 128>}, {transform_indices = @transform_6, window_bounds = array<i64: 1, 8, 128>}, {transform_indices = @transform_7, window_bounds = array<i64: 1, 8, 128>}]} {
    %cst = arith.constant 0.000000e+00 : f32
    %0 = vector.broadcast %cst : f32 to vector<64x128xf32>
    %c0 = arith.constant 0 : index
    %c0_0 = arith.constant 0 : index
    %c0_1 = arith.constant 0 : index
    %c0_2 = arith.constant 0 : index
    %1 = vector.load %arg1[%c0, %c0_0, %c0_1, %c0_2] : memref<1x9x9x128xbf16, #tpu.memory_space<vmem>>, vector<1x8x8x128xbf16>
    %2 = vector.shape_cast %1 : vector<1x8x8x128xbf16> to vector<8x8x128xbf16>
    %3 = vector.shape_cast %2 : vector<8x8x128xbf16> to vector<64x128xbf16>
    %c0_3 = arith.constant 0 : index
    %c0_4 = arith.constant 0 : index
    %c0_5 = arith.constant 0 : index
    %4 = vector.load %arg5[%c0_3, %c0_4, %c0_5] : memref<9x128x128xbf16, #tpu.memory_space<vmem>>, vector<1x128x128xbf16>
    %5 = vector.shape_cast %4 : vector<1x128x128xbf16> to vector<128x128xbf16>
    %cst_6 = arith.constant dense<0.000000e+00> : vector<64x128xf32>
    %6 = tpu.matmul %3, %5, %cst_6 {dimension_numbers = #tpu.dot_dimension_numbers<[1], [0], [0], [1], [0, 0, 1, 1], [], []>} : vector<64x128xbf16>, vector<128x128xbf16>, vector<64x128xf32> -> vector<64x128xf32>
    %7 = arith.addf %0, %6 : vector<64x128xf32>
    %c0_7 = arith.constant 0 : index
    %c0_8 = arith.constant 0 : index
    %c0_9 = arith.constant 0 : index
    %c0_10 = arith.constant 0 : index
    %8 = vector.load %arg2[%c0_7, %c0_8, %c0_9, %c0_10] : memref<1x9x9x128xbf16, #tpu.memory_space<vmem>>, vector<1x8x8x128xbf16>
    %9 = vector.shape_cast %8 : vector<1x8x8x128xbf16> to vector<8x8x128xbf16>
    %10 = vector.shape_cast %9 : vector<8x8x128xbf16> to vector<64x128xbf16>
    %c1 = arith.constant 1 : index
    %c0_11 = arith.constant 0 : index
    %c0_12 = arith.constant 0 : index
    %11 = vector.load %arg5[%c1, %c0_11, %c0_12] : memref<9x128x128xbf16, #tpu.memory_space<vmem>>, vector<1x128x128xbf16>
    %12 = vector.shape_cast %11 : vector<1x128x128xbf16> to vector<128x128xbf16>
    %cst_13 = arith.constant dense<0.000000e+00> : vector<64x128xf32>
    %13 = tpu.matmul %10, %12, %cst_13 {dimension_numbers = #tpu.dot_dimension_numbers<[1], [0], [0], [1], [0, 0, 1, 1], [], []>} : vector<64x128xbf16>, vector<128x128xbf16>, vector<64x128xf32> -> vector<64x128xf32>
    %14 = arith.addf %7, %13 : vector<64x128xf32>
    %c0_14 = arith.constant 0 : index
    %c0_15 = arith.constant 0 : index
    %c1_16 = arith.constant 1 : index
    %c0_17 = arith.constant 0 : index
    %15 = vector.load %arg1[%c0_14, %c0_15, %c1_16, %c0_17] : memref<1x9x9x128xbf16, #tpu.memory_space<vmem>>, vector<1x8x8x128xbf16>
    %16 = vector.shape_cast %15 : vector<1x8x8x128xbf16> to vector<8x8x128xbf16>
    %17 = vector.shape_cast %16 : vector<8x8x128xbf16> to vector<64x128xbf16>
    %c2 = arith.constant 2 : index
    %c0_18 = arith.constant 0 : index
    %c0_19 = arith.constant 0 : index
    %18 = vector.load %arg5[%c2, %c0_18, %c0_19] : memref<9x128x128xbf16, #tpu.memory_space<vmem>>, vector<1x128x128xbf16>
    %19 = vector.shape_cast %18 : vector<1x128x128xbf16> to vector<128x128xbf16>
    %cst_20 = arith.constant dense<0.000000e+00> : vector<64x128xf32>
    %20 = tpu.matmul %17, %19, %cst_20 {dimension_numbers = #tpu.dot_dimension_numbers<[1], [0], [0], [1], [0, 0, 1, 1], [], []>} : vector<64x128xbf16>, vector<128x128xbf16>, vector<64x128xf32> -> vector<64x128xf32>
    %21 = arith.addf %14, %20 : vector<64x128xf32>
    %c0_21 = arith.constant 0 : index
    %c0_22 = arith.constant 0 : index
    %c0_23 = arith.constant 0 : index
    %c0_24 = arith.constant 0 : index
    %22 = vector.load %arg3[%c0_21, %c0_22, %c0_23, %c0_24] : memref<1x9x9x128xbf16, #tpu.memory_space<vmem>>, vector<1x8x8x128xbf16>
    %23 = vector.shape_cast %22 : vector<1x8x8x128xbf16> to vector<8x8x128xbf16>
    %24 = vector.shape_cast %23 : vector<8x8x128xbf16> to vector<64x128xbf16>
    %c3 = arith.constant 3 : index
    %c0_25 = arith.constant 0 : index
    %c0_26 = arith.constant 0 : index
    %25 = vector.load %arg5[%c3, %c0_25, %c0_26] : memref<9x128x128xbf16, #tpu.memory_space<vmem>>, vector<1x128x128xbf16>
    %26 = vector.shape_cast %25 : vector<1x128x128xbf16> to vector<128x128xbf16>
    %cst_27 = arith.constant dense<0.000000e+00> : vector<64x128xf32>
    %27 = tpu.matmul %24, %26, %cst_27 {dimension_numbers = #tpu.dot_dimension_numbers<[1], [0], [0], [1], [0, 0, 1, 1], [], []>} : vector<64x128xbf16>, vector<128x128xbf16>, vector<64x128xf32> -> vector<64x128xf32>
    %28 = arith.addf %21, %27 : vector<64x128xf32>
    %c0_28 = arith.constant 0 : index
    %c0_29 = arith.constant 0 : index
    %c0_30 = arith.constant 0 : index
    %c0_31 = arith.constant 0 : index
    %29 = vector.load %arg4[%c0_28, %c0_29, %c0_30, %c0_31] : memref<1x9x9x128xbf16, #tpu.memory_space<vmem>>, vector<1x8x8x128xbf16>
    %30 = vector.shape_cast %29 : vector<1x8x8x128xbf16> to vector<8x8x128xbf16>
    %31 = vector.shape_cast %30 : vector<8x8x128xbf16> to vector<64x128xbf16>
    %c4 = arith.constant 4 : index
    %c0_32 = arith.constant 0 : index
    %c0_33 = arith.constant 0 : index
    %32 = vector.load %arg5[%c4, %c0_32, %c0_33] : memref<9x128x128xbf16, #tpu.memory_space<vmem>>, vector<1x128x128xbf16>
    %33 = vector.shape_cast %32 : vector<1x128x128xbf16> to vector<128x128xbf16>
    %cst_34 = arith.constant dense<0.000000e+00> : vector<64x128xf32>
    %34 = tpu.matmul %31, %33, %cst_34 {dimension_numbers = #tpu.dot_dimension_numbers<[1], [0], [0], [1], [0, 0, 1, 1], [], []>} : vector<64x128xbf16>, vector<128x128xbf16>, vector<64x128xf32> -> vector<64x128xf32>
    %35 = arith.addf %28, %34 : vector<64x128xf32>
    %c0_35 = arith.constant 0 : index
    %c0_36 = arith.constant 0 : index
    %c1_37 = arith.constant 1 : index
    %c0_38 = arith.constant 0 : index
    %36 = vector.load %arg3[%c0_35, %c0_36, %c1_37, %c0_38] : memref<1x9x9x128xbf16, #tpu.memory_space<vmem>>, vector<1x8x8x128xbf16>
    %37 = vector.shape_cast %36 : vector<1x8x8x128xbf16> to vector<8x8x128xbf16>
    %38 = vector.shape_cast %37 : vector<8x8x128xbf16> to vector<64x128xbf16>
    %c5 = arith.constant 5 : index
    %c0_39 = arith.constant 0 : index
    %c0_40 = arith.constant 0 : index
    %39 = vector.load %arg5[%c5, %c0_39, %c0_40] : memref<9x128x128xbf16, #tpu.memory_space<vmem>>, vector<1x128x128xbf16>
    %40 = vector.shape_cast %39 : vector<1x128x128xbf16> to vector<128x128xbf16>
    %cst_41 = arith.constant dense<0.000000e+00> : vector<64x128xf32>
    %41 = tpu.matmul %38, %40, %cst_41 {dimension_numbers = #tpu.dot_dimension_numbers<[1], [0], [0], [1], [0, 0, 1, 1], [], []>} : vector<64x128xbf16>, vector<128x128xbf16>, vector<64x128xf32> -> vector<64x128xf32>
    %42 = arith.addf %35, %41 : vector<64x128xf32>
    %c0_42 = arith.constant 0 : index
    %c1_43 = arith.constant 1 : index
    %c0_44 = arith.constant 0 : index
    %c0_45 = arith.constant 0 : index
    %43 = vector.load %arg1[%c0_42, %c1_43, %c0_44, %c0_45] : memref<1x9x9x128xbf16, #tpu.memory_space<vmem>>, vector<1x8x8x128xbf16>
    %44 = vector.shape_cast %43 : vector<1x8x8x128xbf16> to vector<8x8x128xbf16>
    %45 = vector.shape_cast %44 : vector<8x8x128xbf16> to vector<64x128xbf16>
    %c6 = arith.constant 6 : index
    %c0_46 = arith.constant 0 : index
    %c0_47 = arith.constant 0 : index
    %46 = vector.load %arg5[%c6, %c0_46, %c0_47] : memref<9x128x128xbf16, #tpu.memory_space<vmem>>, vector<1x128x128xbf16>
    %47 = vector.shape_cast %46 : vector<1x128x128xbf16> to vector<128x128xbf16>
    %cst_48 = arith.constant dense<0.000000e+00> : vector<64x128xf32>
    %48 = tpu.matmul %45, %47, %cst_48 {dimension_numbers = #tpu.dot_dimension_numbers<[1], [0], [0], [1], [0, 0, 1, 1], [], []>} : vector<64x128xbf16>, vector<128x128xbf16>, vector<64x128xf32> -> vector<64x128xf32>
    %49 = arith.addf %42, %48 : vector<64x128xf32>
    %c0_49 = arith.constant 0 : index
    %c1_50 = arith.constant 1 : index
    %c0_51 = arith.constant 0 : index
    %c0_52 = arith.constant 0 : index
    %50 = vector.load %arg2[%c0_49, %c1_50, %c0_51, %c0_52] : memref<1x9x9x128xbf16, #tpu.memory_space<vmem>>, vector<1x8x8x128xbf16>
    %51 = vector.shape_cast %50 : vector<1x8x8x128xbf16> to vector<8x8x128xbf16>
    %52 = vector.shape_cast %51 : vector<8x8x128xbf16> to vector<64x128xbf16>
    %c7 = arith.constant 7 : index
    %c0_53 = arith.constant 0 : index
    %c0_54 = arith.constant 0 : index
    %53 = vector.load %arg5[%c7, %c0_53, %c0_54] : memref<9x128x128xbf16, #tpu.memory_space<vmem>>, vector<1x128x128xbf16>
    %54 = vector.shape_cast %53 : vector<1x128x128xbf16> to vector<128x128xbf16>
    %cst_55 = arith.constant dense<0.000000e+00> : vector<64x128xf32>
    %55 = tpu.matmul %52, %54, %cst_55 {dimension_numbers = #tpu.dot_dimension_numbers<[1], [0], [0], [1], [0, 0, 1, 1], [], []>} : vector<64x128xbf16>, vector<128x128xbf16>, vector<64x128xf32> -> vector<64x128xf32>
    %56 = arith.addf %49, %55 : vector<64x128xf32>
    %c0_56 = arith.constant 0 : index
    %c1_57 = arith.constant 1 : index
    %c1_58 = arith.constant 1 : index
    %c0_59 = arith.constant 0 : index
    %57 = vector.load %arg1[%c0_56, %c1_57, %c1_58, %c0_59] : memref<1x9x9x128xbf16, #tpu.memory_space<vmem>>, vector<1x8x8x128xbf16>
    %58 = vector.shape_cast %57 : vector<1x8x8x128xbf16> to vector<8x8x128xbf16>
    %59 = vector.shape_cast %58 : vector<8x8x128xbf16> to vector<64x128xbf16>
    %c8 = arith.constant 8 : index
    %c0_60 = arith.constant 0 : index
    %c0_61 = arith.constant 0 : index
    %60 = vector.load %arg5[%c8, %c0_60, %c0_61] : memref<9x128x128xbf16, #tpu.memory_space<vmem>>, vector<1x128x128xbf16>
    %61 = vector.shape_cast %60 : vector<1x128x128xbf16> to vector<128x128xbf16>
    %cst_62 = arith.constant dense<0.000000e+00> : vector<64x128xf32>
    %62 = tpu.matmul %59, %61, %cst_62 {dimension_numbers = #tpu.dot_dimension_numbers<[1], [0], [0], [1], [0, 0, 1, 1], [], []>} : vector<64x128xbf16>, vector<128x128xbf16>, vector<64x128xf32> -> vector<64x128xf32>
    %63 = arith.addf %56, %62 : vector<64x128xf32>
    %c0_63 = arith.constant 0 : index
    %c0_64 = arith.constant 0 : index
    %64 = vector.load %arg6[%c0_63, %c0_64] : memref<64x128xf32, #tpu.memory_space<vmem>>, vector<64x128xf32>
    tpu.vector_store %arg6[%c0_63, %c0_64], %63 {strides = array<i32>} : memref<64x128xf32, #tpu.memory_space<vmem>>, vector<64x128xf32>,
    %cst_65 = arith.constant dense<0.000000e+00> : vector<128xf32>
    %65 = vector.multi_reduction <add>, %63, %cst_65 [0] : vector<64x128xf32> to vector<128xf32>
    %66 = vector.shape_cast %65 : vector<128xf32> to vector<1x128xf32>
    %67 = arith.mulf %63, %63 : vector<64x128xf32>
    %cst_66 = arith.constant dense<0.000000e+00> : vector<128xf32>
    %68 = vector.multi_reduction <add>, %67, %cst_66 [0] : vector<64x128xf32> to vector<128xf32>
    %69 = vector.shape_cast %68 : vector<128xf32> to vector<1x128xf32>
    %70 = vector.shape_cast %66 : vector<1x128xf32> to vector<1x128xf32>
    %71 = vector.broadcast %70 : vector<1x128xf32> to vector<8x128xf32>
    %72 = vector.shape_cast %71 : vector<8x128xf32> to vector<1x8x128xf32>
    %c0_67 = arith.constant 0 : index
    %c0_68 = arith.constant 0 : index
    %c0_69 = arith.constant 0 : index
    %73 = vector.load %arg7[%c0_67, %c0_68, %c0_69] : memref<1x8x128xf32, #tpu.memory_space<vmem>>, vector<1x8x128xf32>
    tpu.vector_store %arg7[%c0_67, %c0_68, %c0_69], %72 {strides = array<i32>} : memref<1x8x128xf32, #tpu.memory_space<vmem>>, vector<1x8x128xf32>,
    %74 = vector.shape_cast %69 : vector<1x128xf32> to vector<1x128xf32>
    %75 = vector.broadcast %74 : vector<1x128xf32> to vector<8x128xf32>
    %76 = vector.shape_cast %75 : vector<8x128xf32> to vector<1x8x128xf32>
    %c0_70 = arith.constant 0 : index
    %c0_71 = arith.constant 0 : index
    %c0_72 = arith.constant 0 : index
    %77 = vector.load %arg8[%c0_70, %c0_71, %c0_72] : memref<1x8x128xf32, #tpu.memory_space<vmem>>, vector<1x8x128xf32>
    tpu.vector_store %arg8[%c0_70, %c0_71, %c0_72], %76 {strides = array<i32>} : memref<1x8x128xf32, #tpu.memory_space<vmem>>, vector<1x8x128xf32>,
    return
  }
  func.func @transform_0(%arg0: i32) -> (i32, i32, i32, i32) {
    %c0_i32 = arith.constant 0 : i32
    %c0_i32_0 = arith.constant 0 : i32
    %c0_i32_1 = arith.constant 0 : i32
    %c0_i32_2 = arith.constant 0 : i32
    return %arg0, %c0_i32, %c0_i32_0, %c0_i32_1 : i32, i32, i32, i32
  }
  func.func @transform_1(%arg0: i32) -> (i32, i32, i32, i32) {
    %c0_i32 = arith.constant 0 : i32
    %c0_i32_0 = arith.constant 0 : i32
    %c0_i32_1 = arith.constant 0 : i32
    %c0_i32_2 = arith.constant 0 : i32
    return %arg0, %c0_i32, %c0_i32_0, %c0_i32_1 : i32, i32, i32, i32
  }
  func.func @transform_2(%arg0: i32) -> (i32, i32, i32, i32) {
    %c0_i32 = arith.constant 0 : i32
    %c0_i32_0 = arith.constant 0 : i32
    %c0_i32_1 = arith.constant 0 : i32
    %c0_i32_2 = arith.constant 0 : i32
    return %arg0, %c0_i32, %c0_i32_0, %c0_i32_1 : i32, i32, i32, i32
  }
  func.func @transform_3(%arg0: i32) -> (i32, i32, i32, i32) {
    %c0_i32 = arith.constant 0 : i32
    %c0_i32_0 = arith.constant 0 : i32
    %c0_i32_1 = arith.constant 0 : i32
    %c0_i32_2 = arith.constant 0 : i32
    return %arg0, %c0_i32, %c0_i32_0, %c0_i32_1 : i32, i32, i32, i32
  }
  func.func @transform_4(%arg0: i32) -> (i32, i32, i32) {
    %c0_i32 = arith.constant 0 : i32
    %c0_i32_0 = arith.constant 0 : i32
    %c0_i32_1 = arith.constant 0 : i32
    %c0_i32_2 = arith.constant 0 : i32
    return %c0_i32, %c0_i32_0, %c0_i32_1 : i32, i32, i32
  }
  func.func @transform_5(%arg0: i32) -> (i32, i32) {
    %c0_i32 = arith.constant 0 : i32
    %c0_i32_0 = arith.constant 0 : i32
    return %arg0, %c0_i32 : i32, i32
  }
  func.func @transform_6(%arg0: i32) -> (i32, i32, i32) {
    %c0_i32 = arith.constant 0 : i32
    %c0_i32_0 = arith.constant 0 : i32
    %c0_i32_1 = arith.constant 0 : i32
    return %arg0, %c0_i32, %c0_i32_0 : i32, i32, i32
  }
  func.func @transform_7(%arg0: i32) -> (i32, i32, i32) {
    %c0_i32 = arith.constant 0 : i32
    %c0_i32_0 = arith.constant 0 : i32
    %c0_i32_1 = arith.constant 0 : i32
    return %arg0, %c0_i32, %c0_i32_0 : i32, i32, i32
  }
}

module attributes {stable_mosaic.version = 11 : i64} {
  func.func @_bn_apply_kernel(%arg0: i32, %arg1: memref<128x128xf32, #tpu.memory_space<vmem>>, %arg2: memref<1x128xf32, #tpu.memory_space<vmem>>, %arg3: memref<1x128xf32, #tpu.memory_space<vmem>>, %arg4: memref<128x128xbf16, #tpu.memory_space<vmem>>) attributes {dimension_semantics = [#tpu.dimension_semantics<parallel>], iteration_bounds = array<i64: 1>, scalar_prefetch = 0 : i64, scratch_operands = 0 : i64, tpu.core_type = #tpu.core_type<tc>, window_params = [{transform_indices = @transform_0, window_bounds = array<i64: 128, 128>}, {pipeline_mode = #tpu.pipeline_mode<synchronous>, transform_indices = @transform_1, window_bounds = array<i64: 1, 128>}, {pipeline_mode = #tpu.pipeline_mode<synchronous>, transform_indices = @transform_2, window_bounds = array<i64: 1, 128>}, {transform_indices = @transform_3, window_bounds = array<i64: 128, 128>}]} {
    %c0 = arith.constant 0 : index
    %c0_0 = arith.constant 0 : index
    %0 = vector.load %arg1[%c0, %c0_0] : memref<128x128xf32, #tpu.memory_space<vmem>>, vector<128x128xf32>
    %c0_1 = arith.constant 0 : index
    %c0_2 = arith.constant 0 : index
    %1 = vector.load %arg2[%c0_1, %c0_2] : memref<1x128xf32, #tpu.memory_space<vmem>>, vector<1x128xf32>
    %c0_3 = arith.constant 0 : index
    %c0_4 = arith.constant 0 : index
    %2 = vector.load %arg3[%c0_3, %c0_4] : memref<1x128xf32, #tpu.memory_space<vmem>>, vector<1x128xf32>
    %3 = vector.broadcast %1 : vector<1x128xf32> to vector<128x128xf32>
    %4 = arith.mulf %0, %3 : vector<128x128xf32>
    %5 = vector.broadcast %2 : vector<1x128xf32> to vector<128x128xf32>
    %6 = arith.addf %4, %5 : vector<128x128xf32>
    %cst = arith.constant 0.000000e+00 : f32
    %7 = vector.broadcast %cst : f32 to vector<128x128xf32>
    %8 = arith.maximumf %6, %7 : vector<128x128xf32>
    %9 = arith.truncf %8 : vector<128x128xf32> to vector<128x128xbf16>
    %c0_5 = arith.constant 0 : index
    %c0_6 = arith.constant 0 : index
    %10 = vector.load %arg4[%c0_5, %c0_6] : memref<128x128xbf16, #tpu.memory_space<vmem>>, vector<128x128xbf16>
    tpu.vector_store %arg4[%c0_5, %c0_6], %9 {strides = array<i32>} : memref<128x128xbf16, #tpu.memory_space<vmem>>, vector<128x128xbf16>,
    return
  }
  func.func @transform_0(%arg0: i32) -> (i32, i32) {
    %c0_i32 = arith.constant 0 : i32
    %c0_i32_0 = arith.constant 0 : i32
    return %arg0, %c0_i32 : i32, i32
  }
  func.func @transform_1(%arg0: i32) -> (i32, i32) {
    %c0_i32 = arith.constant 0 : i32
    %c0_i32_0 = arith.constant 0 : i32
    %c0_i32_1 = arith.constant 0 : i32
    return %c0_i32, %c0_i32_0 : i32, i32
  }
  func.func @transform_2(%arg0: i32) -> (i32, i32) {
    %c0_i32 = arith.constant 0 : i32
    %c0_i32_0 = arith.constant 0 : i32
    %c0_i32_1 = arith.constant 0 : i32
    return %c0_i32, %c0_i32_0 : i32, i32
  }
  func.func @transform_3(%arg0: i32) -> (i32, i32) {
    %c0_i32 = arith.constant 0 : i32
    %c0_i32_0 = arith.constant 0 : i32
    return %arg0, %c0_i32 : i32, i32
  }
}

module attributes {stable_mosaic.version = 11 : i64} {
  func.func @_conv_tap_kernel(%arg0: i32, %arg1: memref<1x10x10x128xbf16, #tpu.memory_space<vmem>>, %arg2: memref<9x128x128xbf16, #tpu.memory_space<vmem>>, %arg3: memref<64x128xf32, #tpu.memory_space<vmem>>, %arg4: memref<1x8x128xf32, #tpu.memory_space<vmem>>, %arg5: memref<1x8x128xf32, #tpu.memory_space<vmem>>) attributes {dimension_semantics = [#tpu.dimension_semantics<parallel>], iteration_bounds = array<i64: 2>, scalar_prefetch = 0 : i64, scratch_operands = 0 : i64, tpu.core_type = #tpu.core_type<tc>, window_params = [{transform_indices = @transform_0, window_bounds = array<i64: 1, 10, 10, 128>}, {pipeline_mode = #tpu.pipeline_mode<synchronous>, transform_indices = @transform_1, window_bounds = array<i64: 9, 128, 128>}, {transform_indices = @transform_2, window_bounds = array<i64: 64, 128>}, {transform_indices = @transform_3, window_bounds = array<i64: 1, 8, 128>}, {transform_indices = @transform_4, window_bounds = array<i64: 1, 8, 128>}]} {
    %cst = arith.constant 0.000000e+00 : f32
    %0 = vector.broadcast %cst : f32 to vector<64x128xf32>
    %c0 = arith.constant 0 : index
    %c0_0 = arith.constant 0 : index
    %c0_1 = arith.constant 0 : index
    %c0_2 = arith.constant 0 : index
    %1 = vector.load %arg1[%c0, %c0_0, %c0_1, %c0_2] : memref<1x10x10x128xbf16, #tpu.memory_space<vmem>>, vector<1x8x8x128xbf16>
    %2 = vector.shape_cast %1 : vector<1x8x8x128xbf16> to vector<8x8x128xbf16>
    %3 = vector.shape_cast %2 : vector<8x8x128xbf16> to vector<64x128xbf16>
    %c0_3 = arith.constant 0 : index
    %c0_4 = arith.constant 0 : index
    %c0_5 = arith.constant 0 : index
    %4 = vector.load %arg2[%c0_3, %c0_4, %c0_5] : memref<9x128x128xbf16, #tpu.memory_space<vmem>>, vector<1x128x128xbf16>
    %5 = vector.shape_cast %4 : vector<1x128x128xbf16> to vector<128x128xbf16>
    %cst_6 = arith.constant dense<0.000000e+00> : vector<64x128xf32>
    %6 = tpu.matmul %3, %5, %cst_6 {dimension_numbers = #tpu.dot_dimension_numbers<[1], [0], [0], [1], [0, 0, 1, 1], [], []>} : vector<64x128xbf16>, vector<128x128xbf16>, vector<64x128xf32> -> vector<64x128xf32>
    %7 = arith.addf %0, %6 : vector<64x128xf32>
    %c0_7 = arith.constant 0 : index
    %c0_8 = arith.constant 0 : index
    %c1 = arith.constant 1 : index
    %c0_9 = arith.constant 0 : index
    %8 = vector.load %arg1[%c0_7, %c0_8, %c1, %c0_9] : memref<1x10x10x128xbf16, #tpu.memory_space<vmem>>, vector<1x8x8x128xbf16>
    %9 = vector.shape_cast %8 : vector<1x8x8x128xbf16> to vector<8x8x128xbf16>
    %10 = vector.shape_cast %9 : vector<8x8x128xbf16> to vector<64x128xbf16>
    %c1_10 = arith.constant 1 : index
    %c0_11 = arith.constant 0 : index
    %c0_12 = arith.constant 0 : index
    %11 = vector.load %arg2[%c1_10, %c0_11, %c0_12] : memref<9x128x128xbf16, #tpu.memory_space<vmem>>, vector<1x128x128xbf16>
    %12 = vector.shape_cast %11 : vector<1x128x128xbf16> to vector<128x128xbf16>
    %cst_13 = arith.constant dense<0.000000e+00> : vector<64x128xf32>
    %13 = tpu.matmul %10, %12, %cst_13 {dimension_numbers = #tpu.dot_dimension_numbers<[1], [0], [0], [1], [0, 0, 1, 1], [], []>} : vector<64x128xbf16>, vector<128x128xbf16>, vector<64x128xf32> -> vector<64x128xf32>
    %14 = arith.addf %7, %13 : vector<64x128xf32>
    %c0_14 = arith.constant 0 : index
    %c0_15 = arith.constant 0 : index
    %c2 = arith.constant 2 : index
    %c0_16 = arith.constant 0 : index
    %15 = vector.load %arg1[%c0_14, %c0_15, %c2, %c0_16] : memref<1x10x10x128xbf16, #tpu.memory_space<vmem>>, vector<1x8x8x128xbf16>
    %16 = vector.shape_cast %15 : vector<1x8x8x128xbf16> to vector<8x8x128xbf16>
    %17 = vector.shape_cast %16 : vector<8x8x128xbf16> to vector<64x128xbf16>
    %c2_17 = arith.constant 2 : index
    %c0_18 = arith.constant 0 : index
    %c0_19 = arith.constant 0 : index
    %18 = vector.load %arg2[%c2_17, %c0_18, %c0_19] : memref<9x128x128xbf16, #tpu.memory_space<vmem>>, vector<1x128x128xbf16>
    %19 = vector.shape_cast %18 : vector<1x128x128xbf16> to vector<128x128xbf16>
    %cst_20 = arith.constant dense<0.000000e+00> : vector<64x128xf32>
    %20 = tpu.matmul %17, %19, %cst_20 {dimension_numbers = #tpu.dot_dimension_numbers<[1], [0], [0], [1], [0, 0, 1, 1], [], []>} : vector<64x128xbf16>, vector<128x128xbf16>, vector<64x128xf32> -> vector<64x128xf32>
    %21 = arith.addf %14, %20 : vector<64x128xf32>
    %c0_21 = arith.constant 0 : index
    %c1_22 = arith.constant 1 : index
    %c0_23 = arith.constant 0 : index
    %c0_24 = arith.constant 0 : index
    %22 = vector.load %arg1[%c0_21, %c1_22, %c0_23, %c0_24] : memref<1x10x10x128xbf16, #tpu.memory_space<vmem>>, vector<1x8x8x128xbf16>
    %23 = vector.shape_cast %22 : vector<1x8x8x128xbf16> to vector<8x8x128xbf16>
    %24 = vector.shape_cast %23 : vector<8x8x128xbf16> to vector<64x128xbf16>
    %c3 = arith.constant 3 : index
    %c0_25 = arith.constant 0 : index
    %c0_26 = arith.constant 0 : index
    %25 = vector.load %arg2[%c3, %c0_25, %c0_26] : memref<9x128x128xbf16, #tpu.memory_space<vmem>>, vector<1x128x128xbf16>
    %26 = vector.shape_cast %25 : vector<1x128x128xbf16> to vector<128x128xbf16>
    %cst_27 = arith.constant dense<0.000000e+00> : vector<64x128xf32>
    %27 = tpu.matmul %24, %26, %cst_27 {dimension_numbers = #tpu.dot_dimension_numbers<[1], [0], [0], [1], [0, 0, 1, 1], [], []>} : vector<64x128xbf16>, vector<128x128xbf16>, vector<64x128xf32> -> vector<64x128xf32>
    %28 = arith.addf %21, %27 : vector<64x128xf32>
    %c0_28 = arith.constant 0 : index
    %c1_29 = arith.constant 1 : index
    %c1_30 = arith.constant 1 : index
    %c0_31 = arith.constant 0 : index
    %29 = vector.load %arg1[%c0_28, %c1_29, %c1_30, %c0_31] : memref<1x10x10x128xbf16, #tpu.memory_space<vmem>>, vector<1x8x8x128xbf16>
    %30 = vector.shape_cast %29 : vector<1x8x8x128xbf16> to vector<8x8x128xbf16>
    %31 = vector.shape_cast %30 : vector<8x8x128xbf16> to vector<64x128xbf16>
    %c4 = arith.constant 4 : index
    %c0_32 = arith.constant 0 : index
    %c0_33 = arith.constant 0 : index
    %32 = vector.load %arg2[%c4, %c0_32, %c0_33] : memref<9x128x128xbf16, #tpu.memory_space<vmem>>, vector<1x128x128xbf16>
    %33 = vector.shape_cast %32 : vector<1x128x128xbf16> to vector<128x128xbf16>
    %cst_34 = arith.constant dense<0.000000e+00> : vector<64x128xf32>
    %34 = tpu.matmul %31, %33, %cst_34 {dimension_numbers = #tpu.dot_dimension_numbers<[1], [0], [0], [1], [0, 0, 1, 1], [], []>} : vector<64x128xbf16>, vector<128x128xbf16>, vector<64x128xf32> -> vector<64x128xf32>
    %35 = arith.addf %28, %34 : vector<64x128xf32>
    %c0_35 = arith.constant 0 : index
    %c1_36 = arith.constant 1 : index
    %c2_37 = arith.constant 2 : index
    %c0_38 = arith.constant 0 : index
    %36 = vector.load %arg1[%c0_35, %c1_36, %c2_37, %c0_38] : memref<1x10x10x128xbf16, #tpu.memory_space<vmem>>, vector<1x8x8x128xbf16>
    %37 = vector.shape_cast %36 : vector<1x8x8x128xbf16> to vector<8x8x128xbf16>
    %38 = vector.shape_cast %37 : vector<8x8x128xbf16> to vector<64x128xbf16>
    %c5 = arith.constant 5 : index
    %c0_39 = arith.constant 0 : index
    %c0_40 = arith.constant 0 : index
    %39 = vector.load %arg2[%c5, %c0_39, %c0_40] : memref<9x128x128xbf16, #tpu.memory_space<vmem>>, vector<1x128x128xbf16>
    %40 = vector.shape_cast %39 : vector<1x128x128xbf16> to vector<128x128xbf16>
    %cst_41 = arith.constant dense<0.000000e+00> : vector<64x128xf32>
    %41 = tpu.matmul %38, %40, %cst_41 {dimension_numbers = #tpu.dot_dimension_numbers<[1], [0], [0], [1], [0, 0, 1, 1], [], []>} : vector<64x128xbf16>, vector<128x128xbf16>, vector<64x128xf32> -> vector<64x128xf32>
    %42 = arith.addf %35, %41 : vector<64x128xf32>
    %c0_42 = arith.constant 0 : index
    %c2_43 = arith.constant 2 : index
    %c0_44 = arith.constant 0 : index
    %c0_45 = arith.constant 0 : index
    %43 = vector.load %arg1[%c0_42, %c2_43, %c0_44, %c0_45] : memref<1x10x10x128xbf16, #tpu.memory_space<vmem>>, vector<1x8x8x128xbf16>
    %44 = vector.shape_cast %43 : vector<1x8x8x128xbf16> to vector<8x8x128xbf16>
    %45 = vector.shape_cast %44 : vector<8x8x128xbf16> to vector<64x128xbf16>
    %c6 = arith.constant 6 : index
    %c0_46 = arith.constant 0 : index
    %c0_47 = arith.constant 0 : index
    %46 = vector.load %arg2[%c6, %c0_46, %c0_47] : memref<9x128x128xbf16, #tpu.memory_space<vmem>>, vector<1x128x128xbf16>
    %47 = vector.shape_cast %46 : vector<1x128x128xbf16> to vector<128x128xbf16>
    %cst_48 = arith.constant dense<0.000000e+00> : vector<64x128xf32>
    %48 = tpu.matmul %45, %47, %cst_48 {dimension_numbers = #tpu.dot_dimension_numbers<[1], [0], [0], [1], [0, 0, 1, 1], [], []>} : vector<64x128xbf16>, vector<128x128xbf16>, vector<64x128xf32> -> vector<64x128xf32>
    %49 = arith.addf %42, %48 : vector<64x128xf32>
    %c0_49 = arith.constant 0 : index
    %c2_50 = arith.constant 2 : index
    %c1_51 = arith.constant 1 : index
    %c0_52 = arith.constant 0 : index
    %50 = vector.load %arg1[%c0_49, %c2_50, %c1_51, %c0_52] : memref<1x10x10x128xbf16, #tpu.memory_space<vmem>>, vector<1x8x8x128xbf16>
    %51 = vector.shape_cast %50 : vector<1x8x8x128xbf16> to vector<8x8x128xbf16>
    %52 = vector.shape_cast %51 : vector<8x8x128xbf16> to vector<64x128xbf16>
    %c7 = arith.constant 7 : index
    %c0_53 = arith.constant 0 : index
    %c0_54 = arith.constant 0 : index
    %53 = vector.load %arg2[%c7, %c0_53, %c0_54] : memref<9x128x128xbf16, #tpu.memory_space<vmem>>, vector<1x128x128xbf16>
    %54 = vector.shape_cast %53 : vector<1x128x128xbf16> to vector<128x128xbf16>
    %cst_55 = arith.constant dense<0.000000e+00> : vector<64x128xf32>
    %55 = tpu.matmul %52, %54, %cst_55 {dimension_numbers = #tpu.dot_dimension_numbers<[1], [0], [0], [1], [0, 0, 1, 1], [], []>} : vector<64x128xbf16>, vector<128x128xbf16>, vector<64x128xf32> -> vector<64x128xf32>
    %56 = arith.addf %49, %55 : vector<64x128xf32>
    %c0_56 = arith.constant 0 : index
    %c2_57 = arith.constant 2 : index
    %c2_58 = arith.constant 2 : index
    %c0_59 = arith.constant 0 : index
    %57 = vector.load %arg1[%c0_56, %c2_57, %c2_58, %c0_59] : memref<1x10x10x128xbf16, #tpu.memory_space<vmem>>, vector<1x8x8x128xbf16>
    %58 = vector.shape_cast %57 : vector<1x8x8x128xbf16> to vector<8x8x128xbf16>
    %59 = vector.shape_cast %58 : vector<8x8x128xbf16> to vector<64x128xbf16>
    %c8 = arith.constant 8 : index
    %c0_60 = arith.constant 0 : index
    %c0_61 = arith.constant 0 : index
    %60 = vector.load %arg2[%c8, %c0_60, %c0_61] : memref<9x128x128xbf16, #tpu.memory_space<vmem>>, vector<1x128x128xbf16>
    %61 = vector.shape_cast %60 : vector<1x128x128xbf16> to vector<128x128xbf16>
    %cst_62 = arith.constant dense<0.000000e+00> : vector<64x128xf32>
    %62 = tpu.matmul %59, %61, %cst_62 {dimension_numbers = #tpu.dot_dimension_numbers<[1], [0], [0], [1], [0, 0, 1, 1], [], []>} : vector<64x128xbf16>, vector<128x128xbf16>, vector<64x128xf32> -> vector<64x128xf32>
    %63 = arith.addf %56, %62 : vector<64x128xf32>
    %c0_63 = arith.constant 0 : index
    %c0_64 = arith.constant 0 : index
    %64 = vector.load %arg3[%c0_63, %c0_64] : memref<64x128xf32, #tpu.memory_space<vmem>>, vector<64x128xf32>
    tpu.vector_store %arg3[%c0_63, %c0_64], %63 {strides = array<i32>} : memref<64x128xf32, #tpu.memory_space<vmem>>, vector<64x128xf32>,
    %cst_65 = arith.constant dense<0.000000e+00> : vector<128xf32>
    %65 = vector.multi_reduction <add>, %63, %cst_65 [0] : vector<64x128xf32> to vector<128xf32>
    %66 = vector.shape_cast %65 : vector<128xf32> to vector<1x128xf32>
    %67 = arith.mulf %63, %63 : vector<64x128xf32>
    %cst_66 = arith.constant dense<0.000000e+00> : vector<128xf32>
    %68 = vector.multi_reduction <add>, %67, %cst_66 [0] : vector<64x128xf32> to vector<128xf32>
    %69 = vector.shape_cast %68 : vector<128xf32> to vector<1x128xf32>
    %70 = vector.shape_cast %66 : vector<1x128xf32> to vector<1x128xf32>
    %71 = vector.broadcast %70 : vector<1x128xf32> to vector<8x128xf32>
    %72 = vector.shape_cast %71 : vector<8x128xf32> to vector<1x8x128xf32>
    %c0_67 = arith.constant 0 : index
    %c0_68 = arith.constant 0 : index
    %c0_69 = arith.constant 0 : index
    %73 = vector.load %arg4[%c0_67, %c0_68, %c0_69] : memref<1x8x128xf32, #tpu.memory_space<vmem>>, vector<1x8x128xf32>
    tpu.vector_store %arg4[%c0_67, %c0_68, %c0_69], %72 {strides = array<i32>} : memref<1x8x128xf32, #tpu.memory_space<vmem>>, vector<1x8x128xf32>,
    %74 = vector.shape_cast %69 : vector<1x128xf32> to vector<1x128xf32>
    %75 = vector.broadcast %74 : vector<1x128xf32> to vector<8x128xf32>
    %76 = vector.shape_cast %75 : vector<8x128xf32> to vector<1x8x128xf32>
    %c0_70 = arith.constant 0 : index
    %c0_71 = arith.constant 0 : index
    %c0_72 = arith.constant 0 : index
    %77 = vector.load %arg5[%c0_70, %c0_71, %c0_72] : memref<1x8x128xf32, #tpu.memory_space<vmem>>, vector<1x8x128xf32>
    tpu.vector_store %arg5[%c0_70, %c0_71, %c0_72], %76 {strides = array<i32>} : memref<1x8x128xf32, #tpu.memory_space<vmem>>, vector<1x8x128xf32>,
    return
  }
  func.func @transform_0(%arg0: i32) -> (i32, i32, i32, i32) {
    %c0_i32 = arith.constant 0 : i32
    %c0_i32_0 = arith.constant 0 : i32
    %c0_i32_1 = arith.constant 0 : i32
    %c0_i32_2 = arith.constant 0 : i32
    return %arg0, %c0_i32, %c0_i32_0, %c0_i32_1 : i32, i32, i32, i32
  }
  func.func @transform_1(%arg0: i32) -> (i32, i32, i32) {
    %c0_i32 = arith.constant 0 : i32
    %c0_i32_0 = arith.constant 0 : i32
    %c0_i32_1 = arith.constant 0 : i32
    %c0_i32_2 = arith.constant 0 : i32
    return %c0_i32, %c0_i32_0, %c0_i32_1 : i32, i32, i32
  }
  func.func @transform_2(%arg0: i32) -> (i32, i32) {
    %c0_i32 = arith.constant 0 : i32
    %c0_i32_0 = arith.constant 0 : i32
    return %arg0, %c0_i32 : i32, i32
  }
  func.func @transform_3(%arg0: i32) -> (i32, i32, i32) {
    %c0_i32 = arith.constant 0 : i32
    %c0_i32_0 = arith.constant 0 : i32
    %c0_i32_1 = arith.constant 0 : i32
    return %arg0, %c0_i32, %c0_i32_0 : i32, i32, i32
  }
  func.func @transform_4(%arg0: i32) -> (i32, i32, i32) {
    %c0_i32 = arith.constant 0 : i32
    %c0_i32_0 = arith.constant 0 : i32
    %c0_i32_1 = arith.constant 0 : i32
    return %arg0, %c0_i32, %c0_i32_0 : i32, i32, i32
  }
}

module attributes {stable_mosaic.version = 11 : i64} {
  func.func @_conv_tap_kernel(%arg0: i32, %arg1: memref<1x8x8x128xbf16, #tpu.memory_space<vmem>>, %arg2: memref<1x128x128xbf16, #tpu.memory_space<vmem>>, %arg3: memref<64x128xf32, #tpu.memory_space<vmem>>, %arg4: memref<1x8x128xf32, #tpu.memory_space<vmem>>, %arg5: memref<1x8x128xf32, #tpu.memory_space<vmem>>) attributes {dimension_semantics = [#tpu.dimension_semantics<parallel>], iteration_bounds = array<i64: 2>, scalar_prefetch = 0 : i64, scratch_operands = 0 : i64, tpu.core_type = #tpu.core_type<tc>, window_params = [{transform_indices = @transform_0, window_bounds = array<i64: 1, 8, 8, 128>}, {pipeline_mode = #tpu.pipeline_mode<synchronous>, transform_indices = @transform_1, window_bounds = array<i64: 1, 128, 128>}, {transform_indices = @transform_2, window_bounds = array<i64: 64, 128>}, {transform_indices = @transform_3, window_bounds = array<i64: 1, 8, 128>}, {transform_indices = @transform_4, window_bounds = array<i64: 1, 8, 128>}]} {
    %cst = arith.constant 0.000000e+00 : f32
    %0 = vector.broadcast %cst : f32 to vector<64x128xf32>
    %c0 = arith.constant 0 : index
    %c0_0 = arith.constant 0 : index
    %c0_1 = arith.constant 0 : index
    %c0_2 = arith.constant 0 : index
    %1 = vector.load %arg1[%c0, %c0_0, %c0_1, %c0_2] : memref<1x8x8x128xbf16, #tpu.memory_space<vmem>>, vector<1x8x8x128xbf16>
    %2 = vector.shape_cast %1 : vector<1x8x8x128xbf16> to vector<8x8x128xbf16>
    %3 = vector.shape_cast %2 : vector<8x8x128xbf16> to vector<64x128xbf16>
    %c0_3 = arith.constant 0 : index
    %c0_4 = arith.constant 0 : index
    %c0_5 = arith.constant 0 : index
    %4 = vector.load %arg2[%c0_3, %c0_4, %c0_5] : memref<1x128x128xbf16, #tpu.memory_space<vmem>>, vector<1x128x128xbf16>
    %5 = vector.shape_cast %4 : vector<1x128x128xbf16> to vector<128x128xbf16>
    %cst_6 = arith.constant dense<0.000000e+00> : vector<64x128xf32>
    %6 = tpu.matmul %3, %5, %cst_6 {dimension_numbers = #tpu.dot_dimension_numbers<[1], [0], [0], [1], [0, 0, 1, 1], [], []>} : vector<64x128xbf16>, vector<128x128xbf16>, vector<64x128xf32> -> vector<64x128xf32>
    %7 = arith.addf %0, %6 : vector<64x128xf32>
    %c0_7 = arith.constant 0 : index
    %c0_8 = arith.constant 0 : index
    %8 = vector.load %arg3[%c0_7, %c0_8] : memref<64x128xf32, #tpu.memory_space<vmem>>, vector<64x128xf32>
    tpu.vector_store %arg3[%c0_7, %c0_8], %7 {strides = array<i32>} : memref<64x128xf32, #tpu.memory_space<vmem>>, vector<64x128xf32>,
    %cst_9 = arith.constant dense<0.000000e+00> : vector<128xf32>
    %9 = vector.multi_reduction <add>, %7, %cst_9 [0] : vector<64x128xf32> to vector<128xf32>
    %10 = vector.shape_cast %9 : vector<128xf32> to vector<1x128xf32>
    %11 = arith.mulf %7, %7 : vector<64x128xf32>
    %cst_10 = arith.constant dense<0.000000e+00> : vector<128xf32>
    %12 = vector.multi_reduction <add>, %11, %cst_10 [0] : vector<64x128xf32> to vector<128xf32>
    %13 = vector.shape_cast %12 : vector<128xf32> to vector<1x128xf32>
    %14 = vector.shape_cast %10 : vector<1x128xf32> to vector<1x128xf32>
    %15 = vector.broadcast %14 : vector<1x128xf32> to vector<8x128xf32>
    %16 = vector.shape_cast %15 : vector<8x128xf32> to vector<1x8x128xf32>
    %c0_11 = arith.constant 0 : index
    %c0_12 = arith.constant 0 : index
    %c0_13 = arith.constant 0 : index
    %17 = vector.load %arg4[%c0_11, %c0_12, %c0_13] : memref<1x8x128xf32, #tpu.memory_space<vmem>>, vector<1x8x128xf32>
    tpu.vector_store %arg4[%c0_11, %c0_12, %c0_13], %16 {strides = array<i32>} : memref<1x8x128xf32, #tpu.memory_space<vmem>>, vector<1x8x128xf32>,
    %18 = vector.shape_cast %13 : vector<1x128xf32> to vector<1x128xf32>
    %19 = vector.broadcast %18 : vector<1x128xf32> to vector<8x128xf32>
    %20 = vector.shape_cast %19 : vector<8x128xf32> to vector<1x8x128xf32>
    %c0_14 = arith.constant 0 : index
    %c0_15 = arith.constant 0 : index
    %c0_16 = arith.constant 0 : index
    %21 = vector.load %arg5[%c0_14, %c0_15, %c0_16] : memref<1x8x128xf32, #tpu.memory_space<vmem>>, vector<1x8x128xf32>
    tpu.vector_store %arg5[%c0_14, %c0_15, %c0_16], %20 {strides = array<i32>} : memref<1x8x128xf32, #tpu.memory_space<vmem>>, vector<1x8x128xf32>,
    return
  }
  func.func @transform_0(%arg0: i32) -> (i32, i32, i32, i32) {
    %c0_i32 = arith.constant 0 : i32
    %c0_i32_0 = arith.constant 0 : i32
    %c0_i32_1 = arith.constant 0 : i32
    %c0_i32_2 = arith.constant 0 : i32
    return %arg0, %c0_i32, %c0_i32_0, %c0_i32_1 : i32, i32, i32, i32
  }
  func.func @transform_1(%arg0: i32) -> (i32, i32, i32) {
    %c0_i32 = arith.constant 0 : i32
    %c0_i32_0 = arith.constant 0 : i32
    %c0_i32_1 = arith.constant 0 : i32
    %c0_i32_2 = arith.constant 0 : i32
    return %c0_i32, %c0_i32_0, %c0_i32_1 : i32, i32, i32
  }
  func.func @transform_2(%arg0: i32) -> (i32, i32) {
    %c0_i32 = arith.constant 0 : i32
    %c0_i32_0 = arith.constant 0 : i32
    return %arg0, %c0_i32 : i32, i32
  }
  func.func @transform_3(%arg0: i32) -> (i32, i32, i32) {
    %c0_i32 = arith.constant 0 : i32
    %c0_i32_0 = arith.constant 0 : i32
    %c0_i32_1 = arith.constant 0 : i32
    return %arg0, %c0_i32, %c0_i32_0 : i32, i32, i32
  }
  func.func @transform_4(%arg0: i32) -> (i32, i32, i32) {
    %c0_i32 = arith.constant 0 : i32
    %c0_i32_0 = arith.constant 0 : i32
    %c0_i32_1 = arith.constant 0 : i32
    return %arg0, %c0_i32, %c0_i32_0 : i32, i32, i32
  }
}

module attributes {stable_mosaic.version = 11 : i64} {
  func.func @_bn_apply_kernel(%arg0: i32, %arg1: memref<128x128xf32, #tpu.memory_space<vmem>>, %arg2: memref<1x128xf32, #tpu.memory_space<vmem>>, %arg3: memref<1x128xf32, #tpu.memory_space<vmem>>, %arg4: memref<128x128xf32, #tpu.memory_space<vmem>>, %arg5: memref<1x128xf32, #tpu.memory_space<vmem>>, %arg6: memref<1x128xf32, #tpu.memory_space<vmem>>, %arg7: memref<128x128xf32, #tpu.memory_space<vmem>>) attributes {dimension_semantics = [#tpu.dimension_semantics<parallel>], iteration_bounds = array<i64: 1>, scalar_prefetch = 0 : i64, scratch_operands = 0 : i64, tpu.core_type = #tpu.core_type<tc>, window_params = [{transform_indices = @transform_0, window_bounds = array<i64: 128, 128>}, {pipeline_mode = #tpu.pipeline_mode<synchronous>, transform_indices = @transform_1, window_bounds = array<i64: 1, 128>}, {pipeline_mode = #tpu.pipeline_mode<synchronous>, transform_indices = @transform_2, window_bounds = array<i64: 1, 128>}, {transform_indices = @transform_3, window_bounds = array<i64: 128, 128>}, {pipeline_mode = #tpu.pipeline_mode<synchronous>, transform_indices = @transform_4, window_bounds = array<i64: 1, 128>}, {pipeline_mode = #tpu.pipeline_mode<synchronous>, transform_indices = @transform_5, window_bounds = array<i64: 1, 128>}, {transform_indices = @transform_6, window_bounds = array<i64: 128, 128>}]} {
    %c0 = arith.constant 0 : index
    %c0_0 = arith.constant 0 : index
    %0 = vector.load %arg1[%c0, %c0_0] : memref<128x128xf32, #tpu.memory_space<vmem>>, vector<128x128xf32>
    %c0_1 = arith.constant 0 : index
    %c0_2 = arith.constant 0 : index
    %1 = vector.load %arg2[%c0_1, %c0_2] : memref<1x128xf32, #tpu.memory_space<vmem>>, vector<1x128xf32>
    %c0_3 = arith.constant 0 : index
    %c0_4 = arith.constant 0 : index
    %2 = vector.load %arg3[%c0_3, %c0_4] : memref<1x128xf32, #tpu.memory_space<vmem>>, vector<1x128xf32>
    %3 = vector.broadcast %1 : vector<1x128xf32> to vector<128x128xf32>
    %4 = arith.mulf %0, %3 : vector<128x128xf32>
    %5 = vector.broadcast %2 : vector<1x128xf32> to vector<128x128xf32>
    %6 = arith.addf %4, %5 : vector<128x128xf32>
    %c0_5 = arith.constant 0 : index
    %c0_6 = arith.constant 0 : index
    %7 = vector.load %arg4[%c0_5, %c0_6] : memref<128x128xf32, #tpu.memory_space<vmem>>, vector<128x128xf32>
    %c0_7 = arith.constant 0 : index
    %c0_8 = arith.constant 0 : index
    %8 = vector.load %arg5[%c0_7, %c0_8] : memref<1x128xf32, #tpu.memory_space<vmem>>, vector<1x128xf32>
    %c0_9 = arith.constant 0 : index
    %c0_10 = arith.constant 0 : index
    %9 = vector.load %arg6[%c0_9, %c0_10] : memref<1x128xf32, #tpu.memory_space<vmem>>, vector<1x128xf32>
    %10 = vector.broadcast %8 : vector<1x128xf32> to vector<128x128xf32>
    %11 = arith.mulf %7, %10 : vector<128x128xf32>
    %12 = vector.broadcast %9 : vector<1x128xf32> to vector<128x128xf32>
    %13 = arith.addf %11, %12 : vector<128x128xf32>
    %14 = arith.addf %6, %13 : vector<128x128xf32>
    %cst = arith.constant 0.000000e+00 : f32
    %15 = vector.broadcast %cst : f32 to vector<128x128xf32>
    %16 = arith.maximumf %14, %15 : vector<128x128xf32>
    %c0_11 = arith.constant 0 : index
    %c0_12 = arith.constant 0 : index
    %17 = vector.load %arg7[%c0_11, %c0_12] : memref<128x128xf32, #tpu.memory_space<vmem>>, vector<128x128xf32>
    tpu.vector_store %arg7[%c0_11, %c0_12], %16 {strides = array<i32>} : memref<128x128xf32, #tpu.memory_space<vmem>>, vector<128x128xf32>,
    return
  }
  func.func @transform_0(%arg0: i32) -> (i32, i32) {
    %c0_i32 = arith.constant 0 : i32
    %c0_i32_0 = arith.constant 0 : i32
    return %arg0, %c0_i32 : i32, i32
  }
  func.func @transform_1(%arg0: i32) -> (i32, i32) {
    %c0_i32 = arith.constant 0 : i32
    %c0_i32_0 = arith.constant 0 : i32
    %c0_i32_1 = arith.constant 0 : i32
    return %c0_i32, %c0_i32_0 : i32, i32
  }
  func.func @transform_2(%arg0: i32) -> (i32, i32) {
    %c0_i32 = arith.constant 0 : i32
    %c0_i32_0 = arith.constant 0 : i32
    %c0_i32_1 = arith.constant 0 : i32
    return %c0_i32, %c0_i32_0 : i32, i32
  }
  func.func @transform_3(%arg0: i32) -> (i32, i32) {
    %c0_i32 = arith.constant 0 : i32
    %c0_i32_0 = arith.constant 0 : i32
    return %arg0, %c0_i32 : i32, i32
  }
  func.func @transform_4(%arg0: i32) -> (i32, i32) {
    %c0_i32 = arith.constant 0 : i32
    %c0_i32_0 = arith.constant 0 : i32
    %c0_i32_1 = arith.constant 0 : i32
    return %c0_i32, %c0_i32_0 : i32, i32
  }
  func.func @transform_5(%arg0: i32) -> (i32, i32) {
    %c0_i32 = arith.constant 0 : i32
    %c0_i32_0 = arith.constant 0 : i32
    %c0_i32_1 = arith.constant 0 : i32
    return %c0_i32, %c0_i32_0 : i32, i32
  }
  func.func @transform_6(%arg0: i32) -> (i32, i32) {
    %c0_i32 = arith.constant 0 : i32
    %c0_i32_0 = arith.constant 0 : i32
    return %arg0, %c0_i32 : i32, i32
  }
}

</mosaic_0001>

<llo_original>
// kernel: basic_block_forward.6
$region0: #{basic_block_forward.6}
  #allocation0 [shape = 'u32[]', space=smem, size = 0x4, offset = 0x4, fixed_abs, tag = 'smem constant byte address 0x4 - core index']
  #allocation1 [shape = 'u32[144,128]{1,0:T(1,128)}', space=vmem, size = 0x12000, scoped, tag = 'internal scratch']
  %s0 = inlined_call_operand.vmem [shape: f32[128,128], index: 0, kind: input, shape index: {}]
  %s1 = inlined_call_operand.vmem [shape: f32[1,128], index: 1, kind: input, shape index: {}]
  %s2 = inlined_call_operand.vmem [shape: f32[1,128], index: 2, kind: input, shape index: {}]
  %s3 = inlined_call_operand.vmem [shape: bf16[128,128], index: 3, kind: output, shape index: {}]
  %s4 = sld [smem:[#allocation0]]
  $region22: #{basic_block_forward.6} parent=0
    _
  %s6 = ssub.s32 1, %s4
  %s7 = scalar_select 0, %s6, %s4
  // Predicated region
  $region2: #{basic_block_forward.6} parent=0 // pred_check
    _
  $region3: #{basic_block_forward.6} parent=0 // pred_check_branch
    %9 = sbr.rel (0) target = $region5
  $region4: #{basic_block_forward.6} parent=0 // pred_region
    _
  $region5: #{basic_block_forward.6} parent=0 // pred_fallthru
    _
  // Predicated region
  $region6: #{basic_block_forward.6} parent=0 // pred_check
    _
  $region7: #{basic_block_forward.6} parent=0 // pred_check_branch
    %11 = sbr.rel (0) target = $region9
  $region8: #{basic_block_forward.6} parent=0 // pred_region
    _
  $region9: #{basic_block_forward.6} parent=0 // pred_fallthru
    _
  // Predicated region
  $region10: #{basic_block_forward.6} parent=0 // pred_check
    _
  $region11: #{basic_block_forward.6} parent=0 // pred_check_branch
    %13 = sbr.rel (0) target = $region13
  $region12: #{basic_block_forward.6} parent=0 // pred_region
    _
  $region13: #{basic_block_forward.6} parent=0 // pred_fallthru
    _
  %v14 = vld [vmem:[%s0] sm:$0xff]
  %v15 = vld [vmem:[%s0 + $0x8] sm:$0xff]
  %v16 = vld [vmem:[%s0 + $0x10] sm:$0xff]
  %v17 = vld [vmem:[%s0 + $0x18] sm:$0xff]
  %v18 = vld [vmem:[%s0 + $0x20] sm:$0xff]
  %v19 = vld [vmem:[%s0 + $0x28] sm:$0xff]
  %v20 = vld [vmem:[%s0 + $0x30] sm:$0xff]
  %v21 = vld [vmem:[%s0 + $0x38] sm:$0xff]
  %v22 = vld [vmem:[%s0 + $0x40] sm:$0xff]
  %v23 = vld [vmem:[%s0 + $0x48] sm:$0xff]
  %v24 = vld [vmem:[%s0 + $0x50] sm:$0xff]
  %v25 = vld [vmem:[%s0 + $0x58] sm:$0xff]
  %v26 = vld [vmem:[%s0 + $0x60] sm:$0xff]
  %v27 = vld [vmem:[%s0 + $0x68] sm:$0xff]
  %v28 = vld [vmem:[%s0 + $0x70] sm:$0xff]
  %v29 = vld [vmem:[%s0 + $0x78] sm:$0xff]
  %v30 = vld [vmem:[%s1] sm:$0x1]
  %v31 = vld [vmem:[%s2] sm:$0x1]
  %v33 = vlaneseq
  %v34 = vshrl.u32 %v33, 7
  %v35 = vsub.s32 0, %v34
  %v36 = vrot.slane %v30, %v35
  %v38 = vmul.f32 %v14, %v36
  %v39 = vmul.f32 %v15, %v36
  %v40 = vmul.f32 %v16, %v36
  %v41 = vmul.f32 %v17, %v36
  %v42 = vmul.f32 %v18, %v36
  %v43 = vmul.f32 %v19, %v36
  %v44 = vmul.f32 %v20, %v36
  %v45 = vmul.f32 %v21, %v36
  %v46 = vmul.f32 %v22, %v36
  %v47 = vmul.f32 %v23, %v36
  %v48 = vmul.f32 %v24, %v36
  %v49 = vmul.f32 %v25, %v36
  %v50 = vmul.f32 %v26, %v36
  %v51 = vmul.f32 %v27, %v36
  %v52 = vmul.f32 %v28, %v36
  %v53 = vmul.f32 %v29, %v36
  %v55 = vlaneseq
  %v56 = vshrl.u32 %v55, 7
  %v57 = vsub.s32 0, %v56
  %v58 = vrot.slane %v31, %v57
  %v60 = vadd.f32 %v38, %v58
  %v61 = vadd.f32 %v39, %v58
  %v62 = vadd.f32 %v40, %v58
  %v63 = vadd.f32 %v41, %v58
  %v64 = vadd.f32 %v42, %v58
  %v65 = vadd.f32 %v43, %v58
  %v66 = vadd.f32 %v44, %v58
  %v67 = vadd.f32 %v45, %v58
  %v68 = vadd.f32 %v46, %v58
  %v69 = vadd.f32 %v47, %v58
  %v70 = vadd.f32 %v48, %v58
  %v71 = vadd.f32 %v49, %v58
  %v72 = vadd.f32 %v50, %v58
  %v73 = vadd.f32 %v51, %v58
  %v74 = vadd.f32 %v52, %v58
  %v75 = vadd.f32 %v53, %v58
  %v76 = vmax.f32 %v60, 0.0
  %v77 = vmax.f32 %v61, 0.0
  %v78 = vmax.f32 %v62, 0.0
  %v79 = vmax.f32 %v63, 0.0
  %v80 = vmax.f32 %v64, 0.0
  %v81 = vmax.f32 %v65, 0.0
  %v82 = vmax.f32 %v66, 0.0
  %v83 = vmax.f32 %v67, 0.0
  %v84 = vmax.f32 %v68, 0.0
  %v85 = vmax.f32 %v69, 0.0
  %v86 = vmax.f32 %v70, 0.0
  %v87 = vmax.f32 %v71, 0.0
  %v88 = vmax.f32 %v72, 0.0
  %v89 = vmax.f32 %v73, 0.0
  %v90 = vmax.f32 %v74, 0.0
  %v91 = vmax.f32 %v75, 0.0
  %v92 = vpack.c.bf16 %v77, %v76
  %v93 = vpack.c.bf16 %v79, %v78
  %v94 = vpack.c.bf16 %v81, %v80
  %v95 = vpack.c.bf16 %v83, %v82
  %v96 = vpack.c.bf16 %v85, %v84
  %v97 = vpack.c.bf16 %v87, %v86
  %v98 = vpack.c.bf16 %v89, %v88
  %v99 = vpack.c.bf16 %v91, %v90
  %v108 = vunpack.c.l.b16 %v92
  %v109 = vunpack.c.h.b16 %v92
  %v110 = vunpack.c.l.b16 %v93
  %v111 = vunpack.c.h.b16 %v93
  %v112 = vunpack.c.l.b16 %v94
  %v113 = vunpack.c.h.b16 %v94
  %v114 = vunpack.c.l.b16 %v95
  %v115 = vunpack.c.h.b16 %v95
  %v116 = vunpack.c.l.b16 %v96
  %v117 = vunpack.c.h.b16 %v96
  %v118 = vunpack.c.l.b16 %v97
  %v119 = vunpack.c.h.b16 %v97
  %v120 = vunpack.c.l.b16 %v98
  %v121 = vunpack.c.h.b16 %v98
  %v122 = vunpack.c.l.b16 %v99
  %v123 = vunpack.c.h.b16 %v99
  %v124 = vpack.c.b16 %v108, %v108
  %v125 = vpack.c.b16 %v109, %v109
  %v126 = vpack.c.b16 %v110, %v110
  %v127 = vpack.c.b16 %v111, %v111
  %v128 = vpack.c.b16 %v112, %v112
  %v129 = vpack.c.b16 %v113, %v113
  %v130 = vpack.c.b16 %v114, %v114
  %v131 = vpack.c.b16 %v115, %v115
  %v132 = vpack.c.b16 %v116, %v116
  %v133 = vpack.c.b16 %v117, %v117
  %v134 = vpack.c.b16 %v118, %v118
  %v135 = vpack.c.b16 %v119, %v119
  %v136 = vpack.c.b16 %v120, %v120
  %v137 = vpack.c.b16 %v121, %v121
  %v138 = vpack.c.b16 %v122, %v122
  %v139 = vpack.c.b16 %v123, %v123
  %156 = vst [vmem:[%s3] sm:$0xf] %v124
  %157 = vst [vmem:[%s3 + $0x4] sm:$0xf] %v125
  %158 = vst [vmem:[%s3 + $0x8] sm:$0xf] %v126
  %159 = vst [vmem:[%s3 + $0xc] sm:$0xf] %v127
  %160 = vst [vmem:[%s3 + $0x10] sm:$0xf] %v128
  %161 = vst [vmem:[%s3 + $0x14] sm:$0xf] %v129
  %162 = vst [vmem:[%s3 + $0x18] sm:$0xf] %v130
  %163 = vst [vmem:[%s3 + $0x1c] sm:$0xf] %v131
  %164 = vst [vmem:[%s3 + $0x20] sm:$0xf] %v132
  %165 = vst [vmem:[%s3 + $0x24] sm:$0xf] %v133
  %166 = vst [vmem:[%s3 + $0x28] sm:$0xf] %v134
  %167 = vst [vmem:[%s3 + $0x2c] sm:$0xf] %v135
  %168 = vst [vmem:[%s3 + $0x30] sm:$0xf] %v136
  %169 = vst [vmem:[%s3 + $0x34] sm:$0xf] %v137
  %170 = vst [vmem:[%s3 + $0x38] sm:$0xf] %v138
  %171 = vst [vmem:[%s3 + $0x3c] sm:$0xf] %v139
  // Predicated region
  $region14: #{basic_block_forward.6} parent=0 // pred_check
    _
  $region15: #{basic_block_forward.6} parent=0 // pred_check_branch
    %173 = sbr.rel (0) target = $region17
  $region16: #{basic_block_forward.6} parent=0 // pred_region
    _
  $region17: #{basic_block_forward.6} parent=0 // pred_fallthru
    _
  // Predicated region
  $region18: #{basic_block_forward.6} parent=0 // pred_check
    _
  $region19: #{basic_block_forward.6} parent=0 // pred_check_branch
    %175 = sbr.rel (0) target = $region21
  $region20: #{basic_block_forward.6} parent=0 // pred_region
    _
  $region21: #{basic_block_forward.6} parent=0 // pred_fallthru
    _

// kernel: basic_block_forward.8
$region0: #{basic_block_forward.8}
  #allocation0 [shape = 'u32[]', space=smem, size = 0x4, offset = 0x4, fixed_abs, tag = 'smem constant byte address 0x4 - core index']
  #allocation1 [shape = 'u32[144,128]{1,0:T(1,128)}', space=vmem, size = 0x12000, scoped, tag = 'internal scratch']
  %s0 = inlined_call_operand.vmem [shape: bf16[2,8,8,128], index: 0, kind: input, shape index: {}]
  %s1 = inlined_call_operand.vmem [shape: bf16[1,128,128], index: 1, kind: input, shape index: {}]
  %s2 = inlined_call_operand.vmem [shape: f32[128,128], index: 2, kind: output, shape index: {0}]
  %s3 = inlined_call_operand.vmem [shape: f32[2,8,128], index: 3, kind: output, shape index: {1}]
  %s4 = inlined_call_operand.vmem [shape: f32[2,8,128], index: 4, kind: output, shape index: {2}]
  %5 = xla_tuple %s2, %s3, %s4
  %s6 = sld [smem:[#allocation0]]
  $region57: #{basic_block_forward.8} parent=0
    _
  %s8 = ssub.s32 1, %s6
  %s9 = scalar_select 0, %s8, %s6
  loop: start=0, step=1, limit=4
  $region2: #{basic_block_forward.8} parent=0 // loop_pre_header
    _
  $region3: #{basic_block_forward.8} parent=0 // loop_header
    %s11 = sphi 0, %s15
    %p12 = scmp.ge.s32.totalorder %s11, 4
    %s21 = sphi 0, %s23
    %s24 = sphi 0, %s21
    %s25 = sphi 0, %s24
    %s41 = sphi 0, %s25
    %s45 = sphi 0, %s45
    %s47 = sphi 0, %s45
    %s48 = sphi 0, %s47
    %s62 = sphi 0, %s48
    %s68 = sphi 0, %s70
    %s71 = sphi 0, %s68
    %s72 = sphi 0, %s71
    %s88 = sphi 0, %s72
    %s94 = sphi 0, %s96
    %s97 = sphi 0, %s94
    %s98 = sphi 0, %s97
    %s114 = sphi 0, %s98
    %s120 = sphi 0, %s122
    %s123 = sphi 0, %s120
    %s124 = sphi 0, %s123
    %s140 = sphi 0, %s124
  $region4: #{basic_block_forward.8} parent=0 // loop_header_branch
    %14 = sbr.rel (%p12) target = $region8
  $region5: #{basic_block_forward.8} parent=0 // loop_body
    %s16 = ssub.s32 %s11, 1
    %s17 = ssub.s32 %s11, 2
    %s18 = sadd.s32 %s11, 1
    %s19 = ssub.s32 %s11, %s18
    %p20 = scmp.eq.s32.totalorder %s19, 0
    %s22 = sadd.s32 %s21, 1
    %s23 = scalar_select %p20, %s21, %s22
    %p26 = pneg %p20
    %p27 = scmp.eq.s32.totalorder %s11, 1
    %p28 = por %p26, %p27
    %p29 = scmp.ne.s32.totalorder %s21, %s24
    %p30 = scmp.eq.s32.totalorder %s11, 0
    %p31 = por %p29, %p30
    %p32 = scmp.ne.s32.totalorder %s21, %s24
    %p33 = scmp.eq.s32.totalorder %s16, 1
    %p34 = por %p32, %p33
    %p35 = scmp.ne.s32.totalorder %s24, %s25
    %p36 = scmp.eq.s32.totalorder %s16, 0
    %p37 = por %p35, %p36
    %p38 = scmp.ne.s32.totalorder %s24, %s25
    %p39 = scmp.eq.s32.totalorder %s17, 1
    %p40 = por %p38, %p39
    %p42 = scmp.ne.s32.totalorder %s25, %s41
    %p43 = scmp.eq.s32.totalorder %s17, 0
    %p44 = por %p42, %p43
    %s46 = sadd.s32 %s45, 1
    %p49 = scmp.eq.s32.totalorder %s11, 1
    %p50 = scmp.ne.s32.totalorder %s45, %s47
    %p51 = scmp.eq.s32.totalorder %s11, 0
    %p52 = por %p50, %p51
    %p53 = scmp.ne.s32.totalorder %s45, %s47
    %p54 = scmp.eq.s32.totalorder %s16, 1
    %p55 = por %p53, %p54
    %p56 = scmp.ne.s32.totalorder %s47, %s48
    %p57 = scmp.eq.s32.totalorder %s16, 0
    %p58 = por %p56, %p57
    %p59 = scmp.ne.s32.totalorder %s47, %s48
    %p60 = scmp.eq.s32.totalorder %s17, 1
    %p61 = por %p59, %p60
    %p63 = scmp.ne.s32.totalorder %s48, %s62
    %p64 = scmp.eq.s32.totalorder %s17, 0
    %p65 = por %p63, %p64
    %s66 = ssub.s32 %s11, %s18
    %p67 = scmp.eq.s32.totalorder %s66, 0
    %s69 = sadd.s32 %s68, 1
    %s70 = scalar_select %p67, %s68, %s69
    %p73 = pneg %p67
    %p74 = scmp.eq.s32.totalorder %s11, 1
    %p75 = por %p73, %p74
    %p76 = scmp.ne.s32.totalorder %s68, %s71
    %p77 = scmp.eq.s32.totalorder %s11, 0
    %p78 = por %p76, %p77
    %p79 = scmp.ne.s32.totalorder %s68, %s71
    %p80 = scmp.eq.s32.totalorder %s16, 1
    %p81 = por %p79, %p80
    %p82 = scmp.ne.s32.totalorder %s71, %s72
    %p83 = scmp.eq.s32.totalorder %s16, 0
    %p84 = por %p82, %p83
    %p85 = scmp.ne.s32.totalorder %s71, %s72
    %p86 = scmp.eq.s32.totalorder %s17, 1
    %p87 = por %p85, %p86
    %p89 = scmp.ne.s32.totalorder %s72, %s88
    %p90 = scmp.eq.s32.totalorder %s17, 0
    %p91 = por %p89, %p90
    %s92 = ssub.s32 %s11, %s18
    %p93 = scmp.eq.s32.totalorder %s92, 0
    %s95 = sadd.s32 %s94, 1
    %s96 = scalar_select %p93, %s94, %s95
    %p99 = pneg %p93
    %p100 = scmp.eq.s32.totalorder %s11, 1
    %p101 = por %p99, %p100
    %p102 = scmp.ne.s32.totalorder %s94, %s97
    %p103 = scmp.eq.s32.totalorder %s11, 0
    %p104 = por %p102, %p103
    %p105 = scmp.ne.s32.totalorder %s94, %s97
    %p106 = scmp.eq.s32.totalorder %s16, 1
    %p107 = por %p105, %p106
    %p108 = scmp.ne.s32.totalorder %s97, %s98
    %p109 = scmp.eq.s32.totalorder %s16, 0
    %p110 = por %p108, %p109
    %p111 = scmp.ne.s32.totalorder %s97, %s98
    %p112 = scmp.eq.s32.totalorder %s17, 1
    %p113 = por %p111, %p112
    %p115 = scmp.ne.s32.totalorder %s98, %s114
    %p116 = scmp.eq.s32.totalorder %s17, 0
    %p117 = por %p115, %p116
    %s118 = ssub.s32 %s11, %s18
    %p119 = scmp.eq.s32.totalorder %s118, 0
    %s121 = sadd.s32 %s120, 1
    %s122 = scalar_select %p119, %s120, %s121
    %p125 = pneg %p119
    %p126 = scmp.eq.s32.totalorder %s11, 1
    %p127 = por %p125, %p126
    %p128 = scmp.ne.s32.totalorder %s120, %s123
    %p129 = scmp.eq.s32.totalorder %s11, 0
    %p130 = por %p128, %p129
    %p131 = scmp.ne.s32.totalorder %s120, %s123
    %p132 = scmp.eq.s32.totalorder %s16, 1
    %p133 = por %p131, %p132
    %p134 = scmp.ne.s32.totalorder %s123, %s124
    %p135 = scmp.eq.s32.totalorder %s16, 0
    %p136 = por %p134, %p135
    %p137 = scmp.ne.s32.totalorder %s123, %s124
    %p138 = scmp.eq.s32.totalorder %s17, 1
    %p139 = por %p137, %p138
    %p141 = scmp.ne.s32.totalorder %s124, %s140
    %p142 = scmp.eq.s32.totalorder %s17, 0
    %p143 = por %p141, %p142
    %p144 = scmp.le.s32.totalorder 1, %s11
    %p145 = scmp.lt.s32.totalorder %s11, 3
    %p146 = pnand %p144, %p145
    %p147 = pneg %p146
    // Predicated region
    $region9: #{basic_block_forward.8} parent=5 // pred_check
      _
    $region10: #{basic_block_forward.8} parent=5 // pred_check_branch
      %149 = sbr.rel (%p146) target = $region12
    $region11: #{basic_block_forward.8} parent=5 // pred_region
      %s150 = ssub.s32 %s11, 1
      // Predicated region
      $region13: #{basic_block_forward.8} parent=11 // pred_check
        %p151 = pneg %p58
      $region14: #{basic_block_forward.8} parent=11 // pred_check_branch
        %153 = sbr.rel (%p151) target = $region16
      $region15: #{basic_block_forward.8} parent=11 // pred_region
        _
      $region16: #{basic_block_forward.8} parent=11 // pred_fallthru
        _
    $region12: #{basic_block_forward.8} parent=5 // pred_fallthru
      _
    %p154 = scmp.lt.s32.totalorder %s11, 2
    // Predicated region
    $region17: #{basic_block_forward.8} parent=5 // pred_check
      %p155 = pneg %p154
    $region18: #{basic_block_forward.8} parent=5 // pred_check_branch
      %157 = sbr.rel (%p155) target = $region20
    $region19: #{basic_block_forward.8} parent=5 // pred_region
      // Predicated region
      $region21: #{basic_block_forward.8} parent=19 // pred_check
        %p158 = pneg %p31
      $region22: #{basic_block_forward.8} parent=19 // pred_check_branch
        %160 = sbr.rel (%p158) target = $region24
      $region23: #{basic_block_forward.8} parent=19 // pred_region
        %p161 = scmp.lt.s32.totalorder %s11, 1
        %s162 = scalar_select %p161, %s11, 1
        %s163 = smul.addr %s162, 8
        %s164 = smul.addr %s163, 4
        %s165 = scalar_lea.vmem %s0, %s164
      $region24: #{basic_block_forward.8} parent=19 // pred_fallthru
        _
    $region20: #{basic_block_forward.8} parent=5 // pred_fallthru
      _
    %p166 = scmp.le.s32.totalorder 1, %s11
    %p167 = scmp.lt.s32.totalorder %s11, 3
    %p168 = pnand %p166, %p167
    %p169 = pneg %p168
    // Predicated region
    $region25: #{basic_block_forward.8} parent=5 // pred_check
      _
    $region26: #{basic_block_forward.8} parent=5 // pred_check_branch
      %171 = sbr.rel (%p168) target = $region28
    $region27: #{basic_block_forward.8} parent=5 // pred_region
      %s172 = ssub.s32 %s11, 1
      %p173 = scmp.lt.s32.totalorder %s16, 1
      %s174 = scalar_select %p173, %s16, 1
      %s175 = smul.addr %s174, 8
      %s176 = smul.addr %s175, 4
      %s177 = scalar_lea.vmem %s0, %s176
      %p178 = pneg %p37
      %p179 = pneg %p34
      %p180 = pneg %p58
      %p181 = pneg %p55
      %p182 = pneg %p84
      %p183 = pneg %p81
      %s184 = smul.u32 8, %s16
      %p185 = scmp.lt.s32.totalorder %s184, 15
      %s186 = scalar_select %p185, %s184, 15
      %s187 = smul.addr %s186, 8
      %s188 = scalar_lea.vmem %s2, %s187
      %p189 = pneg %p110
      %p190 = pneg %p107
      %p191 = scmp.lt.s32.totalorder %s16, 1
      %s192 = scalar_select %p191, %s16, 1
      %s193 = smul.addr %s192, 8
      %s194 = scalar_lea.vmem %s3, %s193
      %p195 = pneg %p136
      %p196 = pneg %p133
      %p197 = scmp.lt.s32.totalorder %s16, 1
      %s198 = scalar_select %p197, %s16, 1
      %s199 = smul.addr %s198, 8
      %s200 = scalar_lea.vmem %s4, %s199
      %p201 = scmp.lt.s32.totalorder %s16, 1
      %s202 = scalar_select %p201, %s16, 1
      %s203 = smul.addr %s202, 8
      %s204 = smul.addr %s203, 4
      %s205 = scalar_lea.vmem %s0, %s204
      %s206 = smul.u32 8, %s16
      %p207 = scmp.lt.s32.totalorder %s206, 15
      %s208 = scalar_select %p207, %s206, 15
      %s209 = smul.addr %s208, 8
      %s210 = scalar_lea.vmem %s2, %s209
      %s211 = smul.u32 8, %s16
      %p212 = scmp.lt.s32.totalorder %s16, 1
      %s213 = scalar_select %p212, %s16, 1
      %s214 = smul.addr %s213, 8
      %s215 = scalar_lea.vmem %s3, %s214
      %p216 = scmp.lt.s32.totalorder %s16, 1
      %s217 = scalar_select %p216, %s16, 1
      %s218 = smul.addr %s217, 8
      %s219 = scalar_lea.vmem %s4, %s218
      %v221 = vld [vmem:[%s205] sm:$0xf]
      %v222 = vld [vmem:[%s205 + $0x4] sm:$0xf]
      %v223 = vld [vmem:[%s205 + $0x8] sm:$0xf]
      %v224 = vld [vmem:[%s205 + $0xc] sm:$0xf]
      %v225 = vld [vmem:[%s205 + $0x10] sm:$0xf]
      %v226 = vld [vmem:[%s205 + $0x14] sm:$0xf]
      %v227 = vld [vmem:[%s205 + $0x18] sm:$0xf]
      %v228 = vld [vmem:[%s205 + $0x1c] sm:$0xf]
      %v229 = vld [vmem:[%s1] sm:$0xf]
      %v230 = vld [vmem:[%s1 + $0x4] sm:$0xf]
      %v231 = vld [vmem:[%s1 + $0x8] sm:$0xf]
      %v232 = vld [vmem:[%s1 + $0xc] sm:$0xf]
      %v233 = vld [vmem:[%s1 + $0x10] sm:$0xf]
      %v234 = vld [vmem:[%s1 + $0x14] sm:$0xf]
      %v235 = vld [vmem:[%s1 + $0x18] sm:$0xf]
      %v236 = vld [vmem:[%s1 + $0x1c] sm:$0xf]
      %v237 = vld [vmem:[%s1 + $0x20] sm:$0xf]
      %v238 = vld [vmem:[%s1 + $0x24] sm:$0xf]
      %v239 = vld [vmem:[%s1 + $0x28] sm:$0xf]
      %v240 = vld [vmem:[%s1 + $0x2c] sm:$0xf]
      %v241 = vld [vmem:[%s1 + $0x30] sm:$0xf]
      %v242 = vld [vmem:[%s1 + $0x34] sm:$0xf]
      %v243 = vld [vmem:[%s1 + $0x38] sm:$0xf]
      %v244 = vld [vmem:[%s1 + $0x3c] sm:$0xf]
      %v253 = vunpack.c.l.b16 %v221
      %v254 = vunpack.c.l.b16 %v222
      %v255 = vunpack.c.l.b16 %v223
      %v256 = vunpack.c.l.b16 %v224
      %v257 = vunpack.c.l.b16 %v225
      %v258 = vunpack.c.l.b16 %v226
      %v259 = vunpack.c.l.b16 %v227
      %v260 = vunpack.c.l.b16 %v228
      %v261 = vpack.c.b16 %v254, %v253
      %v262 = vpack.c.b16 %v256, %v255
      %v263 = vpack.c.b16 %v258, %v257
      %v264 = vpack.c.b16 %v260, %v259
      %v285 = vunpack.c.l.b16 %v229
      %v286 = vunpack.c.l.b16 %v230
      %v287 = vunpack.c.l.b16 %v231
      %v288 = vunpack.c.l.b16 %v232
      %v289 = vunpack.c.l.b16 %v233
      %v290 = vunpack.c.l.b16 %v234
      %v291 = vunpack.c.l.b16 %v235
      %v292 = vunpack.c.l.b16 %v236
      %v293 = vunpack.c.l.b16 %v237
      %v294 = vunpack.c.l.b16 %v238
      %v295 = vunpack.c.l.b16 %v239
      %v296 = vunpack.c.l.b16 %v240
      %v297 = vunpack.c.l.b16 %v241
      %v298 = vunpack.c.l.b16 %v242
      %v299 = vunpack.c.l.b16 %v243
      %v300 = vunpack.c.l.b16 %v244
      %v301 = vpack.c.b16 %v286, %v285
      %v302 = vpack.c.b16 %v288, %v287
      %v303 = vpack.c.b16 %v290, %v289
      %v304 = vpack.c.b16 %v292, %v291
      %v305 = vpack.c.b16 %v294, %v293
      %v306 = vpack.c.b16 %v296, %v295
      %v307 = vpack.c.b16 %v298, %v297
      %v308 = vpack.c.b16 %v300, %v299
      %317 = vmatprep.subr.bf16.mxu0 0
      %318 = vmatpush1.bf16.msra.mxu0 %v308
      %319 = vmatprep.subr.bf16.mxu0 0
      %320 = vmatpush1.bf16.msra.mxu0 %v307
      %321 = vmatprep.subr.bf16.mxu0 0
      %322 = vmatpush1.bf16.msra.mxu0 %v306
      %323 = vmatprep.subr.bf16.mxu0 0
      %324 = vmatpush1.bf16.msra.mxu0 %v305
      %325 = vmatprep.subr.bf16.mxu0 0
      %326 = vmatpush1.bf16.msra.mxu0 %v304
      %327 = vmatprep.subr.bf16.mxu0 0
      %328 = vmatpush1.bf16.msra.mxu0 %v303
      %329 = vmatprep.subr.bf16.mxu0 0
      %330 = vmatpush1.bf16.msra.mxu0 %v302
      %331 = vmatprep.subr.bf16.mxu0 0
      %332 = vmatpush1.bf16.msra.mxu0 %v301
      %333 = vmatprep.subr.bf16.mxu0 0
      %334 = vmatpush2.bf16.msra.mxu0 0
      %335 = vmatprep.subr.bf16.mxu0 0
      %336 = vmatpush2.bf16.msra.mxu0 0
      %337 = vmatprep.subr.bf16.mxu0 0
      %338 = vmatpush2.bf16.msra.mxu0 0
      %339 = vmatprep.subr.bf16.mxu0 0
      %340 = vmatpush2.bf16.msra.mxu0 0
      %341 = vmatprep.subr.bf16.mxu0 0
      %342 = vmatpush2.bf16.msra.mxu0 0
      %343 = vmatprep.subr.bf16.mxu0 0
      %344 = vmatpush2.bf16.msra.mxu0 0
      %345 = vmatprep.subr.bf16.mxu0 0
      %346 = vmatpush2.bf16.msra.mxu0 0
      %347 = vmatprep.subr.bf16.mxu0 0
      %348 = vmatpush2.bf16.msra.mxu0 0
      %349 = vmatprep.mubr.bf16.mxu0 0
      %350 = vmatmul.mubr.bf16.gmra.mxu0 %v261
      %v351 = vpop.f32.mrf.mxu0
      %v352 = vadd.f32 0.0, %v351
      %v353 = vpop.f32.mrf.mxu0
      %v354 = vpop.f32.mrf.mxu0
      %v355 = vadd.f32 0.0, %v354
      %v356 = vpop.f32.mrf.mxu0
      %357 = vmatprep.mubr.bf16.mxu0 0
      %358 = vmatmul.mubr.bf16.gmra.mxu0 %v262
      %v359 = vpop.f32.mrf.mxu0
      %v360 = vadd.f32 0.0, %v359
      %v361 = vpop.f32.mrf.mxu0
      %v362 = vpop.f32.mrf.mxu0
      %v363 = vadd.f32 0.0, %v362
      %v364 = vpop.f32.mrf.mxu0
      %365 = vmatprep.mubr.bf16.mxu0 0
      %366 = vmatmul.mubr.bf16.gmra.mxu0 %v263
      %v367 = vpop.f32.mrf.mxu0
      %v368 = vadd.f32 0.0, %v367
      %v369 = vpop.f32.mrf.mxu0
      %v370 = vpop.f32.mrf.mxu0
      %v371 = vadd.f32 0.0, %v370
      %v372 = vpop.f32.mrf.mxu0
      %373 = vmatprep.mubr.bf16.mxu0 0
      %374 = vmatmul.mubr.bf16.gmra.mxu0 %v264
      %v375 = vpop.f32.mrf.mxu0
      %v376 = vadd.f32 0.0, %v375
      %v377 = vpop.f32.mrf.mxu0
      %v378 = vpop.f32.mrf.mxu0
      %v379 = vadd.f32 0.0, %v378
      %v380 = vpop.f32.mrf.mxu0
      %381 = vdwg.mxu0
      %382 = vst [vmem:[%s210] sm:$0xff] %v352
      %383 = vst [vmem:[%s210 + $0x8] sm:$0xff] %v355
      %384 = vst [vmem:[%s210 + $0x10] sm:$0xff] %v360
      %385 = vst [vmem:[%s210 + $0x18] sm:$0xff] %v363
      %386 = vst [vmem:[%s210 + $0x20] sm:$0xff] %v368
      %387 = vst [vmem:[%s210 + $0x28] sm:$0xff] %v371
      %388 = vst [vmem:[%s210 + $0x30] sm:$0xff] %v376
      %389 = vst [vmem:[%s210 + $0x38] sm:$0xff] %v379
      %v390 = vadd.f32 %v352, %v355
      %v391 = vadd.f32 %v390, %v360
      %v392 = vadd.f32 %v391, %v363
      %v393 = vadd.f32 %v392, %v368
      %v394 = vadd.f32 %v393, %v371
      %v395 = vadd.f32 %v394, %v376
      %v396 = vadd.f32 %v395, %v379
      %v397 = vrot.slane %v396, 4
      %v398 = vadd.f32 %v396, %v397
      %v399 = vrot.slane %v398, 2
      %v400 = vadd.f32 %v398, %v399
      %v401 = vrot.slane %v400, 1
      %v402 = vadd.f32 %v400, %v401
      %v403 = vmul.f32 %v352, %v352
      %v404 = vmul.f32 %v355, %v355
      %v405 = vmul.f32 %v360, %v360
      %v406 = vmul.f32 %v363, %v363
      %v407 = vmul.f32 %v368, %v368
      %v408 = vmul.f32 %v371, %v371
      %v409 = vmul.f32 %v376, %v376
      %v410 = vmul.f32 %v379, %v379
      %v411 = vadd.f32 %v403, %v404
      %v412 = vadd.f32 %v411, %v405
      %v413 = vadd.f32 %v412, %v406
      %v414 = vadd.f32 %v413, %v407
      %v415 = vadd.f32 %v414, %v408
      %v416 = vadd.f32 %v415, %v409
      %v417 = vadd.f32 %v416, %v410
      %v418 = vrot.slane %v417, 4
      %v419 = vadd.f32 %v417, %v418
      %v420 = vrot.slane %v419, 2
      %v421 = vadd.f32 %v419, %v420
      %v422 = vrot.slane %v421, 1
      %v423 = vadd.f32 %v421, %v422
      %424 = vst [vmem:[%s215] sm:$0xff] %v402
      %425 = vst [vmem:[%s219] sm:$0xff] %v423
      %s426 = smul.u32 8, %s16
      %p427 = scmp.lt.s32.totalorder %s426, 15
      %s428 = scalar_select %p427, %s426, 15
      %s429 = smul.addr %s428, 8
      %s430 = scalar_lea.vmem %s2, %s429
      %p431 = scmp.lt.s32.totalorder %s16, 1
      %s432 = scalar_select %p431, %s16, 1
      %s433 = smul.addr %s432, 8
      %s434 = scalar_lea.vmem %s3, %s433
      %p435 = scmp.lt.s32.totalorder %s16, 1
      %s436 = scalar_select %p435, %s16, 1
      %s437 = smul.addr %s436, 8
      %s438 = scalar_lea.vmem %s4, %s437
      // Predicated region
      $region29: #{basic_block_forward.8} parent=27 // pred_check
        %p439 = pneg %p81
      $region30: #{basic_block_forward.8} parent=27 // pred_check_branch
        %441 = sbr.rel (%p439) target = $region32
      $region31: #{basic_block_forward.8} parent=27 // pred_region
        %s442 = smul.u32 8, %s16
      $region32: #{basic_block_forward.8} parent=27 // pred_fallthru
        _
      // Predicated region
      $region33: #{basic_block_forward.8} parent=27 // pred_check
        %p443 = pneg %p107
      $region34: #{basic_block_forward.8} parent=27 // pred_check_branch
        %445 = sbr.rel (%p443) target = $region36
      $region35: #{basic_block_forward.8} parent=27 // pred_region
        _
      $region36: #{basic_block_forward.8} parent=27 // pred_fallthru
        _
      // Predicated region
      $region37: #{basic_block_forward.8} parent=27 // pred_check
        %p446 = pneg %p133
      $region38: #{basic_block_forward.8} parent=27 // pred_check_branch
        %448 = sbr.rel (%p446) target = $region40
      $region39: #{basic_block_forward.8} parent=27 // pred_region
        _
      $region40: #{basic_block_forward.8} parent=27 // pred_fallthru
        _
    $region28: #{basic_block_forward.8} parent=5 // pred_fallthru
      _
    %p449 = scmp.le.s32.totalorder 2, %s11
    // Predicated region
    $region41: #{basic_block_forward.8} parent=5 // pred_check
      %p450 = pneg %p449
    $region42: #{basic_block_forward.8} parent=5 // pred_check_branch
      %452 = sbr.rel (%p450) target = $region44
    $region43: #{basic_block_forward.8} parent=5 // pred_region
      %s453 = ssub.s32 %s11, 2
      // Predicated region
      $region45: #{basic_block_forward.8} parent=43 // pred_check
        %p454 = pneg %p87
      $region46: #{basic_block_forward.8} parent=43 // pred_check_branch
        %456 = sbr.rel (%p454) target = $region48
      $region47: #{basic_block_forward.8} parent=43 // pred_region
        %s457 = smul.u32 8, %s17
        %p458 = scmp.lt.s32.totalorder %s457, 15
        %s459 = scalar_select %p458, %s457, 15
        %s460 = smul.addr %s459, 8
        %s461 = scalar_lea.vmem %s2, %s460
      $region48: #{basic_block_forward.8} parent=43 // pred_fallthru
        _
      // Predicated region
      $region49: #{basic_block_forward.8} parent=43 // pred_check
        %p462 = pneg %p113
      $region50: #{basic_block_forward.8} parent=43 // pred_check_branch
        %464 = sbr.rel (%p462) target = $region52
      $region51: #{basic_block_forward.8} parent=43 // pred_region
        %p465 = scmp.lt.s32.totalorder %s17, 1
        %s466 = scalar_select %p465, %s17, 1
        %s467 = smul.addr %s466, 8
        %s468 = scalar_lea.vmem %s3, %s467
      $region52: #{basic_block_forward.8} parent=43 // pred_fallthru
        _
      // Predicated region
      $region53: #{basic_block_forward.8} parent=43 // pred_check
        %p469 = pneg %p139
      $region54: #{basic_block_forward.8} parent=43 // pred_check_branch
        %471 = sbr.rel (%p469) target = $region56
      $region55: #{basic_block_forward.8} parent=43 // pred_region
        %p472 = scmp.lt.s32.totalorder %s17, 1
        %s473 = scalar_select %p472, %s17, 1
        %s474 = smul.addr %s473, 8
        %s475 = scalar_lea.vmem %s4, %s474
      $region56: #{basic_block_forward.8} parent=43 // pred_fallthru
        _
    $region44: #{basic_block_forward.8} parent=5 // pred_fallthru
      _
  $region6: #{basic_block_forward.8} parent=0 // loop_footer
    %s15 = sadd.s32 1, %s11
  $region7: #{basic_block_forward.8} parent=0 // loop_footer_branch
    %10 = sbr.rel target = $region3
  $region8: #{basic_block_forward.8} parent=0 // loop_exit
    _

// kernel: basic_block_forward.9
$region0: #{basic_block_forward.9}
  #allocation0 [shape = 'u32[]', space=smem, size = 0x4, offset = 0x4, fixed_abs, tag = 'smem constant byte address 0x4 - core index']
  #allocation1 [shape = 'u32[144,128]{1,0:T(1,128)}', space=vmem, size = 0x12000, scoped, tag = 'internal scratch']
  %s0 = inlined_call_operand.vmem [shape: f32[128,128], index: 0, kind: input, shape index: {}]
  %s1 = inlined_call_operand.vmem [shape: f32[1,128], index: 1, kind: input, shape index: {}]
  %s2 = inlined_call_operand.vmem [shape: f32[1,128], index: 2, kind: input, shape index: {}]
  %s3 = inlined_call_operand.vmem [shape: f32[128,128], index: 3, kind: input, shape index: {}]
  %s4 = inlined_call_operand.vmem [shape: f32[1,128], index: 4, kind: input, shape index: {}]
  %s5 = inlined_call_operand.vmem [shape: f32[1,128], index: 5, kind: input, shape index: {}]
  %s6 = inlined_call_operand.vmem [shape: f32[128,128], index: 6, kind: output, shape index: {}]
  %s7 = sld [smem:[#allocation0]]
  $region34: #{basic_block_forward.9} parent=0
    _
  %s9 = ssub.s32 1, %s7
  %s10 = scalar_select 0, %s9, %s7
  // Predicated region
  $region2: #{basic_block_forward.9} parent=0 // pred_check
    _
  $region3: #{basic_block_forward.9} parent=0 // pred_check_branch
    %12 = sbr.rel (0) target = $region5
  $region4: #{basic_block_forward.9} parent=0 // pred_region
    _
  $region5: #{basic_block_forward.9} parent=0 // pred_fallthru
    _
  // Predicated region
  $region6: #{basic_block_forward.9} parent=0 // pred_check
    _
  $region7: #{basic_block_forward.9} parent=0 // pred_check_branch
    %14 = sbr.rel (0) target = $region9
  $region8: #{basic_block_forward.9} parent=0 // pred_region
    _
  $region9: #{basic_block_forward.9} parent=0 // pred_fallthru
    _
  // Predicated region
  $region10: #{basic_block_forward.9} parent=0 // pred_check
    _
  $region11: #{basic_block_forward.9} parent=0 // pred_check_branch
    %16 = sbr.rel (0) target = $region13
  $region12: #{basic_block_forward.9} parent=0 // pred_region
    _
  $region13: #{basic_block_forward.9} parent=0 // pred_fallthru
    _
  // Predicated region
  $region14: #{basic_block_forward.9} parent=0 // pred_check
    _
  $region15: #{basic_block_forward.9} parent=0 // pred_check_branch
    %18 = sbr.rel (0) target = $region17
  $region16: #{basic_block_forward.9} parent=0 // pred_region
    _
  $region17: #{basic_block_forward.9} parent=0 // pred_fallthru
    _
  // Predicated region
  $region18: #{basic_block_forward.9} parent=0 // pred_check
    _
  $region19: #{basic_block_forward.9} parent=0 // pred_check_branch
    %20 = sbr.rel (0) target = $region21
  $region20: #{basic_block_forward.9} parent=0 // pred_region
    _
  $region21: #{basic_block_forward.9} parent=0 // pred_fallthru
    _
  // Predicated region
  $region22: #{basic_block_forward.9} parent=0 // pred_check
    _
  $region23: #{basic_block_forward.9} parent=0 // pred_check_branch
    %22 = sbr.rel (0) target = $region25
  $region24: #{basic_block_forward.9} parent=0 // pred_region
    _
  $region25: #{basic_block_forward.9} parent=0 // pred_fallthru
    _
  %v23 = vld [vmem:[%s0] sm:$0xff]
  %v24 = vld [vmem:[%s0 + $0x8] sm:$0xff]
  %v25 = vld [vmem:[%s0 + $0x10] sm:$0xff]
  %v26 = vld [vmem:[%s0 + $0x18] sm:$0xff]
  %v27 = vld [vmem:[%s0 + $0x20] sm:$0xff]
  %v28 = vld [vmem:[%s0 + $0x28] sm:$0xff]
  %v29 = vld [vmem:[%s0 + $0x30] sm:$0xff]
  %v30 = vld [vmem:[%s0 + $0x38] sm:$0xff]
  %v31 = vld [vmem:[%s0 + $0x40] sm:$0xff]
  %v32 = vld [vmem:[%s0 + $0x48] sm:$0xff]
  %v33 = vld [vmem:[%s0 + $0x50] sm:$0xff]
  %v34 = vld [vmem:[%s0 + $0x58] sm:$0xff]
  %v35 = vld [vmem:[%s0 + $0x60] sm:$0xff]
  %v36 = vld [vmem:[%s0 + $0x68] sm:$0xff]
  %v37 = vld [vmem:[%s0 + $0x70] sm:$0xff]
  %v38 = vld [vmem:[%s0 + $0x78] sm:$0xff]
  %v39 = vld [vmem:[%s1] sm:$0x1]
  %v40 = vld [vmem:[%s2] sm:$0x1]
  %v42 = vlaneseq
  %v43 = vshrl.u32 %v42, 7
  %v44 = vsub.s32 0, %v43
  %v45 = vrot.slane %v39, %v44
  %v47 = vmul.f32 %v23, %v45
  %v48 = vmul.f32 %v24, %v45
  %v49 = vmul.f32 %v25, %v45
  %v50 = vmul.f32 %v26, %v45
  %v51 = vmul.f32 %v27, %v45
  %v52 = vmul.f32 %v28, %v45
  %v53 = vmul.f32 %v29, %v45
  %v54 = vmul.f32 %v30, %v45
  %v55 = vmul.f32 %v31, %v45
  %v56 = vmul.f32 %v32, %v45
  %v57 = vmul.f32 %v33, %v45
  %v58 = vmul.f32 %v34, %v45
  %v59 = vmul.f32 %v35, %v45
  %v60 = vmul.f32 %v36, %v45
  %v61 = vmul.f32 %v37, %v45
  %v62 = vmul.f32 %v38, %v45
  %v64 = vlaneseq
  %v65 = vshrl.u32 %v64, 7
  %v66 = vsub.s32 0, %v65
  %v67 = vrot.slane %v40, %v66
  %v69 = vadd.f32 %v47, %v67
  %v70 = vadd.f32 %v48, %v67
  %v71 = vadd.f32 %v49, %v67
  %v72 = vadd.f32 %v50, %v67
  %v73 = vadd.f32 %v51, %v67
  %v74 = vadd.f32 %v52, %v67
  %v75 = vadd.f32 %v53, %v67
  %v76 = vadd.f32 %v54, %v67
  %v77 = vadd.f32 %v55, %v67
  %v78 = vadd.f32 %v56, %v67
  %v79 = vadd.f32 %v57, %v67
  %v80 = vadd.f32 %v58, %v67
  %v81 = vadd.f32 %v59, %v67
  %v82 = vadd.f32 %v60, %v67
  %v83 = vadd.f32 %v61, %v67
  %v84 = vadd.f32 %v62, %v67
  %v85 = vld [vmem:[%s3] sm:$0xff]
  %v86 = vld [vmem:[%s3 + $0x8] sm:$0xff]
  %v87 = vld [vmem:[%s3 + $0x10] sm:$0xff]
  %v88 = vld [vmem:[%s3 + $0x18] sm:$0xff]
  %v89 = vld [vmem:[%s3 + $0x20] sm:$0xff]
  %v90 = vld [vmem:[%s3 + $0x28] sm:$0xff]
  %v91 = vld [vmem:[%s3 + $0x30] sm:$0xff]
  %v92 = vld [vmem:[%s3 + $0x38] sm:$0xff]
  %v93 = vld [vmem:[%s3 + $0x40] sm:$0xff]
  %v94 = vld [vmem:[%s3 + $0x48] sm:$0xff]
  %v95 = vld [vmem:[%s3 + $0x50] sm:$0xff]
  %v96 = vld [vmem:[%s3 + $0x58] sm:$0xff]
  %v97 = vld [vmem:[%s3 + $0x60] sm:$0xff]
  %v98 = vld [vmem:[%s3 + $0x68] sm:$0xff]
  %v99 = vld [vmem:[%s3 + $0x70] sm:$0xff]
  %v100 = vld [vmem:[%s3 + $0x78] sm:$0xff]
  %v101 = vld [vmem:[%s4] sm:$0x1]
  %v102 = vld [vmem:[%s5] sm:$0x1]
  %v104 = vlaneseq
  %v105 = vshrl.u32 %v104, 7
  %v106 = vsub.s32 0, %v105
  %v107 = vrot.slane %v101, %v106
  %v109 = vmul.f32 %v85, %v107
  %v110 = vmul.f32 %v86, %v107
  %v111 = vmul.f32 %v87, %v107
  %v112 = vmul.f32 %v88, %v107
  %v113 = vmul.f32 %v89, %v107
  %v114 = vmul.f32 %v90, %v107
  %v115 = vmul.f32 %v91, %v107
  %v116 = vmul.f32 %v92, %v107
  %v117 = vmul.f32 %v93, %v107
  %v118 = vmul.f32 %v94, %v107
  %v119 = vmul.f32 %v95, %v107
  %v120 = vmul.f32 %v96, %v107
  %v121 = vmul.f32 %v97, %v107
  %v122 = vmul.f32 %v98, %v107
  %v123 = vmul.f32 %v99, %v107
  %v124 = vmul.f32 %v100, %v107
  %v126 = vlaneseq
  %v127 = vshrl.u32 %v126, 7
  %v128 = vsub.s32 0, %v127
  %v129 = vrot.slane %v102, %v128
  %v131 = vadd.f32 %v109, %v129
  %v132 = vadd.f32 %v110, %v129
  %v133 = vadd.f32 %v111, %v129
  %v134 = vadd.f32 %v112, %v129
  %v135 = vadd.f32 %v113, %v129
  %v136 = vadd.f32 %v114, %v129
  %v137 = vadd.f32 %v115, %v129
  %v138 = vadd.f32 %v116, %v129
  %v139 = vadd.f32 %v117, %v129
  %v140 = vadd.f32 %v118, %v129
  %v141 = vadd.f32 %v119, %v129
  %v142 = vadd.f32 %v120, %v129
  %v143 = vadd.f32 %v121, %v129
  %v144 = vadd.f32 %v122, %v129
  %v145 = vadd.f32 %v123, %v129
  %v146 = vadd.f32 %v124, %v129
  %v147 = vadd.f32 %v69, %v131
  %v148 = vadd.f32 %v70, %v132
  %v149 = vadd.f32 %v71, %v133
  %v150 = vadd.f32 %v72, %v134
  %v151 = vadd.f32 %v73, %v135
  %v152 = vadd.f32 %v74, %v136
  %v153 = vadd.f32 %v75, %v137
  %v154 = vadd.f32 %v76, %v138
  %v155 = vadd.f32 %v77, %v139
  %v156 = vadd.f32 %v78, %v140
  %v157 = vadd.f32 %v79, %v141
  %v158 = vadd.f32 %v80, %v142
  %v159 = vadd.f32 %v81, %v143
  %v160 = vadd.f32 %v82, %v144
  %v161 = vadd.f32 %v83, %v145
  %v162 = vadd.f32 %v84, %v146
  %v163 = vmax.f32 %v147, 0.0
  %v164 = vmax.f32 %v148, 0.0
  %v165 = vmax.f32 %v149, 0.0
  %v166 = vmax.f32 %v150, 0.0
  %v167 = vmax.f32 %v151, 0.0
  %v168 = vmax.f32 %v152, 0.0
  %v169 = vmax.f32 %v153, 0.0
  %v170 = vmax.f32 %v154, 0.0
  %v171 = vmax.f32 %v155, 0.0
  %v172 = vmax.f32 %v156, 0.0
  %v173 = vmax.f32 %v157, 0.0
  %v174 = vmax.f32 %v158, 0.0
  %v175 = vmax.f32 %v159, 0.0
  %v176 = vmax.f32 %v160, 0.0
  %v177 = vmax.f32 %v161, 0.0
  %v178 = vmax.f32 %v162, 0.0
  %179 = vst [vmem:[%s6] sm:$0xff] %v163
  %180 = vst [vmem:[%s6 + $0x8] sm:$0xff] %v164
  %181 = vst [vmem:[%s6 + $0x10] sm:$0xff] %v165
  %182 = vst [vmem:[%s6 + $0x18] sm:$0xff] %v166
  %183 = vst [vmem:[%s6 + $0x20] sm:$0xff] %v167
  %184 = vst [vmem:[%s6 + $0x28] sm:$0xff] %v168
  %185 = vst [vmem:[%s6 + $0x30] sm:$0xff] %v169
  %186 = vst [vmem:[%s6 + $0x38] sm:$0xff] %v170
  %187 = vst [vmem:[%s6 + $0x40] sm:$0xff] %v171
  %188 = vst [vmem:[%s6 + $0x48] sm:$0xff] %v172
  %189 = vst [vmem:[%s6 + $0x50] sm:$0xff] %v173
  %190 = vst [vmem:[%s6 + $0x58] sm:$0xff] %v174
  %191 = vst [vmem:[%s6 + $0x60] sm:$0xff] %v175
  %192 = vst [vmem:[%s6 + $0x68] sm:$0xff] %v176
  %193 = vst [vmem:[%s6 + $0x70] sm:$0xff] %v177
  %194 = vst [vmem:[%s6 + $0x78] sm:$0xff] %v178
  // Predicated region
  $region26: #{basic_block_forward.9} parent=0 // pred_check
    _
  $region27: #{basic_block_forward.9} parent=0 // pred_check_branch
    %196 = sbr.rel (0) target = $region29
  $region28: #{basic_block_forward.9} parent=0 // pred_region
    _
  $region29: #{basic_block_forward.9} parent=0 // pred_fallthru
    _
  // Predicated region
  $region30: #{basic_block_forward.9} parent=0 // pred_check
    _
  $region31: #{basic_block_forward.9} parent=0 // pred_check_branch
    %198 = sbr.rel (0) target = $region33
  $region32: #{basic_block_forward.9} parent=0 // pred_region
    _
  $region33: #{basic_block_forward.9} parent=0 // pred_fallthru
    _

// kernel: basic_block_forward.5
$region0: #{basic_block_forward.5}
  #allocation0 [shape = 'u32[]', space=smem, size = 0x4, offset = 0x4, fixed_abs, tag = 'smem constant byte address 0x4 - core index']
  #allocation1 [shape = 'u32[144,128]{1,0:T(1,128)}', space=vmem, size = 0x12000, scoped, tag = 'internal scratch']
  %s0 = inlined_call_operand.vmem [shape: bf16[2,9,9,128], index: 0, kind: input, shape index: {}]
  %s1 = inlined_call_operand.vmem [shape: bf16[2,9,9,128], index: 1, kind: input, shape index: {}]
  %s2 = inlined_call_operand.vmem [shape: bf16[2,9,9,128], index: 2, kind: input, shape index: {}]
  %s3 = inlined_call_operand.vmem [shape: bf16[2,9,9,128], index: 3, kind: input, shape index: {}]
  %s4 = inlined_call_operand.vmem [shape: bf16[9,128,128], index: 4, kind: input, shape index: {}]
  %s5 = inlined_call_operand.vmem [shape: f32[128,128], index: 5, kind: output, shape index: {0}]
  %s6 = inlined_call_operand.vmem [shape: f32[2,8,128], index: 6, kind: output, shape index: {1}]
  %s7 = inlined_call_operand.vmem [shape: f32[2,8,128], index: 7, kind: output, shape index: {2}]
  %8 = xla_tuple %s5, %s6, %s7
  %s9 = sld [smem:[#allocation0]]
  $region69: #{basic_block_forward.5} parent=0
    _
  %s11 = ssub.s32 1, %s9
  %s12 = scalar_select 0, %s11, %s9
  loop: start=0, step=1, limit=4
  $region2: #{basic_block_forward.5} parent=0 // loop_pre_header
    _
  $region3: #{basic_block_forward.5} parent=0 // loop_header
    %s14 = sphi 0, %s18
    %p15 = scmp.ge.s32.totalorder %s14, 4
    %s24 = sphi 0, %s26
    %s27 = sphi 0, %s24
    %s28 = sphi 0, %s27
    %s44 = sphi 0, %s28
    %s50 = sphi 0, %s52
    %s53 = sphi 0, %s50
    %s54 = sphi 0, %s53
    %s70 = sphi 0, %s54
    %s76 = sphi 0, %s78
    %s79 = sphi 0, %s76
    %s80 = sphi 0, %s79
    %s96 = sphi 0, %s80
    %s102 = sphi 0, %s104
    %s105 = sphi 0, %s102
    %s106 = sphi 0, %s105
    %s122 = sphi 0, %s106
    %s126 = sphi 0, %s126
    %s128 = sphi 0, %s126
    %s129 = sphi 0, %s128
    %s143 = sphi 0, %s129
    %s149 = sphi 0, %s151
    %s152 = sphi 0, %s149
    %s153 = sphi 0, %s152
    %s169 = sphi 0, %s153
    %s175 = sphi 0, %s177
    %s178 = sphi 0, %s175
    %s179 = sphi 0, %s178
    %s195 = sphi 0, %s179
    %s201 = sphi 0, %s203
    %s204 = sphi 0, %s201
    %s205 = sphi 0, %s204
    %s221 = sphi 0, %s205
  $region4: #{basic_block_forward.5} parent=0 // loop_header_branch
    %17 = sbr.rel (%p15) target = $region8
  $region5: #{basic_block_forward.5} parent=0 // loop_body
    %s19 = ssub.s32 %s14, 1
    %s20 = ssub.s32 %s14, 2
    %s21 = sadd.s32 %s14, 1
    %s22 = ssub.s32 %s14, %s21
    %p23 = scmp.eq.s32.totalorder %s22, 0
    %s25 = sadd.s32 %s24, 1
    %s26 = scalar_select %p23, %s24, %s25
    %p29 = pneg %p23
    %p30 = scmp.eq.s32.totalorder %s14, 1
    %p31 = por %p29, %p30
    %p32 = scmp.ne.s32.totalorder %s24, %s27
    %p33 = scmp.eq.s32.totalorder %s14, 0
    %p34 = por %p32, %p33
    %p35 = scmp.ne.s32.totalorder %s24, %s27
    %p36 = scmp.eq.s32.totalorder %s19, 1
    %p37 = por %p35, %p36
    %p38 = scmp.ne.s32.totalorder %s27, %s28
    %p39 = scmp.eq.s32.totalorder %s19, 0
    %p40 = por %p38, %p39
    %p41 = scmp.ne.s32.totalorder %s27, %s28
    %p42 = scmp.eq.s32.totalorder %s20, 1
    %p43 = por %p41, %p42
    %p45 = scmp.ne.s32.totalorder %s28, %s44
    %p46 = scmp.eq.s32.totalorder %s20, 0
    %p47 = por %p45, %p46
    %s48 = ssub.s32 %s14, %s21
    %p49 = scmp.eq.s32.totalorder %s48, 0
    %s51 = sadd.s32 %s50, 1
    %s52 = scalar_select %p49, %s50, %s51
    %p55 = pneg %p49
    %p56 = scmp.eq.s32.totalorder %s14, 1
    %p57 = por %p55, %p56
    %p58 = scmp.ne.s32.totalorder %s50, %s53
    %p59 = scmp.eq.s32.totalorder %s14, 0
    %p60 = por %p58, %p59
    %p61 = scmp.ne.s32.totalorder %s50, %s53
    %p62 = scmp.eq.s32.totalorder %s19, 1
    %p63 = por %p61, %p62
    %p64 = scmp.ne.s32.totalorder %s53, %s54
    %p65 = scmp.eq.s32.totalorder %s19, 0
    %p66 = por %p64, %p65
    %p67 = scmp.ne.s32.totalorder %s53, %s54
    %p68 = scmp.eq.s32.totalorder %s20, 1
    %p69 = por %p67, %p68
    %p71 = scmp.ne.s32.totalorder %s54, %s70
    %p72 = scmp.eq.s32.totalorder %s20, 0
    %p73 = por %p71, %p72
    %s74 = ssub.s32 %s14, %s21
    %p75 = scmp.eq.s32.totalorder %s74, 0
    %s77 = sadd.s32 %s76, 1
    %s78 = scalar_select %p75, %s76, %s77
    %p81 = pneg %p75
    %p82 = scmp.eq.s32.totalorder %s14, 1
    %p83 = por %p81, %p82
    %p84 = scmp.ne.s32.totalorder %s76, %s79
    %p85 = scmp.eq.s32.totalorder %s14, 0
    %p86 = por %p84, %p85
    %p87 = scmp.ne.s32.totalorder %s76, %s79
    %p88 = scmp.eq.s32.totalorder %s19, 1
    %p89 = por %p87, %p88
    %p90 = scmp.ne.s32.totalorder %s79, %s80
    %p91 = scmp.eq.s32.totalorder %s19, 0
    %p92 = por %p90, %p91
    %p93 = scmp.ne.s32.totalorder %s79, %s80
    %p94 = scmp.eq.s32.totalorder %s20, 1
    %p95 = por %p93, %p94
    %p97 = scmp.ne.s32.totalorder %s80, %s96
    %p98 = scmp.eq.s32.totalorder %s20, 0
    %p99 = por %p97, %p98
    %s100 = ssub.s32 %s14, %s21
    %p101 = scmp.eq.s32.totalorder %s100, 0
    %s103 = sadd.s32 %s102, 1
    %s104 = scalar_select %p101, %s102, %s103
    %p107 = pneg %p101
    %p108 = scmp.eq.s32.totalorder %s14, 1
    %p109 = por %p107, %p108
    %p110 = scmp.ne.s32.totalorder %s102, %s105
    %p111 = scmp.eq.s32.totalorder %s14, 0
    %p112 = por %p110, %p111
    %p113 = scmp.ne.s32.totalorder %s102, %s105
    %p114 = scmp.eq.s32.totalorder %s19, 1
    %p115 = por %p113, %p114
    %p116 = scmp.ne.s32.totalorder %s105, %s106
    %p117 = scmp.eq.s32.totalorder %s19, 0
    %p118 = por %p116, %p117
    %p119 = scmp.ne.s32.totalorder %s105, %s106
    %p120 = scmp.eq.s32.totalorder %s20, 1
    %p121 = por %p119, %p120
    %p123 = scmp.ne.s32.totalorder %s106, %s122
    %p124 = scmp.eq.s32.totalorder %s20, 0
    %p125 = por %p123, %p124
    %s127 = sadd.s32 %s126, 1
    %p130 = scmp.eq.s32.totalorder %s14, 1
    %p131 = scmp.ne.s32.totalorder %s126, %s128
    %p132 = scmp.eq.s32.totalorder %s14, 0
    %p133 = por %p131, %p132
    %p134 = scmp.ne.s32.totalorder %s126, %s128
    %p135 = scmp.eq.s32.totalorder %s19, 1
    %p136 = por %p134, %p135
    %p137 = scmp.ne.s32.totalorder %s128, %s129
    %p138 = scmp.eq.s32.totalorder %s19, 0
    %p139 = por %p137, %p138
    %p140 = scmp.ne.s32.totalorder %s128, %s129
    %p141 = scmp.eq.s32.totalorder %s20, 1
    %p142 = por %p140, %p141
    %p144 = scmp.ne.s32.totalorder %s129, %s143
    %p145 = scmp.eq.s32.totalorder %s20, 0
    %p146 = por %p144, %p145
    %s147 = ssub.s32 %s14, %s21
    %p148 = scmp.eq.s32.totalorder %s147, 0
    %s150 = sadd.s32 %s149, 1
    %s151 = scalar_select %p148, %s149, %s150
    %p154 = pneg %p148
    %p155 = scmp.eq.s32.totalorder %s14, 1
    %p156 = por %p154, %p155
    %p157 = scmp.ne.s32.totalorder %s149, %s152
    %p158 = scmp.eq.s32.totalorder %s14, 0
    %p159 = por %p157, %p158
    %p160 = scmp.ne.s32.totalorder %s149, %s152
    %p161 = scmp.eq.s32.totalorder %s19, 1
    %p162 = por %p160, %p161
    %p163 = scmp.ne.s32.totalorder %s152, %s153
    %p164 = scmp.eq.s32.totalorder %s19, 0
    %p165 = por %p163, %p164
    %p166 = scmp.ne.s32.totalorder %s152, %s153
    %p167 = scmp.eq.s32.totalorder %s20, 1
    %p168 = por %p166, %p167
    %p170 = scmp.ne.s32.totalorder %s153, %s169
    %p171 = scmp.eq.s32.totalorder %s20, 0
    %p172 = por %p170, %p171
    %s173 = ssub.s32 %s14, %s21
    %p174 = scmp.eq.s32.totalorder %s173, 0
    %s176 = sadd.s32 %s175, 1
    %s177 = scalar_select %p174, %s175, %s176
    %p180 = pneg %p174
    %p181 = scmp.eq.s32.totalorder %s14, 1
    %p182 = por %p180, %p181
    %p183 = scmp.ne.s32.totalorder %s175, %s178
    %p184 = scmp.eq.s32.totalorder %s14, 0
    %p185 = por %p183, %p184
    %p186 = scmp.ne.s32.totalorder %s175, %s178
    %p187 = scmp.eq.s32.totalorder %s19, 1
    %p188 = por %p186, %p187
    %p189 = scmp.ne.s32.totalorder %s178, %s179
    %p190 = scmp.eq.s32.totalorder %s19, 0
    %p191 = por %p189, %p190
    %p192 = scmp.ne.s32.totalorder %s178, %s179
    %p193 = scmp.eq.s32.totalorder %s20, 1
    %p194 = por %p192, %p193
    %p196 = scmp.ne.s32.totalorder %s179, %s195
    %p197 = scmp.eq.s32.totalorder %s20, 0
    %p198 = por %p196, %p197
    %s199 = ssub.s32 %s14, %s21
    %p200 = scmp.eq.s32.totalorder %s199, 0
    %s202 = sadd.s32 %s201, 1
    %s203 = scalar_select %p200, %s201, %s202
    %p206 = pneg %p200
    %p207 = scmp.eq.s32.totalorder %s14, 1
    %p208 = por %p206, %p207
    %p209 = scmp.ne.s32.totalorder %s201, %s204
    %p210 = scmp.eq.s32.totalorder %s14, 0
    %p211 = por %p209, %p210
    %p212 = scmp.ne.s32.totalorder %s201, %s204
    %p213 = scmp.eq.s32.totalorder %s19, 1
    %p214 = por %p212, %p213
    %p215 = scmp.ne.s32.totalorder %s204, %s205
    %p216 = scmp.eq.s32.totalorder %s19, 0
    %p217 = por %p215, %p216
    %p218 = scmp.ne.s32.totalorder %s204, %s205
    %p219 = scmp.eq.s32.totalorder %s20, 1
    %p220 = por %p218, %p219
    %p222 = scmp.ne.s32.totalorder %s205, %s221
    %p223 = scmp.eq.s32.totalorder %s20, 0
    %p224 = por %p222, %p223
    %p225 = scmp.le.s32.totalorder 1, %s14
    %p226 = scmp.lt.s32.totalorder %s14, 3
    %p227 = pnand %p225, %p226
    %p228 = pneg %p227
    // Predicated region
    $region9: #{basic_block_forward.5} parent=5 // pred_check
      _
    $region10: #{basic_block_forward.5} parent=5 // pred_check_branch
      %230 = sbr.rel (%p227) target = $region12
    $region11: #{basic_block_forward.5} parent=5 // pred_region
      %s231 = ssub.s32 %s14, 1
      // Predicated region
      $region13: #{basic_block_forward.5} parent=11 // pred_check
        %p232 = pneg %p139
      $region14: #{basic_block_forward.5} parent=11 // pred_check_branch
        %234 = sbr.rel (%p232) target = $region16
      $region15: #{basic_block_forward.5} parent=11 // pred_region
        _
      $region16: #{basic_block_forward.5} parent=11 // pred_fallthru
        _
    $region12: #{basic_block_forward.5} parent=5 // pred_fallthru
      _
    %p235 = scmp.lt.s32.totalorder %s14, 2
    // Predicated region
    $region17: #{basic_block_forward.5} parent=5 // pred_check
      %p236 = pneg %p235
    $region18: #{basic_block_forward.5} parent=5 // pred_check_branch
      %238 = sbr.rel (%p236) target = $region20
    $region19: #{basic_block_forward.5} parent=5 // pred_region
      // Predicated region
      $region21: #{basic_block_forward.5} parent=19 // pred_check
        %p239 = pneg %p34
      $region22: #{basic_block_forward.5} parent=19 // pred_check_branch
        %241 = sbr.rel (%p239) target = $region24
      $region23: #{basic_block_forward.5} parent=19 // pred_region
        %p242 = scmp.lt.s32.totalorder %s14, 1
        %s243 = scalar_select %p242, %s14, 1
        %s244 = smul.addr %s243, 18
        %s245 = smul.addr %s244, 4
        %s246 = scalar_lea.vmem %s0, %s245
      $region24: #{basic_block_forward.5} parent=19 // pred_fallthru
        _
      // Predicated region
      $region25: #{basic_block_forward.5} parent=19 // pred_check
        %p247 = pneg %p60
      $region26: #{basic_block_forward.5} parent=19 // pred_check_branch
        %249 = sbr.rel (%p247) target = $region28
      $region27: #{basic_block_forward.5} parent=19 // pred_region
        %p250 = scmp.lt.s32.totalorder %s14, 1
        %s251 = scalar_select %p250, %s14, 1
        %s252 = smul.addr %s251, 18
        %s253 = smul.addr %s252, 4
        %s254 = scalar_lea.vmem %s1, %s253
      $region28: #{basic_block_forward.5} parent=19 // pred_fallthru
        _
      // Predicated region
      $region29: #{basic_block_forward.5} parent=19 // pred_check
        %p255 = pneg %p86
      $region30: #{basic_block_forward.5} parent=19 // pred_check_branch
        %257 = sbr.rel (%p255) target = $region32
      $region31: #{basic_block_forward.5} parent=19 // pred_region
        %p258 = scmp.lt.s32.totalorder %s14, 1
        %s259 = scalar_select %p258, %s14, 1
        %s260 = smul.addr %s259, 18
        %s261 = smul.addr %s260, 4
        %s262 = scalar_lea.vmem %s2, %s261
      $region32: #{basic_block_forward.5} parent=19 // pred_fallthru
        _
      // Predicated region
      $region33: #{basic_block_forward.5} parent=19 // pred_check
        %p263 = pneg %p112
      $region34: #{basic_block_forward.5} parent=19 // pred_check_branch
        %265 = sbr.rel (%p263) target = $region36
      $region35: #{basic_block_forward.5} parent=19 // pred_region
        %p266 = scmp.lt.s32.totalorder %s14, 1
        %s267 = scalar_select %p266, %s14, 1
        %s268 = smul.addr %s267, 18
        %s269 = smul.addr %s268, 4
        %s270 = scalar_lea.vmem %s3, %s269
      $region36: #{basic_block_forward.5} parent=19 // pred_fallthru
        _
    $region20: #{basic_block_forward.5} parent=5 // pred_fallthru
      _
    %p271 = scmp.le.s32.totalorder 1, %s14
    %p272 = scmp.lt.s32.totalorder %s14, 3
    %p273 = pnand %p271, %p272
    %p274 = pneg %p273
    // Predicated region
    $region37: #{basic_block_forward.5} parent=5 // pred_check
      _
    $region38: #{basic_block_forward.5} parent=5 // pred_check_branch
      %276 = sbr.rel (%p273) target = $region40
    $region39: #{basic_block_forward.5} parent=5 // pred_region
      %s277 = ssub.s32 %s14, 1
      %p278 = scmp.lt.s32.totalorder %s19, 1
      %s279 = scalar_select %p278, %s19, 1
      %s280 = smul.addr %s279, 18
      %s281 = smul.addr %s280, 4
      %s282 = scalar_lea.vmem %s0, %s281
      %p283 = pneg %p40
      %p284 = pneg %p37
      %p285 = scmp.lt.s32.totalorder %s19, 1
      %s286 = scalar_select %p285, %s19, 1
      %s287 = smul.addr %s286, 18
      %s288 = smul.addr %s287, 4
      %s289 = scalar_lea.vmem %s1, %s288
      %p290 = pneg %p66
      %p291 = pneg %p63
      %p292 = scmp.lt.s32.totalorder %s19, 1
      %s293 = scalar_select %p292, %s19, 1
      %s294 = smul.addr %s293, 18
      %s295 = smul.addr %s294, 4
      %s296 = scalar_lea.vmem %s2, %s295
      %p297 = pneg %p92
      %p298 = pneg %p89
      %p299 = scmp.lt.s32.totalorder %s19, 1
      %s300 = scalar_select %p299, %s19, 1
      %s301 = smul.addr %s300, 18
      %s302 = smul.addr %s301, 4
      %s303 = scalar_lea.vmem %s3, %s302
      %p304 = pneg %p118
      %p305 = pneg %p115
      %p306 = pneg %p139
      %p307 = pneg %p136
      %p308 = pneg %p165
      %p309 = pneg %p162
      %s310 = smul.u32 8, %s19
      %p311 = scmp.lt.s32.totalorder %s310, 15
      %s312 = scalar_select %p311, %s310, 15
      %s313 = smul.addr %s312, 8
      %s314 = scalar_lea.vmem %s5, %s313
      %p315 = pneg %p191
      %p316 = pneg %p188
      %p317 = scmp.lt.s32.totalorder %s19, 1
      %s318 = scalar_select %p317, %s19, 1
      %s319 = smul.addr %s318, 8
      %s320 = scalar_lea.vmem %s6, %s319
      %p321 = pneg %p217
      %p322 = pneg %p214
      %p323 = scmp.lt.s32.totalorder %s19, 1
      %s324 = scalar_select %p323, %s19, 1
      %s325 = smul.addr %s324, 8
      %s326 = scalar_lea.vmem %s7, %s325
      %p327 = scmp.lt.s32.totalorder %s19, 1
      %s328 = scalar_select %p327, %s19, 1
      %s329 = smul.addr %s328, 18
      %s330 = smul.addr %s329, 4
      %s331 = scalar_lea.vmem %s0, %s330
      %p332 = scmp.lt.s32.totalorder %s19, 1
      %s333 = scalar_select %p332, %s19, 1
      %s334 = smul.addr %s333, 18
      %s335 = smul.addr %s334, 4
      %s336 = scalar_lea.vmem %s1, %s335
      %p337 = scmp.lt.s32.totalorder %s19, 1
      %s338 = scalar_select %p337, %s19, 1
      %s339 = smul.addr %s338, 18
      %s340 = smul.addr %s339, 4
      %s341 = scalar_lea.vmem %s2, %s340
      %p342 = scmp.lt.s32.totalorder %s19, 1
      %s343 = scalar_select %p342, %s19, 1
      %s344 = smul.addr %s343, 18
      %s345 = smul.addr %s344, 4
      %s346 = scalar_lea.vmem %s3, %s345
      %s347 = smul.u32 8, %s19
      %p348 = scmp.lt.s32.totalorder %s347, 15
      %s349 = scalar_select %p348, %s347, 15
      %s350 = smul.addr %s349, 8
      %s351 = scalar_lea.vmem %s5, %s350
      %s352 = smul.u32 8, %s19
      %p353 = scmp.lt.s32.totalorder %s19, 1
      %s354 = scalar_select %p353, %s19, 1
      %s355 = smul.addr %s354, 8
      %s356 = scalar_lea.vmem %s6, %s355
      %p357 = scmp.lt.s32.totalorder %s19, 1
      %s358 = scalar_select %p357, %s19, 1
      %s359 = smul.addr %s358, 8
      %s360 = scalar_lea.vmem %s7, %s359
      %v362 = vld [vmem:[%s331] sm:$0xf]
      %v363 = vld [vmem:[%s331 + $0x8] sm:$0xf]
      %v364 = vld [vmem:[%s331 + $0x10] sm:$0xf]
      %v365 = vld [vmem:[%s331 + $0x18] sm:$0xf]
      %v366 = vld [vmem:[%s331 + $0x20] sm:$0xf]
      %v367 = vld [vmem:[%s331 + $0x28] sm:$0xf]
      %v368 = vld [vmem:[%s331 + $0x30] sm:$0xf]
      %v369 = vld [vmem:[%s331 + $0x38] sm:$0xf]
      %v370 = vld [vmem:[%s4] sm:$0xf]
      %v371 = vld [vmem:[%s4 + $0x4] sm:$0xf]
      %v372 = vld [vmem:[%s4 + $0x8] sm:$0xf]
      %v373 = vld [vmem:[%s4 + $0xc] sm:$0xf]
      %v374 = vld [vmem:[%s4 + $0x10] sm:$0xf]
      %v375 = vld [vmem:[%s4 + $0x14] sm:$0xf]
      %v376 = vld [vmem:[%s4 + $0x18] sm:$0xf]
      %v377 = vld [vmem:[%s4 + $0x1c] sm:$0xf]
      %v378 = vld [vmem:[%s4 + $0x20] sm:$0xf]
      %v379 = vld [vmem:[%s4 + $0x24] sm:$0xf]
      %v380 = vld [vmem:[%s4 + $0x28] sm:$0xf]
      %v381 = vld [vmem:[%s4 + $0x2c] sm:$0xf]
      %v382 = vld [vmem:[%s4 + $0x30] sm:$0xf]
      %v383 = vld [vmem:[%s4 + $0x34] sm:$0xf]
      %v384 = vld [vmem:[%s4 + $0x38] sm:$0xf]
      %v385 = vld [vmem:[%s4 + $0x3c] sm:$0xf]
      %v386 = vld [vmem:[%s336] sm:$0xf]
      %v387 = vld [vmem:[%s336 + $0x8] sm:$0xf]
      %v388 = vld [vmem:[%s336 + $0x10] sm:$0xf]
      %v389 = vld [vmem:[%s336 + $0x18] sm:$0xf]
      %v390 = vld [vmem:[%s336 + $0x20] sm:$0xf]
      %v391 = vld [vmem:[%s336 + $0x28] sm:$0xf]
      %v392 = vld [vmem:[%s336 + $0x30] sm:$0xf]
      %v393 = vld [vmem:[%s336 + $0x38] sm:$0xf]
      %s394 = scalar_lea.vmem %s4, 64
      %v395 = vld [vmem:[%s394] sm:$0xf]
      %v396 = vld [vmem:[%s394 + $0x4] sm:$0xf]
      %v397 = vld [vmem:[%s394 + $0x8] sm:$0xf]
      %v398 = vld [vmem:[%s394 + $0xc] sm:$0xf]
      %v399 = vld [vmem:[%s394 + $0x10] sm:$0xf]
      %v400 = vld [vmem:[%s394 + $0x14] sm:$0xf]
      %v401 = vld [vmem:[%s394 + $0x18] sm:$0xf]
      %v402 = vld [vmem:[%s394 + $0x1c] sm:$0xf]
      %v403 = vld [vmem:[%s394 + $0x20] sm:$0xf]
      %v404 = vld [vmem:[%s394 + $0x24] sm:$0xf]
      %v405 = vld [vmem:[%s394 + $0x28] sm:$0xf]
      %v406 = vld [vmem:[%s394 + $0x2c] sm:$0xf]
      %v407 = vld [vmem:[%s394 + $0x30] sm:$0xf]
      %v408 = vld [vmem:[%s394 + $0x34] sm:$0xf]
      %v409 = vld [vmem:[%s394 + $0x38] sm:$0xf]
      %v410 = vld [vmem:[%s394 + $0x3c] sm:$0xf]
      %v419 = vunpack.c.l.b16 %v386
      %v420 = vunpack.c.l.b16 %v387
      %v421 = vunpack.c.l.b16 %v388
      %v422 = vunpack.c.l.b16 %v389
      %v423 = vunpack.c.l.b16 %v390
      %v424 = vunpack.c.l.b16 %v391
      %v425 = vunpack.c.l.b16 %v392
      %v426 = vunpack.c.l.b16 %v393
      %v427 = vpack.c.b16 %v420, %v419
      %v428 = vpack.c.b16 %v422, %v421
      %v429 = vpack.c.b16 %v424, %v423
      %v430 = vpack.c.b16 %v426, %v425
      %v451 = vunpack.c.l.b16 %v395
      %v452 = vunpack.c.l.b16 %v396
      %v453 = vunpack.c.l.b16 %v397
      %v454 = vunpack.c.l.b16 %v398
      %v455 = vunpack.c.l.b16 %v399
      %v456 = vunpack.c.l.b16 %v400
      %v457 = vunpack.c.l.b16 %v401
      %v458 = vunpack.c.l.b16 %v402
      %v459 = vunpack.c.l.b16 %v403
      %v460 = vunpack.c.l.b16 %v404
      %v461 = vunpack.c.l.b16 %v405
      %v462 = vunpack.c.l.b16 %v406
      %v463 = vunpack.c.l.b16 %v407
      %v464 = vunpack.c.l.b16 %v408
      %v465 = vunpack.c.l.b16 %v409
      %v466 = vunpack.c.l.b16 %v410
      %v467 = vpack.c.b16 %v452, %v451
      %v468 = vpack.c.b16 %v454, %v453
      %v469 = vpack.c.b16 %v456, %v455
      %v470 = vpack.c.b16 %v458, %v457
      %v471 = vpack.c.b16 %v460, %v459
      %v472 = vpack.c.b16 %v462, %v461
      %v473 = vpack.c.b16 %v464, %v463
      %v474 = vpack.c.b16 %v466, %v465
      %483 = vmatprep.subr.bf16.mxu0 0
      %484 = vmatpush1.bf16.msra.mxu0 %v474
      %485 = vmatprep.subr.bf16.mxu0 0
      %486 = vmatpush1.bf16.msra.mxu0 %v473
      %487 = vmatprep.subr.bf16.mxu0 0
      %488 = vmatpush1.bf16.msra.mxu0 %v472
      %489 = vmatprep.subr.bf16.mxu0 0
      %490 = vmatpush1.bf16.msra.mxu0 %v471
      %491 = vmatprep.subr.bf16.mxu0 0
      %492 = vmatpush1.bf16.msra.mxu0 %v470
      %493 = vmatprep.subr.bf16.mxu0 0
      %494 = vmatpush1.bf16.msra.mxu0 %v469
      %495 = vmatprep.subr.bf16.mxu0 0
      %496 = vmatpush1.bf16.msra.mxu0 %v468
      %497 = vmatprep.subr.bf16.mxu0 0
      %498 = vmatpush1.bf16.msra.mxu0 %v467
      %499 = vmatprep.subr.bf16.mxu0 0
      %500 = vmatpush2.bf16.msra.mxu0 0
      %501 = vmatprep.subr.bf16.mxu0 0
      %502 = vmatpush2.bf16.msra.mxu0 0
      %503 = vmatprep.subr.bf16.mxu0 0
      %504 = vmatpush2.bf16.msra.mxu0 0
      %505 = vmatprep.subr.bf16.mxu0 0
      %506 = vmatpush2.bf16.msra.mxu0 0
      %507 = vmatprep.subr.bf16.mxu0 0
      %508 = vmatpush2.bf16.msra.mxu0 0
      %509 = vmatprep.subr.bf16.mxu0 0
      %510 = vmatpush2.bf16.msra.mxu0 0
      %511 = vmatprep.subr.bf16.mxu0 0
      %512 = vmatpush2.bf16.msra.mxu0 0
      %513 = vmatprep.subr.bf16.mxu0 0
      %514 = vmatpush2.bf16.msra.mxu0 0
      %515 = vmatprep.mubr.bf16.mxu0 0
      %516 = vmatmul.mubr.bf16.gmra.mxu0 %v427
      %v517 = vpop.f32.mrf.mxu0
      %v518 = vadd.f32 0.0, %v517
      %v519 = vpop.f32.mrf.mxu0
      %v520 = vpop.f32.mrf.mxu0
      %v521 = vadd.f32 0.0, %v520
      %v522 = vpop.f32.mrf.mxu0
      %523 = vmatprep.mubr.bf16.mxu0 0
      %524 = vmatmul.mubr.bf16.gmra.mxu0 %v428
      %v525 = vpop.f32.mrf.mxu0
      %v526 = vadd.f32 0.0, %v525
      %v527 = vpop.f32.mrf.mxu0
      %v528 = vpop.f32.mrf.mxu0
      %v529 = vadd.f32 0.0, %v528
      %v530 = vpop.f32.mrf.mxu0
      %531 = vmatprep.mubr.bf16.mxu0 0
      %532 = vmatmul.mubr.bf16.gmra.mxu0 %v429
      %v533 = vpop.f32.mrf.mxu0
      %v534 = vadd.f32 0.0, %v533
      %v535 = vpop.f32.mrf.mxu0
      %v536 = vpop.f32.mrf.mxu0
      %v537 = vadd.f32 0.0, %v536
      %v538 = vpop.f32.mrf.mxu0
      %539 = vmatprep.mubr.bf16.mxu0 0
      %540 = vmatmul.mubr.bf16.gmra.mxu0 %v430
      %v541 = vpop.f32.mrf.mxu0
      %v542 = vadd.f32 0.0, %v541
      %v543 = vpop.f32.mrf.mxu0
      %v544 = vpop.f32.mrf.mxu0
      %v545 = vadd.f32 0.0, %v544
      %v546 = vpop.f32.mrf.mxu0
      %547 = vdwg.mxu0
      %v556 = vunpack.c.l.b16 %v362
      %v557 = vunpack.c.l.b16 %v363
      %v558 = vunpack.c.l.b16 %v364
      %v559 = vunpack.c.l.b16 %v365
      %v560 = vunpack.c.l.b16 %v366
      %v561 = vunpack.c.l.b16 %v367
      %v562 = vunpack.c.l.b16 %v368
      %v563 = vunpack.c.l.b16 %v369
      %v564 = vpack.c.b16 %v557, %v556
      %v565 = vpack.c.b16 %v559, %v558
      %v566 = vpack.c.b16 %v561, %v560
      %v567 = vpack.c.b16 %v563, %v562
      %v588 = vunpack.c.l.b16 %v370
      %v589 = vunpack.c.l.b16 %v371
      %v590 = vunpack.c.l.b16 %v372
      %v591 = vunpack.c.l.b16 %v373
      %v592 = vunpack.c.l.b16 %v374
      %v593 = vunpack.c.l.b16 %v375
      %v594 = vunpack.c.l.b16 %v376
      %v595 = vunpack.c.l.b16 %v377
      %v596 = vunpack.c.l.b16 %v378
      %v597 = vunpack.c.l.b16 %v379
      %v598 = vunpack.c.l.b16 %v380
      %v599 = vunpack.c.l.b16 %v381
      %v600 = vunpack.c.l.b16 %v382
      %v601 = vunpack.c.l.b16 %v383
      %v602 = vunpack.c.l.b16 %v384
      %v603 = vunpack.c.l.b16 %v385
      %v604 = vpack.c.b16 %v589, %v588
      %v605 = vpack.c.b16 %v591, %v590
      %v606 = vpack.c.b16 %v593, %v592
      %v607 = vpack.c.b16 %v595, %v594
      %v608 = vpack.c.b16 %v597, %v596
      %v609 = vpack.c.b16 %v599, %v598
      %v610 = vpack.c.b16 %v601, %v600
      %v611 = vpack.c.b16 %v603, %v602
      %620 = vmatprep.subr.bf16.mxu0 0
      %621 = vmatpush1.bf16.msra.mxu0 %v611
      %622 = vmatprep.subr.bf16.mxu0 0
      %623 = vmatpush1.bf16.msra.mxu0 %v610
      %624 = vmatprep.subr.bf16.mxu0 0
      %625 = vmatpush1.bf16.msra.mxu0 %v609
      %626 = vmatprep.subr.bf16.mxu0 0
      %627 = vmatpush1.bf16.msra.mxu0 %v608
      %628 = vmatprep.subr.bf16.mxu0 0
      %629 = vmatpush1.bf16.msra.mxu0 %v607
      %630 = vmatprep.subr.bf16.mxu0 0
      %631 = vmatpush1.bf16.msra.mxu0 %v606
      %632 = vmatprep.subr.bf16.mxu0 0
      %633 = vmatpush1.bf16.msra.mxu0 %v605
      %634 = vmatprep.subr.bf16.mxu0 0
      %635 = vmatpush1.bf16.msra.mxu0 %v604
      %636 = vmatprep.subr.bf16.mxu0 0
      %637 = vmatpush2.bf16.msra.mxu0 0
      %638 = vmatprep.subr.bf16.mxu0 0
      %639 = vmatpush2.bf16.msra.mxu0 0
      %640 = vmatprep.subr.bf16.mxu0 0
      %641 = vmatpush2.bf16.msra.mxu0 0
      %642 = vmatprep.subr.bf16.mxu0 0
      %643 = vmatpush2.bf16.msra.mxu0 0
      %644 = vmatprep.subr.bf16.mxu0 0
      %645 = vmatpush2.bf16.msra.mxu0 0
      %646 = vmatprep.subr.bf16.mxu0 0
      %647 = vmatpush2.bf16.msra.mxu0 0
      %648 = vmatprep.subr.bf16.mxu0 0
      %649 = vmatpush2.bf16.msra.mxu0 0
      %650 = vmatprep.subr.bf16.mxu0 0
      %651 = vmatpush2.bf16.msra.mxu0 0
      %652 = vmatprep.mubr.bf16.mxu0 0
      %653 = vmatmul.mubr.bf16.gmra.mxu0 %v564
      %v654 = vpop.f32.mrf.mxu0
      %v655 = vadd.f32 %v518, %v654
      %v656 = vpop.f32.mrf.mxu0
      %v657 = vpop.f32.mrf.mxu0
      %v658 = vadd.f32 %v521, %v657
      %v659 = vpop.f32.mrf.mxu0
      %660 = vmatprep.mubr.bf16.mxu0 0
      %661 = vmatmul.mubr.bf16.gmra.mxu0 %v565
      %v662 = vpop.f32.mrf.mxu0
      %v663 = vadd.f32 %v526, %v662
      %v664 = vpop.f32.mrf.mxu0
      %v665 = vpop.f32.mrf.mxu0
      %v666 = vadd.f32 %v529, %v665
      %v667 = vpop.f32.mrf.mxu0
      %668 = vmatprep.mubr.bf16.mxu0 0
      %669 = vmatmul.mubr.bf16.gmra.mxu0 %v566
      %v670 = vpop.f32.mrf.mxu0
      %v671 = vadd.f32 %v534, %v670
      %v672 = vpop.f32.mrf.mxu0
      %v673 = vpop.f32.mrf.mxu0
      %v674 = vadd.f32 %v537, %v673
      %v675 = vpop.f32.mrf.mxu0
      %676 = vmatprep.mubr.bf16.mxu0 0
      %677 = vmatmul.mubr.bf16.gmra.mxu0 %v567
      %v678 = vpop.f32.mrf.mxu0
      %v679 = vadd.f32 %v542, %v678
      %v680 = vpop.f32.mrf.mxu0
      %v681 = vpop.f32.mrf.mxu0
      %v682 = vadd.f32 %v545, %v681
      %v683 = vpop.f32.mrf.mxu0
      %684 = vdwg.mxu0
      %v685 = vld [vmem:[%s331] sm:$0xf]
      %v686 = vld [vmem:[%s331 + $0x4] sm:$0x1]
      %v687 = vld [vmem:[%s331 + $0x8] sm:$0xf]
      %v688 = vld [vmem:[%s331 + $0xc] sm:$0x1]
      %v689 = vld [vmem:[%s331 + $0x10] sm:$0xf]
      %v690 = vld [vmem:[%s331 + $0x14] sm:$0x1]
      %v691 = vld [vmem:[%s331 + $0x18] sm:$0xf]
      %v692 = vld [vmem:[%s331 + $0x1c] sm:$0x1]
      %v693 = vld [vmem:[%s331 + $0x20] sm:$0xf]
      %v694 = vld [vmem:[%s331 + $0x24] sm:$0x1]
      %v695 = vld [vmem:[%s331 + $0x28] sm:$0xf]
      %v696 = vld [vmem:[%s331 + $0x2c] sm:$0x1]
      %v697 = vld [vmem:[%s331 + $0x30] sm:$0xf]
      %v698 = vld [vmem:[%s331 + $0x34] sm:$0x1]
      %v699 = vld [vmem:[%s331 + $0x38] sm:$0xf]
      %v700 = vld [vmem:[%s331 + $0x3c] sm:$0x1]
      %vm701 = vsmask.f32 3328
      %vm702 = vsmask.f32 7440
      %vm703 = vmor %vm701, %vm702
      %v705 = vshrl.u32 %v685, 16
      %v707 = vrot.slane %v705, 4
      %v708 = vshll.u32 %v685, 16
      %v710 = vrot.slane %v708, 5
      %v711 = vor.u32 %v707, %v710
      %v712 = vrot.slane %v711, 4
      %v714 = vshll.u32 %v686, 16
      %v716 = vrot.slane %v714, 5
      %v717 = vsel %vm703, %v712, %v716
      %v719 = vshrl.u32 %v687, 16
      %v721 = vrot.slane %v719, 4
      %v722 = vshll.u32 %v687, 16
      %v724 = vrot.slane %v722, 5
      %v725 = vor.u32 %v721, %v724
      %v726 = vrot.slane %v725, 4
      %v728 = vshll.u32 %v688, 16
      %v730 = vrot.slane %v728, 5
      %v731 = vsel %vm703, %v726, %v730
      %v733 = vshrl.u32 %v689, 16
      %v735 = vrot.slane %v733, 4
      %v736 = vshll.u32 %v689, 16
      %v738 = vrot.slane %v736, 5
      %v739 = vor.u32 %v735, %v738
      %v740 = vrot.slane %v739, 4
      %v742 = vshll.u32 %v690, 16
      %v744 = vrot.slane %v742, 5
      %v745 = vsel %vm703, %v740, %v744
      %v747 = vshrl.u32 %v691, 16
      %v749 = vrot.slane %v747, 4
      %v750 = vshll.u32 %v691, 16
      %v752 = vrot.slane %v750, 5
      %v753 = vor.u32 %v749, %v752
      %v754 = vrot.slane %v753, 4
      %v756 = vshll.u32 %v692, 16
      %v758 = vrot.slane %v756, 5
      %v759 = vsel %vm703, %v754, %v758
      %v761 = vshrl.u32 %v693, 16
      %v763 = vrot.slane %v761, 4
      %v764 = vshll.u32 %v693, 16
      %v766 = vrot.slane %v764, 5
      %v767 = vor.u32 %v763, %v766
      %v768 = vrot.slane %v767, 4
      %v770 = vshll.u32 %v694, 16
      %v772 = vrot.slane %v770, 5
      %v773 = vsel %vm703, %v768, %v772
      %v775 = vshrl.u32 %v695, 16
      %v777 = vrot.slane %v775, 4
      %v778 = vshll.u32 %v695, 16
      %v780 = vrot.slane %v778, 5
      %v781 = vor.u32 %v777, %v780
      %v782 = vrot.slane %v781, 4
      %v784 = vshll.u32 %v696, 16
      %v786 = vrot.slane %v784, 5
      %v787 = vsel %vm703, %v782, %v786
      %v789 = vshrl.u32 %v697, 16
      %v791 = vrot.slane %v789, 4
      %v792 = vshll.u32 %v697, 16
      %v794 = vrot.slane %v792, 5
      %v795 = vor.u32 %v791, %v794
      %v796 = vrot.slane %v795, 4
      %v798 = vshll.u32 %v698, 16
      %v800 = vrot.slane %v798, 5
      %v801 = vsel %vm703, %v796, %v800
      %v803 = vshrl.u32 %v699, 16
      %v805 = vrot.slane %v803, 4
      %v806 = vshll.u32 %v699, 16
      %v808 = vrot.slane %v806, 5
      %v809 = vor.u32 %v805, %v808
      %v810 = vrot.slane %v809, 4
      %v812 = vshll.u32 %v700, 16
      %v814 = vrot.slane %v812, 5
      %v815 = vsel %vm703, %v810, %v814
      %s816 = scalar_lea.vmem %s4, 128
      %v817 = vld [vmem:[%s816] sm:$0xf]
      %v818 = vld [vmem:[%s816 + $0x4] sm:$0xf]
      %v819 = vld [vmem:[%s816 + $0x8] sm:$0xf]
      %v820 = vld [vmem:[%s816 + $0xc] sm:$0xf]
      %v821 = vld [vmem:[%s816 + $0x10] sm:$0xf]
      %v822 = vld [vmem:[%s816 + $0x14] sm:$0xf]
      %v823 = vld [vmem:[%s816 + $0x18] sm:$0xf]
      %v824 = vld [vmem:[%s816 + $0x1c] sm:$0xf]
      %v825 = vld [vmem:[%s816 + $0x20] sm:$0xf]
      %v826 = vld [vmem:[%s816 + $0x24] sm:$0xf]
      %v827 = vld [vmem:[%s816 + $0x28] sm:$0xf]
      %v828 = vld [vmem:[%s816 + $0x2c] sm:$0xf]
      %v829 = vld [vmem:[%s816 + $0x30] sm:$0xf]
      %v830 = vld [vmem:[%s816 + $0x34] sm:$0xf]
      %v831 = vld [vmem:[%s816 + $0x38] sm:$0xf]
      %v832 = vld [vmem:[%s816 + $0x3c] sm:$0xf]
      %v833 = vunpack.c.l.b16 %v717
      %v834 = vunpack.c.l.b16 %v731
      %v835 = vunpack.c.l.b16 %v745
      %v836 = vunpack.c.l.b16 %v759
      %v837 = vunpack.c.l.b16 %v773
      %v838 = vunpack.c.l.b16 %v787
      %v839 = vunpack.c.l.b16 %v801
      %v840 = vunpack.c.l.b16 %v815
      %v841 = vpack.c.b16 %v834, %v833
      %v842 = vpack.c.b16 %v836, %v835
      %v843 = vpack.c.b16 %v838, %v837
      %v844 = vpack.c.b16 %v840, %v839
      %v865 = vunpack.c.l.b16 %v817
      %v866 = vunpack.c.l.b16 %v818
      %v867 = vunpack.c.l.b16 %v819
      %v868 = vunpack.c.l.b16 %v820
      %v869 = vunpack.c.l.b16 %v821
      %v870 = vunpack.c.l.b16 %v822
      %v871 = vunpack.c.l.b16 %v823
      %v872 = vunpack.c.l.b16 %v824
      %v873 = vunpack.c.l.b16 %v825
      %v874 = vunpack.c.l.b16 %v826
      %v875 = vunpack.c.l.b16 %v827
      %v876 = vunpack.c.l.b16 %v828
      %v877 = vunpack.c.l.b16 %v829
      %v878 = vunpack.c.l.b16 %v830
      %v879 = vunpack.c.l.b16 %v831
      %v880 = vunpack.c.l.b16 %v832
      %v881 = vpack.c.b16 %v866, %v865
      %v882 = vpack.c.b16 %v868, %v867
      %v883 = vpack.c.b16 %v870, %v869
      %v884 = vpack.c.b16 %v872, %v871
      %v885 = vpack.c.b16 %v874, %v873
      %v886 = vpack.c.b16 %v876, %v875
      %v887 = vpack.c.b16 %v878, %v877
      %v888 = vpack.c.b16 %v880, %v879
      %897 = vmatprep.subr.bf16.mxu0 0
      %898 = vmatpush1.bf16.msra.mxu0 %v888
      %899 = vmatprep.subr.bf16.mxu0 0
      %900 = vmatpush1.bf16.msra.mxu0 %v887
      %901 = vmatprep.subr.bf16.mxu0 0
      %902 = vmatpush1.bf16.msra.mxu0 %v886
      %903 = vmatprep.subr.bf16.mxu0 0
      %904 = vmatpush1.bf16.msra.mxu0 %v885
      %905 = vmatprep.subr.bf16.mxu0 0
      %906 = vmatpush1.bf16.msra.mxu0 %v884
      %907 = vmatprep.subr.bf16.mxu0 0
      %908 = vmatpush1.bf16.msra.mxu0 %v883
      %909 = vmatprep.subr.bf16.mxu0 0
      %910 = vmatpush1.bf16.msra.mxu0 %v882
      %911 = vmatprep.subr.bf16.mxu0 0
      %912 = vmatpush1.bf16.msra.mxu0 %v881
      %913 = vmatprep.subr.bf16.mxu0 0
      %914 = vmatpush2.bf16.msra.mxu0 0
      %915 = vmatprep.subr.bf16.mxu0 0
      %916 = vmatpush2.bf16.msra.mxu0 0
      %917 = vmatprep.subr.bf16.mxu0 0
      %918 = vmatpush2.bf16.msra.mxu0 0
      %919 = vmatprep.subr.bf16.mxu0 0
      %920 = vmatpush2.bf16.msra.mxu0 0
      %921 = vmatprep.subr.bf16.mxu0 0
      %922 = vmatpush2.bf16.msra.mxu0 0
      %923 = vmatprep.subr.bf16.mxu0 0
      %924 = vmatpush2.bf16.msra.mxu0 0
      %925 = vmatprep.subr.bf16.mxu0 0
      %926 = vmatpush2.bf16.msra.mxu0 0
      %927 = vmatprep.subr.bf16.mxu0 0
      %928 = vmatpush2.bf16.msra.mxu0 0
      %929 = vmatprep.mubr.bf16.mxu0 0
      %930 = vmatmul.mubr.bf16.gmra.mxu0 %v841
      %v931 = vpop.f32.mrf.mxu0
      %v932 = vadd.f32 0.0, %v931
      %v933 = vpop.f32.mrf.mxu0
      %v934 = vpop.f32.mrf.mxu0
      %v935 = vadd.f32 0.0, %v934
      %v936 = vpop.f32.mrf.mxu0
      %937 = vmatprep.mubr.bf16.mxu0 0
      %938 = vmatmul.mubr.bf16.gmra.mxu0 %v842
      %v939 = vpop.f32.mrf.mxu0
      %v940 = vadd.f32 0.0, %v939
      %v941 = vpop.f32.mrf.mxu0
      %v942 = vpop.f32.mrf.mxu0
      %v943 = vadd.f32 0.0, %v942
      %v944 = vpop.f32.mrf.mxu0
      %945 = vmatprep.mubr.bf16.mxu0 0
      %946 = vmatmul.mubr.bf16.gmra.mxu0 %v843
      %v947 = vpop.f32.mrf.mxu0
      %v948 = vadd.f32 0.0, %v947
      %v949 = vpop.f32.mrf.mxu0
      %v950 = vpop.f32.mrf.mxu0
      %v951 = vadd.f32 0.0, %v950
      %v952 = vpop.f32.mrf.mxu0
      %953 = vmatprep.mubr.bf16.mxu0 0
      %954 = vmatmul.mubr.bf16.gmra.mxu0 %v844
      %v955 = vpop.f32.mrf.mxu0
      %v956 = vadd.f32 0.0, %v955
      %v957 = vpop.f32.mrf.mxu0
      %v958 = vpop.f32.mrf.mxu0
      %v959 = vadd.f32 0.0, %v958
      %v960 = vpop.f32.mrf.mxu0
      %961 = vdwg.mxu0
      %v962 = vadd.f32 %v655, %v932
      %v963 = vadd.f32 %v658, %v935
      %v964 = vadd.f32 %v663, %v940
      %v965 = vadd.f32 %v666, %v943
      %v966 = vadd.f32 %v671, %v948
      %v967 = vadd.f32 %v674, %v951
      %v968 = vadd.f32 %v679, %v956
      %v969 = vadd.f32 %v682, %v959
      %v970 = vld [vmem:[%s341] sm:$0xf]
      %v971 = vld [vmem:[%s341 + $0x8] sm:$0xf]
      %v972 = vld [vmem:[%s341 + $0x10] sm:$0xf]
      %v973 = vld [vmem:[%s341 + $0x18] sm:$0xf]
      %v974 = vld [vmem:[%s341 + $0x20] sm:$0xf]
      %v975 = vld [vmem:[%s341 + $0x28] sm:$0xf]
      %v976 = vld [vmem:[%s341 + $0x30] sm:$0xf]
      %v977 = vld [vmem:[%s341 + $0x38] sm:$0xf]
      %s978 = scalar_lea.vmem %s4, 192
      %v979 = vld [vmem:[%s978] sm:$0xf]
      %v980 = vld [vmem:[%s978 + $0x4] sm:$0xf]
      %v981 = vld [vmem:[%s978 + $0x8] sm:$0xf]
      %v982 = vld [vmem:[%s978 + $0xc] sm:$0xf]
      %v983 = vld [vmem:[%s978 + $0x10] sm:$0xf]
      %v984 = vld [vmem:[%s978 + $0x14] sm:$0xf]
      %v985 = vld [vmem:[%s978 + $0x18] sm:$0xf]
      %v986 = vld [vmem:[%s978 + $0x1c] sm:$0xf]
      %v987 = vld [vmem:[%s978 + $0x20] sm:$0xf]
      %v988 = vld [vmem:[%s978 + $0x24] sm:$0xf]
      %v989 = vld [vmem:[%s978 + $0x28] sm:$0xf]
      %v990 = vld [vmem:[%s978 + $0x2c] sm:$0xf]
      %v991 = vld [vmem:[%s978 + $0x30] sm:$0xf]
      %v992 = vld [vmem:[%s978 + $0x34] sm:$0xf]
      %v993 = vld [vmem:[%s978 + $0x38] sm:$0xf]
      %v994 = vld [vmem:[%s978 + $0x3c] sm:$0xf]
      %v1003 = vunpack.c.l.b16 %v970
      %v1004 = vunpack.c.l.b16 %v971
      %v1005 = vunpack.c.l.b16 %v972
      %v1006 = vunpack.c.l.b16 %v973
      %v1007 = vunpack.c.l.b16 %v974
      %v1008 = vunpack.c.l.b16 %v975
      %v1009 = vunpack.c.l.b16 %v976
      %v1010 = vunpack.c.l.b16 %v977
      %v1011 = vpack.c.b16 %v1004, %v1003
      %v1012 = vpack.c.b16 %v1006, %v1005
      %v1013 = vpack.c.b16 %v1008, %v1007
      %v1014 = vpack.c.b16 %v1010, %v1009
      %v1035 = vunpack.c.l.b16 %v979
      %v1036 = vunpack.c.l.b16 %v980
      %v1037 = vunpack.c.l.b16 %v981
      %v1038 = vunpack.c.l.b16 %v982
      %v1039 = vunpack.c.l.b16 %v983
      %v1040 = vunpack.c.l.b16 %v984
      %v1041 = vunpack.c.l.b16 %v985
      %v1042 = vunpack.c.l.b16 %v986
      %v1043 = vunpack.c.l.b16 %v987
      %v1044 = vunpack.c.l.b16 %v988
      %v1045 = vunpack.c.l.b16 %v989
      %v1046 = vunpack.c.l.b16 %v990
      %v1047 = vunpack.c.l.b16 %v991
      %v1048 = vunpack.c.l.b16 %v992
      %v1049 = vunpack.c.l.b16 %v993
      %v1050 = vunpack.c.l.b16 %v994
      %v1051 = vpack.c.b16 %v1036, %v1035
      %v1052 = vpack.c.b16 %v1038, %v1037
      %v1053 = vpack.c.b16 %v1040, %v1039
      %v1054 = vpack.c.b16 %v1042, %v1041
      %v1055 = vpack.c.b16 %v1044, %v1043
      %v1056 = vpack.c.b16 %v1046, %v1045
      %v1057 = vpack.c.b16 %v1048, %v1047
      %v1058 = vpack.c.b16 %v1050, %v1049
      %1067 = vmatprep.subr.bf16.mxu0 0
      %1068 = vmatpush1.bf16.msra.mxu0 %v1058
      %1069 = vmatprep.subr.bf16.mxu0 0
      %1070 = vmatpush1.bf16.msra.mxu0 %v1057
      %1071 = vmatprep.subr.bf16.mxu0 0
      %1072 = vmatpush1.bf16.msra.mxu0 %v1056
      %1073 = vmatprep.subr.bf16.mxu0 0
      %1074 = vmatpush1.bf16.msra.mxu0 %v1055
      %1075 = vmatprep.subr.bf16.mxu0 0
      %1076 = vmatpush1.bf16.msra.mxu0 %v1054
      %1077 = vmatprep.subr.bf16.mxu0 0
      %1078 = vmatpush1.bf16.msra.mxu0 %v1053
      %1079 = vmatprep.subr.bf16.mxu0 0
      %1080 = vmatpush1.bf16.msra.mxu0 %v1052
      %1081 = vmatprep.subr.bf16.mxu0 0
      %1082 = vmatpush1.bf16.msra.mxu0 %v1051
      %1083 = vmatprep.subr.bf16.mxu0 0
      %1084 = vmatpush2.bf16.msra.mxu0 0
      %1085 = vmatprep.subr.bf16.mxu0 0
      %1086 = vmatpush2.bf16.msra.mxu0 0
      %1087 = vmatprep.subr.bf16.mxu0 0
      %1088 = vmatpush2.bf16.msra.mxu0 0
      %1089 = vmatprep.subr.bf16.mxu0 0
      %1090 = vmatpush2.bf16.msra.mxu0 0
      %1091 = vmatprep.subr.bf16.mxu0 0
      %1092 = vmatpush2.bf16.msra.mxu0 0
      %1093 = vmatprep.subr.bf16.mxu0 0
      %1094 = vmatpush2.bf16.msra.mxu0 0
      %1095 = vmatprep.subr.bf16.mxu0 0
      %1096 = vmatpush2.bf16.msra.mxu0 0
      %1097 = vmatprep.subr.bf16.mxu0 0
      %1098 = vmatpush2.bf16.msra.mxu0 0
      %1099 = vmatprep.mubr.bf16.mxu0 0
      %1100 = vmatmul.mubr.bf16.gmra.mxu0 %v1011
      %v1101 = vpop.f32.mrf.mxu0
      %v1102 = vadd.f32 0.0, %v1101
      %v1103 = vpop.f32.mrf.mxu0
      %v1104 = vpop.f32.mrf.mxu0
      %v1105 = vadd.f32 0.0, %v1104
      %v1106 = vpop.f32.mrf.mxu0
      %1107 = vmatprep.mubr.bf16.mxu0 0
      %1108 = vmatmul.mubr.bf16.gmra.mxu0 %v1012
      %v1109 = vpop.f32.mrf.mxu0
      %v1110 = vadd.f32 0.0, %v1109
      %v1111 = vpop.f32.mrf.mxu0
      %v1112 = vpop.f32.mrf.mxu0
      %v1113 = vadd.f32 0.0, %v1112
      %v1114 = vpop.f32.mrf.mxu0
      %1115 = vmatprep.mubr.bf16.mxu0 0
      %1116 = vmatmul.mubr.bf16.gmra.mxu0 %v1013
      %v1117 = vpop.f32.mrf.mxu0
      %v1118 = vadd.f32 0.0, %v1117
      %v1119 = vpop.f32.mrf.mxu0
      %v1120 = vpop.f32.mrf.mxu0
      %v1121 = vadd.f32 0.0, %v1120
      %v1122 = vpop.f32.mrf.mxu0
      %1123 = vmatprep.mubr.bf16.mxu0 0
      %1124 = vmatmul.mubr.bf16.gmra.mxu0 %v1014
      %v1125 = vpop.f32.mrf.mxu0
      %v1126 = vadd.f32 0.0, %v1125
      %v1127 = vpop.f32.mrf.mxu0
      %v1128 = vpop.f32.mrf.mxu0
      %v1129 = vadd.f32 0.0, %v1128
      %v1130 = vpop.f32.mrf.mxu0
      %1131 = vdwg.mxu0
      %v1132 = vadd.f32 %v962, %v1102
      %v1133 = vadd.f32 %v963, %v1105
      %v1134 = vadd.f32 %v964, %v1110
      %v1135 = vadd.f32 %v965, %v1113
      %v1136 = vadd.f32 %v966, %v1118
      %v1137 = vadd.f32 %v967, %v1121
      %v1138 = vadd.f32 %v968, %v1126
      %v1139 = vadd.f32 %v969, %v1129
      %v1140 = vld [vmem:[%s346] sm:$0xf]
      %v1141 = vld [vmem:[%s346 + $0x8] sm:$0xf]
      %v1142 = vld [vmem:[%s346 + $0x10] sm:$0xf]
      %v1143 = vld [vmem:[%s346 + $0x18] sm:$0xf]
      %v1144 = vld [vmem:[%s346 + $0x20] sm:$0xf]
      %v1145 = vld [vmem:[%s346 + $0x28] sm:$0xf]
      %v1146 = vld [vmem:[%s346 + $0x30] sm:$0xf]
      %v1147 = vld [vmem:[%s346 + $0x38] sm:$0xf]
      %s1148 = scalar_lea.vmem %s4, 256
      %v1149 = vld [vmem:[%s1148] sm:$0xf]
      %v1150 = vld [vmem:[%s1148 + $0x4] sm:$0xf]
      %v1151 = vld [vmem:[%s1148 + $0x8] sm:$0xf]
      %v1152 = vld [vmem:[%s1148 + $0xc] sm:$0xf]
      %v1153 = vld [vmem:[%s1148 + $0x10] sm:$0xf]
      %v1154 = vld [vmem:[%s1148 + $0x14] sm:$0xf]
      %v1155 = vld [vmem:[%s1148 + $0x18] sm:$0xf]
      %v1156 = vld [vmem:[%s1148 + $0x1c] sm:$0xf]
      %v1157 = vld [vmem:[%s1148 + $0x20] sm:$0xf]
      %v1158 = vld [vmem:[%s1148 + $0x24] sm:$0xf]
      %v1159 = vld [vmem:[%s1148 + $0x28] sm:$0xf]
      %v1160 = vld [vmem:[%s1148 + $0x2c] sm:$0xf]
      %v1161 = vld [vmem:[%s1148 + $0x30] sm:$0xf]
      %v1162 = vld [vmem:[%s1148 + $0x34] sm:$0xf]
      %v1163 = vld [vmem:[%s1148 + $0x38] sm:$0xf]
      %v1164 = vld [vmem:[%s1148 + $0x3c] sm:$0xf]
      %v1173 = vunpack.c.l.b16 %v1140
      %v1174 = vunpack.c.l.b16 %v1141
      %v1175 = vunpack.c.l.b16 %v1142
      %v1176 = vunpack.c.l.b16 %v1143
      %v1177 = vunpack.c.l.b16 %v1144
      %v1178 = vunpack.c.l.b16 %v1145
      %v1179 = vunpack.c.l.b16 %v1146
      %v1180 = vunpack.c.l.b16 %v1147
      %v1181 = vpack.c.b16 %v1174, %v1173
      %v1182 = vpack.c.b16 %v1176, %v1175
      %v1183 = vpack.c.b16 %v1178, %v1177
      %v1184 = vpack.c.b16 %v1180, %v1179
      %v1205 = vunpack.c.l.b16 %v1149
      %v1206 = vunpack.c.l.b16 %v1150
      %v1207 = vunpack.c.l.b16 %v1151
      %v1208 = vunpack.c.l.b16 %v1152
      %v1209 = vunpack.c.l.b16 %v1153
      %v1210 = vunpack.c.l.b16 %v1154
      %v1211 = vunpack.c.l.b16 %v1155
      %v1212 = vunpack.c.l.b16 %v1156
      %v1213 = vunpack.c.l.b16 %v1157
      %v1214 = vunpack.c.l.b16 %v1158
      %v1215 = vunpack.c.l.b16 %v1159
      %v1216 = vunpack.c.l.b16 %v1160
      %v1217 = vunpack.c.l.b16 %v1161
      %v1218 = vunpack.c.l.b16 %v1162
      %v1219 = vunpack.c.l.b16 %v1163
      %v1220 = vunpack.c.l.b16 %v1164
      %v1221 = vpack.c.b16 %v1206, %v1205
      %v1222 = vpack.c.b16 %v1208, %v1207
      %v1223 = vpack.c.b16 %v1210, %v1209
      %v1224 = vpack.c.b16 %v1212, %v1211
      %v1225 = vpack.c.b16 %v1214, %v1213
      %v1226 = vpack.c.b16 %v1216, %v1215
      %v1227 = vpack.c.b16 %v1218, %v1217
      %v1228 = vpack.c.b16 %v1220, %v1219
      %1237 = vmatprep.subr.bf16.mxu0 0
      %1238 = vmatpush1.bf16.msra.mxu0 %v1228
      %1239 = vmatprep.subr.bf16.mxu0 0
      %1240 = vmatpush1.bf16.msra.mxu0 %v1227
      %1241 = vmatprep.subr.bf16.mxu0 0
      %1242 = vmatpush1.bf16.msra.mxu0 %v1226
      %1243 = vmatprep.subr.bf16.mxu0 0
      %1244 = vmatpush1.bf16.msra.mxu0 %v1225
      %1245 = vmatprep.subr.bf16.mxu0 0
      %1246 = vmatpush1.bf16.msra.mxu0 %v1224
      %1247 = vmatprep.subr.bf16.mxu0 0
      %1248 = vmatpush1.bf16.msra.mxu0 %v1223
      %1249 = vmatprep.subr.bf16.mxu0 0
      %1250 = vmatpush1.bf16.msra.mxu0 %v1222
      %1251 = vmatprep.subr.bf16.mxu0 0
      %1252 = vmatpush1.bf16.msra.mxu0 %v1221
      %1253 = vmatprep.subr.bf16.mxu0 0
      %1254 = vmatpush2.bf16.msra.mxu0 0
      %1255 = vmatprep.subr.bf16.mxu0 0
      %1256 = vmatpush2.bf16.msra.mxu0 0
      %1257 = vmatprep.subr.bf16.mxu0 0
      %1258 = vmatpush2.bf16.msra.mxu0 0
      %1259 = vmatprep.subr.bf16.mxu0 0
      %1260 = vmatpush2.bf16.msra.mxu0 0
      %1261 = vmatprep.subr.bf16.mxu0 0
      %1262 = vmatpush2.bf16.msra.mxu0 0
      %1263 = vmatprep.subr.bf16.mxu0 0
      %1264 = vmatpush2.bf16.msra.mxu0 0
      %1265 = vmatprep.subr.bf16.mxu0 0
      %1266 = vmatpush2.bf16.msra.mxu0 0
      %1267 = vmatprep.subr.bf16.mxu0 0
      %1268 = vmatpush2.bf16.msra.mxu0 0
      %1269 = vmatprep.mubr.bf16.mxu0 0
      %1270 = vmatmul.mubr.bf16.gmra.mxu0 %v1181
      %v1271 = vpop.f32.mrf.mxu0
      %v1272 = vadd.f32 0.0, %v1271
      %v1273 = vpop.f32.mrf.mxu0
      %v1274 = vpop.f32.mrf.mxu0
      %v1275 = vadd.f32 0.0, %v1274
      %v1276 = vpop.f32.mrf.mxu0
      %1277 = vmatprep.mubr.bf16.mxu0 0
      %1278 = vmatmul.mubr.bf16.gmra.mxu0 %v1182
      %v1279 = vpop.f32.mrf.mxu0
      %v1280 = vadd.f32 0.0, %v1279
      %v1281 = vpop.f32.mrf.mxu0
      %v1282 = vpop.f32.mrf.mxu0
      %v1283 = vadd.f32 0.0, %v1282
      %v1284 = vpop.f32.mrf.mxu0
      %1285 = vmatprep.mubr.bf16.mxu0 0
      %1286 = vmatmul.mubr.bf16.gmra.mxu0 %v1183
      %v1287 = vpop.f32.mrf.mxu0
      %v1288 = vadd.f32 0.0, %v1287
      %v1289 = vpop.f32.mrf.mxu0
      %v1290 = vpop.f32.mrf.mxu0
      %v1291 = vadd.f32 0.0, %v1290
      %v1292 = vpop.f32.mrf.mxu0
      %1293 = vmatprep.mubr.bf16.mxu0 0
      %1294 = vmatmul.mubr.bf16.gmra.mxu0 %v1184
      %v1295 = vpop.f32.mrf.mxu0
      %v1296 = vadd.f32 0.0, %v1295
      %v1297 = vpop.f32.mrf.mxu0
      %v1298 = vpop.f32.mrf.mxu0
      %v1299 = vadd.f32 0.0, %v1298
      %v1300 = vpop.f32.mrf.mxu0
      %1301 = vdwg.mxu0
      %v1302 = vadd.f32 %v1132, %v1272
      %v1303 = vadd.f32 %v1133, %v1275
      %v1304 = vadd.f32 %v1134, %v1280
      %v1305 = vadd.f32 %v1135, %v1283
      %v1306 = vadd.f32 %v1136, %v1288
      %v1307 = vadd.f32 %v1137, %v1291
      %v1308 = vadd.f32 %v1138, %v1296
      %v1309 = vadd.f32 %v1139, %v1299
      %v1310 = vld [vmem:[%s341] sm:$0xf]
      %v1311 = vld [vmem:[%s341 + $0x4] sm:$0x1]
      %v1312 = vld [vmem:[%s341 + $0x8] sm:$0xf]
      %v1313 = vld [vmem:[%s341 + $0xc] sm:$0x1]
      %v1314 = vld [vmem:[%s341 + $0x10] sm:$0xf]
      %v1315 = vld [vmem:[%s341 + $0x14] sm:$0x1]
      %v1316 = vld [vmem:[%s341 + $0x18] sm:$0xf]
      %v1317 = vld [vmem:[%s341 + $0x1c] sm:$0x1]
      %v1318 = vld [vmem:[%s341 + $0x20] sm:$0xf]
      %v1319 = vld [vmem:[%s341 + $0x24] sm:$0x1]
      %v1320 = vld [vmem:[%s341 + $0x28] sm:$0xf]
      %v1321 = vld [vmem:[%s341 + $0x2c] sm:$0x1]
      %v1322 = vld [vmem:[%s341 + $0x30] sm:$0xf]
      %v1323 = vld [vmem:[%s341 + $0x34] sm:$0x1]
      %v1324 = vld [vmem:[%s341 + $0x38] sm:$0xf]
      %v1325 = vld [vmem:[%s341 + $0x3c] sm:$0x1]
      %v1327 = vshrl.u32 %v1310, 16
      %v1329 = vrot.slane %v1327, 4
      %v1330 = vshll.u32 %v1310, 16
      %v1332 = vrot.slane %v1330, 5
      %v1333 = vor.u32 %v1329, %v1332
      %v1334 = vrot.slane %v1333, 4
      %v1336 = vshll.u32 %v1311, 16
      %v1338 = vrot.slane %v1336, 5
      %v1339 = vsel %vm703, %v1334, %v1338
      %v1341 = vshrl.u32 %v1312, 16
      %v1343 = vrot.slane %v1341, 4
      %v1344 = vshll.u32 %v1312, 16
      %v1346 = vrot.slane %v1344, 5
      %v1347 = vor.u32 %v1343, %v1346
      %v1348 = vrot.slane %v1347, 4
      %v1350 = vshll.u32 %v1313, 16
      %v1352 = vrot.slane %v1350, 5
      %v1353 = vsel %vm703, %v1348, %v1352
      %v1355 = vshrl.u32 %v1314, 16
      %v1357 = vrot.slane %v1355, 4
      %v1358 = vshll.u32 %v1314, 16
      %v1360 = vrot.slane %v1358, 5
      %v1361 = vor.u32 %v1357, %v1360
      %v1362 = vrot.slane %v1361, 4
      %v1364 = vshll.u32 %v1315, 16
      %v1366 = vrot.slane %v1364, 5
      %v1367 = vsel %vm703, %v1362, %v1366
      %v1369 = vshrl.u32 %v1316, 16
      %v1371 = vrot.slane %v1369, 4
      %v1372 = vshll.u32 %v1316, 16
      %v1374 = vrot.slane %v1372, 5
      %v1375 = vor.u32 %v1371, %v1374
      %v1376 = vrot.slane %v1375, 4
      %v1378 = vshll.u32 %v1317, 16
      %v1380 = vrot.slane %v1378, 5
      %v1381 = vsel %vm703, %v1376, %v1380
      %v1383 = vshrl.u32 %v1318, 16
      %v1385 = vrot.slane %v1383, 4
      %v1386 = vshll.u32 %v1318, 16
      %v1388 = vrot.slane %v1386, 5
      %v1389 = vor.u32 %v1385, %v1388
      %v1390 = vrot.slane %v1389, 4
      %v1392 = vshll.u32 %v1319, 16
      %v1394 = vrot.slane %v1392, 5
      %v1395 = vsel %vm703, %v1390, %v1394
      %v1397 = vshrl.u32 %v1320, 16
      %v1399 = vrot.slane %v1397, 4
      %v1400 = vshll.u32 %v1320, 16
      %v1402 = vrot.slane %v1400, 5
      %v1403 = vor.u32 %v1399, %v1402
      %v1404 = vrot.slane %v1403, 4
      %v1406 = vshll.u32 %v1321, 16
      %v1408 = vrot.slane %v1406, 5
      %v1409 = vsel %vm703, %v1404, %v1408
      %v1411 = vshrl.u32 %v1322, 16
      %v1413 = vrot.slane %v1411, 4
      %v1414 = vshll.u32 %v1322, 16
      %v1416 = vrot.slane %v1414, 5
      %v1417 = vor.u32 %v1413, %v1416
      %v1418 = vrot.slane %v1417, 4
      %v1420 = vshll.u32 %v1323, 16
      %v1422 = vrot.slane %v1420, 5
      %v1423 = vsel %vm703, %v1418, %v1422
      %v1425 = vshrl.u32 %v1324, 16
      %v1427 = vrot.slane %v1425, 4
      %v1428 = vshll.u32 %v1324, 16
      %v1430 = vrot.slane %v1428, 5
      %v1431 = vor.u32 %v1427, %v1430
      %v1432 = vrot.slane %v1431, 4
      %v1434 = vshll.u32 %v1325, 16
      %v1436 = vrot.slane %v1434, 5
      %v1437 = vsel %vm703, %v1432, %v1436
      %s1438 = scalar_lea.vmem %s4, 320
      %v1439 = vld [vmem:[%s1438] sm:$0xf]
      %v1440 = vld [vmem:[%s1438 + $0x4] sm:$0xf]
      %v1441 = vld [vmem:[%s1438 + $0x8] sm:$0xf]
      %v1442 = vld [vmem:[%s1438 + $0xc] sm:$0xf]
      %v1443 = vld [vmem:[%s1438 + $0x10] sm:$0xf]
      %v1444 = vld [vmem:[%s1438 + $0x14] sm:$0xf]
      %v1445 = vld [vmem:[%s1438 + $0x18] sm:$0xf]
      %v1446 = vld [vmem:[%s1438 + $0x1c] sm:$0xf]
      %v1447 = vld [vmem:[%s1438 + $0x20] sm:$0xf]
      %v1448 = vld [vmem:[%s1438 + $0x24] sm:$0xf]
      %v1449 = vld [vmem:[%s1438 + $0x28] sm:$0xf]
      %v1450 = vld [vmem:[%s1438 + $0x2c] sm:$0xf]
      %v1451 = vld [vmem:[%s1438 + $0x30] sm:$0xf]
      %v1452 = vld [vmem:[%s1438 + $0x34] sm:$0xf]
      %v1453 = vld [vmem:[%s1438 + $0x38] sm:$0xf]
      %v1454 = vld [vmem:[%s1438 + $0x3c] sm:$0xf]
      %v1455 = vunpack.c.l.b16 %v1339
      %v1456 = vunpack.c.l.b16 %v1353
      %v1457 = vunpack.c.l.b16 %v1367
      %v1458 = vunpack.c.l.b16 %v1381
      %v1459 = vunpack.c.l.b16 %v1395
      %v1460 = vunpack.c.l.b16 %v1409
      %v1461 = vunpack.c.l.b16 %v1423
      %v1462 = vunpack.c.l.b16 %v1437
      %v1463 = vpack.c.b16 %v1456, %v1455
      %v1464 = vpack.c.b16 %v1458, %v1457
      %v1465 = vpack.c.b16 %v1460, %v1459
      %v1466 = vpack.c.b16 %v1462, %v1461
      %v1487 = vunpack.c.l.b16 %v1439
      %v1488 = vunpack.c.l.b16 %v1440
      %v1489 = vunpack.c.l.b16 %v1441
      %v1490 = vunpack.c.l.b16 %v1442
      %v1491 = vunpack.c.l.b16 %v1443
      %v1492 = vunpack.c.l.b16 %v1444
      %v1493 = vunpack.c.l.b16 %v1445
      %v1494 = vunpack.c.l.b16 %v1446
      %v1495 = vunpack.c.l.b16 %v1447
      %v1496 = vunpack.c.l.b16 %v1448
      %v1497 = vunpack.c.l.b16 %v1449
      %v1498 = vunpack.c.l.b16 %v1450
      %v1499 = vunpack.c.l.b16 %v1451
      %v1500 = vunpack.c.l.b16 %v1452
      %v1501 = vunpack.c.l.b16 %v1453
      %v1502 = vunpack.c.l.b16 %v1454
      %v1503 = vpack.c.b16 %v1488, %v1487
      %v1504 = vpack.c.b16 %v1490, %v1489
      %v1505 = vpack.c.b16 %v1492, %v1491
      %v1506 = vpack.c.b16 %v1494, %v1493
      %v1507 = vpack.c.b16 %v1496, %v1495
      %v1508 = vpack.c.b16 %v1498, %v1497
      %v1509 = vpack.c.b16 %v1500, %v1499
      %v1510 = vpack.c.b16 %v1502, %v1501
      %1519 = vmatprep.subr.bf16.mxu0 0
      %1520 = vmatpush1.bf16.msra.mxu0 %v1510
      %1521 = vmatprep.subr.bf16.mxu0 0
      %1522 = vmatpush1.bf16.msra.mxu0 %v1509
      %1523 = vmatprep.subr.bf16.mxu0 0
      %1524 = vmatpush1.bf16.msra.mxu0 %v1508
      %1525 = vmatprep.subr.bf16.mxu0 0
      %1526 = vmatpush1.bf16.msra.mxu0 %v1507
      %1527 = vmatprep.subr.bf16.mxu0 0
      %1528 = vmatpush1.bf16.msra.mxu0 %v1506
      %1529 = vmatprep.subr.bf16.mxu0 0
      %1530 = vmatpush1.bf16.msra.mxu0 %v1505
      %1531 = vmatprep.subr.bf16.mxu0 0
      %1532 = vmatpush1.bf16.msra.mxu0 %v1504
      %1533 = vmatprep.subr.bf16.mxu0 0
      %1534 = vmatpush1.bf16.msra.mxu0 %v1503
      %1535 = vmatprep.subr.bf16.mxu0 0
      %1536 = vmatpush2.bf16.msra.mxu0 0
      %1537 = vmatprep.subr.bf16.mxu0 0
      %1538 = vmatpush2.bf16.msra.mxu0 0
      %1539 = vmatprep.subr.bf16.mxu0 0
      %1540 = vmatpush2.bf16.msra.mxu0 0
      %1541 = vmatprep.subr.bf16.mxu0 0
      %1542 = vmatpush2.bf16.msra.mxu0 0
      %1543 = vmatprep.subr.bf16.mxu0 0
      %1544 = vmatpush2.bf16.msra.mxu0 0
      %1545 = vmatprep.subr.bf16.mxu0 0
      %1546 = vmatpush2.bf16.msra.mxu0 0
      %1547 = vmatprep.subr.bf16.mxu0 0
      %1548 = vmatpush2.bf16.msra.mxu0 0
      %1549 = vmatprep.subr.bf16.mxu0 0
      %1550 = vmatpush2.bf16.msra.mxu0 0
      %1551 = vmatprep.mubr.bf16.mxu0 0
      %1552 = vmatmul.mubr.bf16.gmra.mxu0 %v1463
      %v1553 = vpop.f32.mrf.mxu0
      %v1554 = vadd.f32 0.0, %v1553
      %v1555 = vpop.f32.mrf.mxu0
      %v1556 = vpop.f32.mrf.mxu0
      %v1557 = vadd.f32 0.0, %v1556
      %v1558 = vpop.f32.mrf.mxu0
      %1559 = vmatprep.mubr.bf16.mxu0 0
      %1560 = vmatmul.mubr.bf16.gmra.mxu0 %v1464
      %v1561 = vpop.f32.mrf.mxu0
      %v1562 = vadd.f32 0.0, %v1561
      %v1563 = vpop.f32.mrf.mxu0
      %v1564 = vpop.f32.mrf.mxu0
      %v1565 = vadd.f32 0.0, %v1564
      %v1566 = vpop.f32.mrf.mxu0
      %1567 = vmatprep.mubr.bf16.mxu0 0
      %1568 = vmatmul.mubr.bf16.gmra.mxu0 %v1465
      %v1569 = vpop.f32.mrf.mxu0
      %v1570 = vadd.f32 0.0, %v1569
      %v1571 = vpop.f32.mrf.mxu0
      %v1572 = vpop.f32.mrf.mxu0
      %v1573 = vadd.f32 0.0, %v1572
      %v1574 = vpop.f32.mrf.mxu0
      %1575 = vmatprep.mubr.bf16.mxu0 0
      %1576 = vmatmul.mubr.bf16.gmra.mxu0 %v1466
      %v1577 = vpop.f32.mrf.mxu0
      %v1578 = vadd.f32 0.0, %v1577
      %v1579 = vpop.f32.mrf.mxu0
      %v1580 = vpop.f32.mrf.mxu0
      %v1581 = vadd.f32 0.0, %v1580
      %v1582 = vpop.f32.mrf.mxu0
      %1583 = vdwg.mxu0
      %v1584 = vadd.f32 %v1302, %v1554
      %v1585 = vadd.f32 %v1303, %v1557
      %v1586 = vadd.f32 %v1304, %v1562
      %v1587 = vadd.f32 %v1305, %v1565
      %v1588 = vadd.f32 %v1306, %v1570
      %v1589 = vadd.f32 %v1307, %v1573
      %v1590 = vadd.f32 %v1308, %v1578
      %v1591 = vadd.f32 %v1309, %v1581
      %s1592 = scalar_lea.vmem %s331, 8
      %v1593 = vld [vmem:[%s1592] sm:$0xf]
      %v1594 = vld [vmem:[%s1592 + $0x8] sm:$0xf]
      %v1595 = vld [vmem:[%s1592 + $0x10] sm:$0xf]
      %v1596 = vld [vmem:[%s1592 + $0x18] sm:$0xf]
      %v1597 = vld [vmem:[%s1592 + $0x20] sm:$0xf]
      %v1598 = vld [vmem:[%s1592 + $0x28] sm:$0xf]
      %v1599 = vld [vmem:[%s1592 + $0x30] sm:$0xf]
      %v1600 = vld [vmem:[%s1592 + $0x38] sm:$0xf]
      %s1601 = scalar_lea.vmem %s4, 384
      %v1602 = vld [vmem:[%s1601] sm:$0xf]
      %v1603 = vld [vmem:[%s1601 + $0x4] sm:$0xf]
      %v1604 = vld [vmem:[%s1601 + $0x8] sm:$0xf]
      %v1605 = vld [vmem:[%s1601 + $0xc] sm:$0xf]
      %v1606 = vld [vmem:[%s1601 + $0x10] sm:$0xf]
      %v1607 = vld [vmem:[%s1601 + $0x14] sm:$0xf]
      %v1608 = vld [vmem:[%s1601 + $0x18] sm:$0xf]
      %v1609 = vld [vmem:[%s1601 + $0x1c] sm:$0xf]
      %v1610 = vld [vmem:[%s1601 + $0x20] sm:$0xf]
      %v1611 = vld [vmem:[%s1601 + $0x24] sm:$0xf]
      %v1612 = vld [vmem:[%s1601 + $0x28] sm:$0xf]
      %v1613 = vld [vmem:[%s1601 + $0x2c] sm:$0xf]
      %v1614 = vld [vmem:[%s1601 + $0x30] sm:$0xf]
      %v1615 = vld [vmem:[%s1601 + $0x34] sm:$0xf]
      %v1616 = vld [vmem:[%s1601 + $0x38] sm:$0xf]
      %v1617 = vld [vmem:[%s1601 + $0x3c] sm:$0xf]
      %v1626 = vunpack.c.l.b16 %v1593
      %v1627 = vunpack.c.l.b16 %v1594
      %v1628 = vunpack.c.l.b16 %v1595
      %v1629 = vunpack.c.l.b16 %v1596
      %v1630 = vunpack.c.l.b16 %v1597
      %v1631 = vunpack.c.l.b16 %v1598
      %v1632 = vunpack.c.l.b16 %v1599
      %v1633 = vunpack.c.l.b16 %v1600
      %v1634 = vpack.c.b16 %v1627, %v1626
      %v1635 = vpack.c.b16 %v1629, %v1628
      %v1636 = vpack.c.b16 %v1631, %v1630
      %v1637 = vpack.c.b16 %v1633, %v1632
      %v1658 = vunpack.c.l.b16 %v1602
      %v1659 = vunpack.c.l.b16 %v1603
      %v1660 = vunpack.c.l.b16 %v1604
      %v1661 = vunpack.c.l.b16 %v1605
      %v1662 = vunpack.c.l.b16 %v1606
      %v1663 = vunpack.c.l.b16 %v1607
      %v1664 = vunpack.c.l.b16 %v1608
      %v1665 = vunpack.c.l.b16 %v1609
      %v1666 = vunpack.c.l.b16 %v1610
      %v1667 = vunpack.c.l.b16 %v1611
      %v1668 = vunpack.c.l.b16 %v1612
      %v1669 = vunpack.c.l.b16 %v1613
      %v1670 = vunpack.c.l.b16 %v1614
      %v1671 = vunpack.c.l.b16 %v1615
      %v1672 = vunpack.c.l.b16 %v1616
      %v1673 = vunpack.c.l.b16 %v1617
      %v1674 = vpack.c.b16 %v1659, %v1658
      %v1675 = vpack.c.b16 %v1661, %v1660
      %v1676 = vpack.c.b16 %v1663, %v1662
      %v1677 = vpack.c.b16 %v1665, %v1664
      %v1678 = vpack.c.b16 %v1667, %v1666
      %v1679 = vpack.c.b16 %v1669, %v1668
      %v1680 = vpack.c.b16 %v1671, %v1670
      %v1681 = vpack.c.b16 %v1673, %v1672
      %1690 = vmatprep.subr.bf16.mxu0 0
      %1691 = vmatpush1.bf16.msra.mxu0 %v1681
      %1692 = vmatprep.subr.bf16.mxu0 0
      %1693 = vmatpush1.bf16.msra.mxu0 %v1680
      %1694 = vmatprep.subr.bf16.mxu0 0
      %1695 = vmatpush1.bf16.msra.mxu0 %v1679
      %1696 = vmatprep.subr.bf16.mxu0 0
      %1697 = vmatpush1.bf16.msra.mxu0 %v1678
      %1698 = vmatprep.subr.bf16.mxu0 0
      %1699 = vmatpush1.bf16.msra.mxu0 %v1677
      %1700 = vmatprep.subr.bf16.mxu0 0
      %1701 = vmatpush1.bf16.msra.mxu0 %v1676
      %1702 = vmatprep.subr.bf16.mxu0 0
      %1703 = vmatpush1.bf16.msra.mxu0 %v1675
      %1704 = vmatprep.subr.bf16.mxu0 0
      %1705 = vmatpush1.bf16.msra.mxu0 %v1674
      %1706 = vmatprep.subr.bf16.mxu0 0
      %1707 = vmatpush2.bf16.msra.mxu0 0
      %1708 = vmatprep.subr.bf16.mxu0 0
      %1709 = vmatpush2.bf16.msra.mxu0 0
      %1710 = vmatprep.subr.bf16.mxu0 0
      %1711 = vmatpush2.bf16.msra.mxu0 0
      %1712 = vmatprep.subr.bf16.mxu0 0
      %1713 = vmatpush2.bf16.msra.mxu0 0
      %1714 = vmatprep.subr.bf16.mxu0 0
      %1715 = vmatpush2.bf16.msra.mxu0 0
      %1716 = vmatprep.subr.bf16.mxu0 0
      %1717 = vmatpush2.bf16.msra.mxu0 0
      %1718 = vmatprep.subr.bf16.mxu0 0
      %1719 = vmatpush2.bf16.msra.mxu0 0
      %1720 = vmatprep.subr.bf16.mxu0 0
      %1721 = vmatpush2.bf16.msra.mxu0 0
      %1722 = vmatprep.mubr.bf16.mxu0 0
      %1723 = vmatmul.mubr.bf16.gmra.mxu0 %v1634
      %v1724 = vpop.f32.mrf.mxu0
      %v1725 = vadd.f32 0.0, %v1724
      %v1726 = vpop.f32.mrf.mxu0
      %v1727 = vpop.f32.mrf.mxu0
      %v1728 = vadd.f32 0.0, %v1727
      %v1729 = vpop.f32.mrf.mxu0
      %1730 = vmatprep.mubr.bf16.mxu0 0
      %1731 = vmatmul.mubr.bf16.gmra.mxu0 %v1635
      %v1732 = vpop.f32.mrf.mxu0
      %v1733 = vadd.f32 0.0, %v1732
      %v1734 = vpop.f32.mrf.mxu0
      %v1735 = vpop.f32.mrf.mxu0
      %v1736 = vadd.f32 0.0, %v1735
      %v1737 = vpop.f32.mrf.mxu0
      %1738 = vmatprep.mubr.bf16.mxu0 0
      %1739 = vmatmul.mubr.bf16.gmra.mxu0 %v1636
      %v1740 = vpop.f32.mrf.mxu0
      %v1741 = vadd.f32 0.0, %v1740
      %v1742 = vpop.f32.mrf.mxu0
      %v1743 = vpop.f32.mrf.mxu0
      %v1744 = vadd.f32 0.0, %v1743
      %v1745 = vpop.f32.mrf.mxu0
      %1746 = vmatprep.mubr.bf16.mxu0 0
      %1747 = vmatmul.mubr.bf16.gmra.mxu0 %v1637
      %v1748 = vpop.f32.mrf.mxu0
      %v1749 = vadd.f32 0.0, %v1748
      %v1750 = vpop.f32.mrf.mxu0
      %v1751 = vpop.f32.mrf.mxu0
      %v1752 = vadd.f32 0.0, %v1751
      %v1753 = vpop.f32.mrf.mxu0
      %1754 = vdwg.mxu0
      %v1755 = vadd.f32 %v1584, %v1725
      %v1756 = vadd.f32 %v1585, %v1728
      %v1757 = vadd.f32 %v1586, %v1733
      %v1758 = vadd.f32 %v1587, %v1736
      %v1759 = vadd.f32 %v1588, %v1741
      %v1760 = vadd.f32 %v1589, %v1744
      %v1761 = vadd.f32 %v1590, %v1749
      %v1762 = vadd.f32 %v1591, %v1752
      %s1763 = scalar_lea.vmem %s336, 8
      %v1764 = vld [vmem:[%s1763] sm:$0xf]
      %v1765 = vld [vmem:[%s1763 + $0x8] sm:$0xf]
      %v1766 = vld [vmem:[%s1763 + $0x10] sm:$0xf]
      %v1767 = vld [vmem:[%s1763 + $0x18] sm:$0xf]
      %v1768 = vld [vmem:[%s1763 + $0x20] sm:$0xf]
      %v1769 = vld [vmem:[%s1763 + $0x28] sm:$0xf]
      %v1770 = vld [vmem:[%s1763 + $0x30] sm:$0xf]
      %v1771 = vld [vmem:[%s1763 + $0x38] sm:$0xf]
      %s1772 = scalar_lea.vmem %s4, 448
      %v1773 = vld [vmem:[%s1772] sm:$0xf]
      %v1774 = vld [vmem:[%s1772 + $0x4] sm:$0xf]
      %v1775 = vld [vmem:[%s1772 + $0x8] sm:$0xf]
      %v1776 = vld [vmem:[%s1772 + $0xc] sm:$0xf]
      %v1777 = vld [vmem:[%s1772 + $0x10] sm:$0xf]
      %v1778 = vld [vmem:[%s1772 + $0x14] sm:$0xf]
      %v1779 = vld [vmem:[%s1772 + $0x18] sm:$0xf]
      %v1780 = vld [vmem:[%s1772 + $0x1c] sm:$0xf]
      %v1781 = vld [vmem:[%s1772 + $0x20] sm:$0xf]
      %v1782 = vld [vmem:[%s1772 + $0x24] sm:$0xf]
      %v1783 = vld [vmem:[%s1772 + $0x28] sm:$0xf]
      %v1784 = vld [vmem:[%s1772 + $0x2c] sm:$0xf]
      %v1785 = vld [vmem:[%s1772 + $0x30] sm:$0xf]
      %v1786 = vld [vmem:[%s1772 + $0x34] sm:$0xf]
      %v1787 = vld [vmem:[%s1772 + $0x38] sm:$0xf]
      %v1788 = vld [vmem:[%s1772 + $0x3c] sm:$0xf]
      %v1797 = vunpack.c.l.b16 %v1764
      %v1798 = vunpack.c.l.b16 %v1765
      %v1799 = vunpack.c.l.b16 %v1766
      %v1800 = vunpack.c.l.b16 %v1767
      %v1801 = vunpack.c.l.b16 %v1768
      %v1802 = vunpack.c.l.b16 %v1769
      %v1803 = vunpack.c.l.b16 %v1770
      %v1804 = vunpack.c.l.b16 %v1771
      %v1805 = vpack.c.b16 %v1798, %v1797
      %v1806 = vpack.c.b16 %v1800, %v1799
      %v1807 = vpack.c.b16 %v1802, %v1801
      %v1808 = vpack.c.b16 %v1804, %v1803
      %v1829 = vunpack.c.l.b16 %v1773
      %v1830 = vunpack.c.l.b16 %v1774
      %v1831 = vunpack.c.l.b16 %v1775
      %v1832 = vunpack.c.l.b16 %v1776
      %v1833 = vunpack.c.l.b16 %v1777
      %v1834 = vunpack.c.l.b16 %v1778
      %v1835 = vunpack.c.l.b16 %v1779
      %v1836 = vunpack.c.l.b16 %v1780
      %v1837 = vunpack.c.l.b16 %v1781
      %v1838 = vunpack.c.l.b16 %v1782
      %v1839 = vunpack.c.l.b16 %v1783
      %v1840 = vunpack.c.l.b16 %v1784
      %v1841 = vunpack.c.l.b16 %v1785
      %v1842 = vunpack.c.l.b16 %v1786
      %v1843 = vunpack.c.l.b16 %v1787
      %v1844 = vunpack.c.l.b16 %v1788
      %v1845 = vpack.c.b16 %v1830, %v1829
      %v1846 = vpack.c.b16 %v1832, %v1831
      %v1847 = vpack.c.b16 %v1834, %v1833
      %v1848 = vpack.c.b16 %v1836, %v1835
      %v1849 = vpack.c.b16 %v1838, %v1837
      %v1850 = vpack.c.b16 %v1840, %v1839
      %v1851 = vpack.c.b16 %v1842, %v1841
      %v1852 = vpack.c.b16 %v1844, %v1843
      %1861 = vmatprep.subr.bf16.mxu0 0
      %1862 = vmatpush1.bf16.msra.mxu0 %v1852
      %1863 = vmatprep.subr.bf16.mxu0 0
      %1864 = vmatpush1.bf16.msra.mxu0 %v1851
      %1865 = vmatprep.subr.bf16.mxu0 0
      %1866 = vmatpush1.bf16.msra.mxu0 %v1850
      %1867 = vmatprep.subr.bf16.mxu0 0
      %1868 = vmatpush1.bf16.msra.mxu0 %v1849
      %1869 = vmatprep.subr.bf16.mxu0 0
      %1870 = vmatpush1.bf16.msra.mxu0 %v1848
      %1871 = vmatprep.subr.bf16.mxu0 0
      %1872 = vmatpush1.bf16.msra.mxu0 %v1847
      %1873 = vmatprep.subr.bf16.mxu0 0
      %1874 = vmatpush1.bf16.msra.mxu0 %v1846
      %1875 = vmatprep.subr.bf16.mxu0 0
      %1876 = vmatpush1.bf16.msra.mxu0 %v1845
      %1877 = vmatprep.subr.bf16.mxu0 0
      %1878 = vmatpush2.bf16.msra.mxu0 0
      %1879 = vmatprep.subr.bf16.mxu0 0
      %1880 = vmatpush2.bf16.msra.mxu0 0
      %1881 = vmatprep.subr.bf16.mxu0 0
      %1882 = vmatpush2.bf16.msra.mxu0 0
      %1883 = vmatprep.subr.bf16.mxu0 0
      %1884 = vmatpush2.bf16.msra.mxu0 0
      %1885 = vmatprep.subr.bf16.mxu0 0
      %1886 = vmatpush2.bf16.msra.mxu0 0
      %1887 = vmatprep.subr.bf16.mxu0 0
      %1888 = vmatpush2.bf16.msra.mxu0 0
      %1889 = vmatprep.subr.bf16.mxu0 0
      %1890 = vmatpush2.bf16.msra.mxu0 0
      %1891 = vmatprep.subr.bf16.mxu0 0
      %1892 = vmatpush2.bf16.msra.mxu0 0
      %1893 = vmatprep.mubr.bf16.mxu0 0
      %1894 = vmatmul.mubr.bf16.gmra.mxu0 %v1805
      %v1895 = vpop.f32.mrf.mxu0
      %v1896 = vadd.f32 0.0, %v1895
      %v1897 = vpop.f32.mrf.mxu0
      %v1898 = vpop.f32.mrf.mxu0
      %v1899 = vadd.f32 0.0, %v1898
      %v1900 = vpop.f32.mrf.mxu0
      %1901 = vmatprep.mubr.bf16.mxu0 0
      %1902 = vmatmul.mubr.bf16.gmra.mxu0 %v1806
      %v1903 = vpop.f32.mrf.mxu0
      %v1904 = vadd.f32 0.0, %v1903
      %v1905 = vpop.f32.mrf.mxu0
      %v1906 = vpop.f32.mrf.mxu0
      %v1907 = vadd.f32 0.0, %v1906
      %v1908 = vpop.f32.mrf.mxu0
      %1909 = vmatprep.mubr.bf16.mxu0 0
      %1910 = vmatmul.mubr.bf16.gmra.mxu0 %v1807
      %v1911 = vpop.f32.mrf.mxu0
      %v1912 = vadd.f32 0.0, %v1911
      %v1913 = vpop.f32.mrf.mxu0
      %v1914 = vpop.f32.mrf.mxu0
      %v1915 = vadd.f32 0.0, %v1914
      %v1916 = vpop.f32.mrf.mxu0
      %1917 = vmatprep.mubr.bf16.mxu0 0
      %1918 = vmatmul.mubr.bf16.gmra.mxu0 %v1808
      %v1919 = vpop.f32.mrf.mxu0
      %v1920 = vadd.f32 0.0, %v1919
      %v1921 = vpop.f32.mrf.mxu0
      %v1922 = vpop.f32.mrf.mxu0
      %v1923 = vadd.f32 0.0, %v1922
      %v1924 = vpop.f32.mrf.mxu0
      %1925 = vdwg.mxu0
      %v1926 = vadd.f32 %v1755, %v1896
      %v1927 = vadd.f32 %v1756, %v1899
      %v1928 = vadd.f32 %v1757, %v1904
      %v1929 = vadd.f32 %v1758, %v1907
      %v1930 = vadd.f32 %v1759, %v1912
      %v1931 = vadd.f32 %v1760, %v1915
      %v1932 = vadd.f32 %v1761, %v1920
      %v1933 = vadd.f32 %v1762, %v1923
      %v1934 = vld [vmem:[%s1592] sm:$0xf]
      %v1935 = vld [vmem:[%s1592 + $0x4] sm:$0x1]
      %v1936 = vld [vmem:[%s1592 + $0x8] sm:$0xf]
      %v1937 = vld [vmem:[%s1592 + $0xc] sm:$0x1]
      %v1938 = vld [vmem:[%s1592 + $0x10] sm:$0xf]
      %v1939 = vld [vmem:[%s1592 + $0x14] sm:$0x1]
      %v1940 = vld [vmem:[%s1592 + $0x18] sm:$0xf]
      %v1941 = vld [vmem:[%s1592 + $0x1c] sm:$0x1]
      %v1942 = vld [vmem:[%s1592 + $0x20] sm:$0xf]
      %v1943 = vld [vmem:[%s1592 + $0x24] sm:$0x1]
      %v1944 = vld [vmem:[%s1592 + $0x28] sm:$0xf]
      %v1945 = vld [vmem:[%s1592 + $0x2c] sm:$0x1]
      %v1946 = vld [vmem:[%s1592 + $0x30] sm:$0xf]
      %v1947 = vld [vmem:[%s1592 + $0x34] sm:$0x1]
      %v1948 = vld [vmem:[%s1592 + $0x38] sm:$0xf]
      %v1949 = vld [vmem:[%s1592 + $0x3c] sm:$0x1]
      %v1951 = vshrl.u32 %v1934, 16
      %v1953 = vrot.slane %v1951, 4
      %v1954 = vshll.u32 %v1934, 16
      %v1956 = vrot.slane %v1954, 5
      %v1957 = vor.u32 %v1953, %v1956
      %v1958 = vrot.slane %v1957, 4
      %v1960 = vshll.u32 %v1935, 16
      %v1962 = vrot.slane %v1960, 5
      %v1963 = vsel %vm703, %v1958, %v1962
      %v1965 = vshrl.u32 %v1936, 16
      %v1967 = vrot.slane %v1965, 4
      %v1968 = vshll.u32 %v1936, 16
      %v1970 = vrot.slane %v1968, 5
      %v1971 = vor.u32 %v1967, %v1970
      %v1972 = vrot.slane %v1971, 4
      %v1974 = vshll.u32 %v1937, 16
      %v1976 = vrot.slane %v1974, 5
      %v1977 = vsel %vm703, %v1972, %v1976
      %v1979 = vshrl.u32 %v1938, 16
      %v1981 = vrot.slane %v1979, 4
      %v1982 = vshll.u32 %v1938, 16
      %v1984 = vrot.slane %v1982, 5
      %v1985 = vor.u32 %v1981, %v1984
      %v1986 = vrot.slane %v1985, 4
      %v1988 = vshll.u32 %v1939, 16
      %v1990 = vrot.slane %v1988, 5
      %v1991 = vsel %vm703, %v1986, %v1990
      %v1993 = vshrl.u32 %v1940, 16
      %v1995 = vrot.slane %v1993, 4
      %v1996 = vshll.u32 %v1940, 16
      %v1998 = vrot.slane %v1996, 5
      %v1999 = vor.u32 %v1995, %v1998
      %v2000 = vrot.slane %v1999, 4
      %v2002 = vshll.u32 %v1941, 16
      %v2004 = vrot.slane %v2002, 5
      %v2005 = vsel %vm703, %v2000, %v2004
      %v2007 = vshrl.u32 %v1942, 16
      %v2009 = vrot.slane %v2007, 4
      %v2010 = vshll.u32 %v1942, 16
      %v2012 = vrot.slane %v2010, 5
      %v2013 = vor.u32 %v2009, %v2012
      %v2014 = vrot.slane %v2013, 4
      %v2016 = vshll.u32 %v1943, 16
      %v2018 = vrot.slane %v2016, 5
      %v2019 = vsel %vm703, %v2014, %v2018
      %v2021 = vshrl.u32 %v1944, 16
      %v2023 = vrot.slane %v2021, 4
      %v2024 = vshll.u32 %v1944, 16
      %v2026 = vrot.slane %v2024, 5
      %v2027 = vor.u32 %v2023, %v2026
      %v2028 = vrot.slane %v2027, 4
      %v2030 = vshll.u32 %v1945, 16
      %v2032 = vrot.slane %v2030, 5
      %v2033 = vsel %vm703, %v2028, %v2032
      %v2035 = vshrl.u32 %v1946, 16
      %v2037 = vrot.slane %v2035, 4
      %v2038 = vshll.u32 %v1946, 16
      %v2040 = vrot.slane %v2038, 5
      %v2041 = vor.u32 %v2037, %v2040
      %v2042 = vrot.slane %v2041, 4
      %v2044 = vshll.u32 %v1947, 16
      %v2046 = vrot.slane %v2044, 5
      %v2047 = vsel %vm703, %v2042, %v2046
      %v2049 = vshrl.u32 %v1948, 16
      %v2051 = vrot.slane %v2049, 4
      %v2052 = vshll.u32 %v1948, 16
      %v2054 = vrot.slane %v2052, 5
      %v2055 = vor.u32 %v2051, %v2054
      %v2056 = vrot.slane %v2055, 4
      %v2058 = vshll.u32 %v1949, 16
      %v2060 = vrot.slane %v2058, 5
      %v2061 = vsel %vm703, %v2056, %v2060
      %s2062 = scalar_lea.vmem %s4, 512
      %v2063 = vld [vmem:[%s2062] sm:$0xf]
      %v2064 = vld [vmem:[%s2062 + $0x4] sm:$0xf]
      %v2065 = vld [vmem:[%s2062 + $0x8] sm:$0xf]
      %v2066 = vld [vmem:[%s2062 + $0xc] sm:$0xf]
      %v2067 = vld [vmem:[%s2062 + $0x10] sm:$0xf]
      %v2068 = vld [vmem:[%s2062 + $0x14] sm:$0xf]
      %v2069 = vld [vmem:[%s2062 + $0x18] sm:$0xf]
      %v2070 = vld [vmem:[%s2062 + $0x1c] sm:$0xf]
      %v2071 = vld [vmem:[%s2062 + $0x20] sm:$0xf]
      %v2072 = vld [vmem:[%s2062 + $0x24] sm:$0xf]
      %v2073 = vld [vmem:[%s2062 + $0x28] sm:$0xf]
      %v2074 = vld [vmem:[%s2062 + $0x2c] sm:$0xf]
      %v2075 = vld [vmem:[%s2062 + $0x30] sm:$0xf]
      %v2076 = vld [vmem:[%s2062 + $0x34] sm:$0xf]
      %v2077 = vld [vmem:[%s2062 + $0x38] sm:$0xf]
      %v2078 = vld [vmem:[%s2062 + $0x3c] sm:$0xf]
      %v2079 = vunpack.c.l.b16 %v1963
      %v2080 = vunpack.c.l.b16 %v1977
      %v2081 = vunpack.c.l.b16 %v1991
      %v2082 = vunpack.c.l.b16 %v2005
      %v2083 = vunpack.c.l.b16 %v2019
      %v2084 = vunpack.c.l.b16 %v2033
      %v2085 = vunpack.c.l.b16 %v2047
      %v2086 = vunpack.c.l.b16 %v2061
      %v2087 = vpack.c.b16 %v2080, %v2079
      %v2088 = vpack.c.b16 %v2082, %v2081
      %v2089 = vpack.c.b16 %v2084, %v2083
      %v2090 = vpack.c.b16 %v2086, %v2085
      %v2111 = vunpack.c.l.b16 %v2063
      %v2112 = vunpack.c.l.b16 %v2064
      %v2113 = vunpack.c.l.b16 %v2065
      %v2114 = vunpack.c.l.b16 %v2066
      %v2115 = vunpack.c.l.b16 %v2067
      %v2116 = vunpack.c.l.b16 %v2068
      %v2117 = vunpack.c.l.b16 %v2069
      %v2118 = vunpack.c.l.b16 %v2070
      %v2119 = vunpack.c.l.b16 %v2071
      %v2120 = vunpack.c.l.b16 %v2072
      %v2121 = vunpack.c.l.b16 %v2073
      %v2122 = vunpack.c.l.b16 %v2074
      %v2123 = vunpack.c.l.b16 %v2075
      %v2124 = vunpack.c.l.b16 %v2076
      %v2125 = vunpack.c.l.b16 %v2077
      %v2126 = vunpack.c.l.b16 %v2078
      %v2127 = vpack.c.b16 %v2112, %v2111
      %v2128 = vpack.c.b16 %v2114, %v2113
      %v2129 = vpack.c.b16 %v2116, %v2115
      %v2130 = vpack.c.b16 %v2118, %v2117
      %v2131 = vpack.c.b16 %v2120, %v2119
      %v2132 = vpack.c.b16 %v2122, %v2121
      %v2133 = vpack.c.b16 %v2124, %v2123
      %v2134 = vpack.c.b16 %v2126, %v2125
      %2143 = vmatprep.subr.bf16.mxu0 0
      %2144 = vmatpush1.bf16.msra.mxu0 %v2134
      %2145 = vmatprep.subr.bf16.mxu0 0
      %2146 = vmatpush1.bf16.msra.mxu0 %v2133
      %2147 = vmatprep.subr.bf16.mxu0 0
      %2148 = vmatpush1.bf16.msra.mxu0 %v2132
      %2149 = vmatprep.subr.bf16.mxu0 0
      %2150 = vmatpush1.bf16.msra.mxu0 %v2131
      %2151 = vmatprep.subr.bf16.mxu0 0
      %2152 = vmatpush1.bf16.msra.mxu0 %v2130
      %2153 = vmatprep.subr.bf16.mxu0 0
      %2154 = vmatpush1.bf16.msra.mxu0 %v2129
      %2155 = vmatprep.subr.bf16.mxu0 0
      %2156 = vmatpush1.bf16.msra.mxu0 %v2128
      %2157 = vmatprep.subr.bf16.mxu0 0
      %2158 = vmatpush1.bf16.msra.mxu0 %v2127
      %2159 = vmatprep.subr.bf16.mxu0 0
      %2160 = vmatpush2.bf16.msra.mxu0 0
      %2161 = vmatprep.subr.bf16.mxu0 0
      %2162 = vmatpush2.bf16.msra.mxu0 0
      %2163 = vmatprep.subr.bf16.mxu0 0
      %2164 = vmatpush2.bf16.msra.mxu0 0
      %2165 = vmatprep.subr.bf16.mxu0 0
      %2166 = vmatpush2.bf16.msra.mxu0 0
      %2167 = vmatprep.subr.bf16.mxu0 0
      %2168 = vmatpush2.bf16.msra.mxu0 0
      %2169 = vmatprep.subr.bf16.mxu0 0
      %2170 = vmatpush2.bf16.msra.mxu0 0
      %2171 = vmatprep.subr.bf16.mxu0 0
      %2172 = vmatpush2.bf16.msra.mxu0 0
      %2173 = vmatprep.subr.bf16.mxu0 0
      %2174 = vmatpush2.bf16.msra.mxu0 0
      %2175 = vmatprep.mubr.bf16.mxu0 0
      %2176 = vmatmul.mubr.bf16.gmra.mxu0 %v2087
      %v2177 = vpop.f32.mrf.mxu0
      %v2178 = vadd.f32 0.0, %v2177
      %v2179 = vpop.f32.mrf.mxu0
      %v2180 = vpop.f32.mrf.mxu0
      %v2181 = vadd.f32 0.0, %v2180
      %v2182 = vpop.f32.mrf.mxu0
      %2183 = vmatprep.mubr.bf16.mxu0 0
      %2184 = vmatmul.mubr.bf16.gmra.mxu0 %v2088
      %v2185 = vpop.f32.mrf.mxu0
      %v2186 = vadd.f32 0.0, %v2185
      %v2187 = vpop.f32.mrf.mxu0
      %v2188 = vpop.f32.mrf.mxu0
      %v2189 = vadd.f32 0.0, %v2188
      %v2190 = vpop.f32.mrf.mxu0
      %2191 = vmatprep.mubr.bf16.mxu0 0
      %2192 = vmatmul.mubr.bf16.gmra.mxu0 %v2089
      %v2193 = vpop.f32.mrf.mxu0
      %v2194 = vadd.f32 0.0, %v2193
      %v2195 = vpop.f32.mrf.mxu0
      %v2196 = vpop.f32.mrf.mxu0
      %v2197 = vadd.f32 0.0, %v2196
      %v2198 = vpop.f32.mrf.mxu0
      %2199 = vmatprep.mubr.bf16.mxu0 0
      %2200 = vmatmul.mubr.bf16.gmra.mxu0 %v2090
      %v2201 = vpop.f32.mrf.mxu0
      %v2202 = vadd.f32 0.0, %v2201
      %v2203 = vpop.f32.mrf.mxu0
      %v2204 = vpop.f32.mrf.mxu0
      %v2205 = vadd.f32 0.0, %v2204
      %v2206 = vpop.f32.mrf.mxu0
      %2207 = vdwg.mxu0
      %v2208 = vadd.f32 %v1926, %v2178
      %v2209 = vadd.f32 %v1927, %v2181
      %v2210 = vadd.f32 %v1928, %v2186
      %v2211 = vadd.f32 %v1929, %v2189
      %v2212 = vadd.f32 %v1930, %v2194
      %v2213 = vadd.f32 %v1931, %v2197
      %v2214 = vadd.f32 %v1932, %v2202
      %v2215 = vadd.f32 %v1933, %v2205
      %2216 = vst [vmem:[%s351] sm:$0xff] %v2208
      %2217 = vst [vmem:[%s351 + $0x8] sm:$0xff] %v2209
      %2218 = vst [vmem:[%s351 + $0x10] sm:$0xff] %v2210
      %2219 = vst [vmem:[%s351 + $0x18] sm:$0xff] %v2211
      %2220 = vst [vmem:[%s351 + $0x20] sm:$0xff] %v2212
      %2221 = vst [vmem:[%s351 + $0x28] sm:$0xff] %v2213
      %2222 = vst [vmem:[%s351 + $0x30] sm:$0xff] %v2214
      %2223 = vst [vmem:[%s351 + $0x38] sm:$0xff] %v2215
      %v2224 = vadd.f32 %v2208, %v2209
      %v2225 = vadd.f32 %v2224, %v2210
      %v2226 = vadd.f32 %v2225, %v2211
      %v2227 = vadd.f32 %v2226, %v2212
      %v2228 = vadd.f32 %v2227, %v2213
      %v2229 = vadd.f32 %v2228, %v2214
      %v2230 = vadd.f32 %v2229, %v2215
      %v2231 = vrot.slane %v2230, 4
      %v2232 = vadd.f32 %v2230, %v2231
      %v2233 = vrot.slane %v2232, 2
      %v2234 = vadd.f32 %v2232, %v2233
      %v2235 = vrot.slane %v2234, 1
      %v2236 = vadd.f32 %v2234, %v2235
      %v2237 = vmul.f32 %v2208, %v2208
      %v2238 = vmul.f32 %v2209, %v2209
      %v2239 = vmul.f32 %v2210, %v2210
      %v2240 = vmul.f32 %v2211, %v2211
      %v2241 = vmul.f32 %v2212, %v2212
      %v2242 = vmul.f32 %v2213, %v2213
      %v2243 = vmul.f32 %v2214, %v2214
      %v2244 = vmul.f32 %v2215, %v2215
      %v2245 = vadd.f32 %v2237, %v2238
      %v2246 = vadd.f32 %v2245, %v2239
      %v2247 = vadd.f32 %v2246, %v2240
      %v2248 = vadd.f32 %v2247, %v2241
      %v2249 = vadd.f32 %v2248, %v2242
      %v2250 = vadd.f32 %v2249, %v2243
      %v2251 = vadd.f32 %v2250, %v2244
      %v2252 = vrot.slane %v2251, 4
      %v2253 = vadd.f32 %v2251, %v2252
      %v2254 = vrot.slane %v2253, 2
      %v2255 = vadd.f32 %v2253, %v2254
      %v2256 = vrot.slane %v2255, 1
      %v2257 = vadd.f32 %v2255, %v2256
      %2258 = vst [vmem:[%s356] sm:$0xff] %v2236
      %2259 = vst [vmem:[%s360] sm:$0xff] %v2257
      %s2260 = smul.u32 8, %s19
      %p2261 = scmp.lt.s32.totalorder %s2260, 15
      %s2262 = scalar_select %p2261, %s2260, 15
      %s2263 = smul.addr %s2262, 8
      %s2264 = scalar_lea.vmem %s5, %s2263
      %p2265 = scmp.lt.s32.totalorder %s19, 1
      %s2266 = scalar_select %p2265, %s19, 1
      %s2267 = smul.addr %s2266, 8
      %s2268 = scalar_lea.vmem %s6, %s2267
      %p2269 = scmp.lt.s32.totalorder %s19, 1
      %s2270 = scalar_select %p2269, %s19, 1
      %s2271 = smul.addr %s2270, 8
      %s2272 = scalar_lea.vmem %s7, %s2271
      // Predicated region
      $region41: #{basic_block_forward.5} parent=39 // pred_check
        %p2273 = pneg %p162
      $region42: #{basic_block_forward.5} parent=39 // pred_check_branch
        %2275 = sbr.rel (%p2273) target = $region44
      $region43: #{basic_block_forward.5} parent=39 // pred_region
        %s2276 = smul.u32 8, %s19
      $region44: #{basic_block_forward.5} parent=39 // pred_fallthru
        _
      // Predicated region
      $region45: #{basic_block_forward.5} parent=39 // pred_check
        %p2277 = pneg %p188
      $region46: #{basic_block_forward.5} parent=39 // pred_check_branch
        %2279 = sbr.rel (%p2277) target = $region48
      $region47: #{basic_block_forward.5} parent=39 // pred_region
        _
      $region48: #{basic_block_forward.5} parent=39 // pred_fallthru
        _
      // Predicated region
      $region49: #{basic_block_forward.5} parent=39 // pred_check
        %p2280 = pneg %p214
      $region50: #{basic_block_forward.5} parent=39 // pred_check_branch
        %2282 = sbr.rel (%p2280) target = $region52
      $region51: #{basic_block_forward.5} parent=39 // pred_region
        _
      $region52: #{basic_block_forward.5} parent=39 // pred_fallthru
        _
    $region40: #{basic_block_forward.5} parent=5 // pred_fallthru
      _
    %p2283 = scmp.le.s32.totalorder 2, %s14
    // Predicated region
    $region53: #{basic_block_forward.5} parent=5 // pred_check
      %p2284 = pneg %p2283
    $region54: #{basic_block_forward.5} parent=5 // pred_check_branch
      %2286 = sbr.rel (%p2284) target = $region56
    $region55: #{basic_block_forward.5} parent=5 // pred_region
      %s2287 = ssub.s32 %s14, 2
      // Predicated region
      $region57: #{basic_block_forward.5} parent=55 // pred_check
        %p2288 = pneg %p168
      $region58: #{basic_block_forward.5} parent=55 // pred_check_branch
        %2290 = sbr.rel (%p2288) target = $region60
      $region59: #{basic_block_forward.5} parent=55 // pred_region
        %s2291 = smul.u32 8, %s20
        %p2292 = scmp.lt.s32.totalorder %s2291, 15
        %s2293 = scalar_select %p2292, %s2291, 15
        %s2294 = smul.addr %s2293, 8
        %s2295 = scalar_lea.vmem %s5, %s2294
      $region60: #{basic_block_forward.5} parent=55 // pred_fallthru
        _
      // Predicated region
      $region61: #{basic_block_forward.5} parent=55 // pred_check
        %p2296 = pneg %p194
      $region62: #{basic_block_forward.5} parent=55 // pred_check_branch
        %2298 = sbr.rel (%p2296) target = $region64
      $region63: #{basic_block_forward.5} parent=55 // pred_region
        %p2299 = scmp.lt.s32.totalorder %s20, 1
        %s2300 = scalar_select %p2299, %s20, 1
        %s2301 = smul.addr %s2300, 8
        %s2302 = scalar_lea.vmem %s6, %s2301
      $region64: #{basic_block_forward.5} parent=55 // pred_fallthru
        _
      // Predicated region
      $region65: #{basic_block_forward.5} parent=55 // pred_check
        %p2303 = pneg %p220
      $region66: #{basic_block_forward.5} parent=55 // pred_check_branch
        %2305 = sbr.rel (%p2303) target = $region68
      $region67: #{basic_block_forward.5} parent=55 // pred_region
        %p2306 = scmp.lt.s32.totalorder %s20, 1
        %s2307 = scalar_select %p2306, %s20, 1
        %s2308 = smul.addr %s2307, 8
        %s2309 = scalar_lea.vmem %s7, %s2308
      $region68: #{basic_block_forward.5} parent=55 // pred_fallthru
        _
    $region56: #{basic_block_forward.5} parent=5 // pred_fallthru
      _
  $region6: #{basic_block_forward.5} parent=0 // loop_footer
    %s18 = sadd.s32 1, %s14
  $region7: #{basic_block_forward.5} parent=0 // loop_footer_branch
    %13 = sbr.rel target = $region3
  $region8: #{basic_block_forward.5} parent=0 // loop_exit
    _

// kernel: basic_block_forward.7
$region0: #{basic_block_forward.7}
  #allocation0 [shape = 'u32[]', space=smem, size = 0x4, offset = 0x4, fixed_abs, tag = 'smem constant byte address 0x4 - core index']
  #allocation1 [shape = 'u32[144,128]{1,0:T(1,128)}', space=vmem, size = 0x12000, scoped, tag = 'internal scratch']
  %s0 = inlined_call_operand.vmem [shape: bf16[2,10,10,128], index: 0, kind: input, shape index: {}]
  %s1 = inlined_call_operand.vmem [shape: bf16[9,128,128], index: 1, kind: input, shape index: {}]
  %s2 = inlined_call_operand.vmem [shape: f32[128,128], index: 2, kind: output, shape index: {0}]
  %s3 = inlined_call_operand.vmem [shape: f32[2,8,128], index: 3, kind: output, shape index: {1}]
  %s4 = inlined_call_operand.vmem [shape: f32[2,8,128], index: 4, kind: output, shape index: {2}]
  %5 = xla_tuple %s2, %s3, %s4
  %s6 = sld [smem:[#allocation0]]
  $region57: #{basic_block_forward.7} parent=0
    _
  %s8 = ssub.s32 1, %s6
  %s9 = scalar_select 0, %s8, %s6
  loop: start=0, step=1, limit=4
  $region2: #{basic_block_forward.7} parent=0 // loop_pre_header
    _
  $region3: #{basic_block_forward.7} parent=0 // loop_header
    %s11 = sphi 0, %s15
    %p12 = scmp.ge.s32.totalorder %s11, 4
    %s21 = sphi 0, %s23
    %s24 = sphi 0, %s21
    %s25 = sphi 0, %s24
    %s41 = sphi 0, %s25
    %s45 = sphi 0, %s45
    %s47 = sphi 0, %s45
    %s48 = sphi 0, %s47
    %s62 = sphi 0, %s48
    %s68 = sphi 0, %s70
    %s71 = sphi 0, %s68
    %s72 = sphi 0, %s71
    %s88 = sphi 0, %s72
    %s94 = sphi 0, %s96
    %s97 = sphi 0, %s94
    %s98 = sphi 0, %s97
    %s114 = sphi 0, %s98
    %s120 = sphi 0, %s122
    %s123 = sphi 0, %s120
    %s124 = sphi 0, %s123
    %s140 = sphi 0, %s124
  $region4: #{basic_block_forward.7} parent=0 // loop_header_branch
    %14 = sbr.rel (%p12) target = $region8
  $region5: #{basic_block_forward.7} parent=0 // loop_body
    %s16 = ssub.s32 %s11, 1
    %s17 = ssub.s32 %s11, 2
    %s18 = sadd.s32 %s11, 1
    %s19 = ssub.s32 %s11, %s18
    %p20 = scmp.eq.s32.totalorder %s19, 0
    %s22 = sadd.s32 %s21, 1
    %s23 = scalar_select %p20, %s21, %s22
    %p26 = pneg %p20
    %p27 = scmp.eq.s32.totalorder %s11, 1
    %p28 = por %p26, %p27
    %p29 = scmp.ne.s32.totalorder %s21, %s24
    %p30 = scmp.eq.s32.totalorder %s11, 0
    %p31 = por %p29, %p30
    %p32 = scmp.ne.s32.totalorder %s21, %s24
    %p33 = scmp.eq.s32.totalorder %s16, 1
    %p34 = por %p32, %p33
    %p35 = scmp.ne.s32.totalorder %s24, %s25
    %p36 = scmp.eq.s32.totalorder %s16, 0
    %p37 = por %p35, %p36
    %p38 = scmp.ne.s32.totalorder %s24, %s25
    %p39 = scmp.eq.s32.totalorder %s17, 1
    %p40 = por %p38, %p39
    %p42 = scmp.ne.s32.totalorder %s25, %s41
    %p43 = scmp.eq.s32.totalorder %s17, 0
    %p44 = por %p42, %p43
    %s46 = sadd.s32 %s45, 1
    %p49 = scmp.eq.s32.totalorder %s11, 1
    %p50 = scmp.ne.s32.totalorder %s45, %s47
    %p51 = scmp.eq.s32.totalorder %s11, 0
    %p52 = por %p50, %p51
    %p53 = scmp.ne.s32.totalorder %s45, %s47
    %p54 = scmp.eq.s32.totalorder %s16, 1
    %p55 = por %p53, %p54
    %p56 = scmp.ne.s32.totalorder %s47, %s48
    %p57 = scmp.eq.s32.totalorder %s16, 0
    %p58 = por %p56, %p57
    %p59 = scmp.ne.s32.totalorder %s47, %s48
    %p60 = scmp.eq.s32.totalorder %s17, 1
    %p61 = por %p59, %p60
    %p63 = scmp.ne.s32.totalorder %s48, %s62
    %p64 = scmp.eq.s32.totalorder %s17, 0
    %p65 = por %p63, %p64
    %s66 = ssub.s32 %s11, %s18
    %p67 = scmp.eq.s32.totalorder %s66, 0
    %s69 = sadd.s32 %s68, 1
    %s70 = scalar_select %p67, %s68, %s69
    %p73 = pneg %p67
    %p74 = scmp.eq.s32.totalorder %s11, 1
    %p75 = por %p73, %p74
    %p76 = scmp.ne.s32.totalorder %s68, %s71
    %p77 = scmp.eq.s32.totalorder %s11, 0
    %p78 = por %p76, %p77
    %p79 = scmp.ne.s32.totalorder %s68, %s71
    %p80 = scmp.eq.s32.totalorder %s16, 1
    %p81 = por %p79, %p80
    %p82 = scmp.ne.s32.totalorder %s71, %s72
    %p83 = scmp.eq.s32.totalorder %s16, 0
    %p84 = por %p82, %p83
    %p85 = scmp.ne.s32.totalorder %s71, %s72
    %p86 = scmp.eq.s32.totalorder %s17, 1
    %p87 = por %p85, %p86
    %p89 = scmp.ne.s32.totalorder %s72, %s88
    %p90 = scmp.eq.s32.totalorder %s17, 0
    %p91 = por %p89, %p90
    %s92 = ssub.s32 %s11, %s18
    %p93 = scmp.eq.s32.totalorder %s92, 0
    %s95 = sadd.s32 %s94, 1
    %s96 = scalar_select %p93, %s94, %s95
    %p99 = pneg %p93
    %p100 = scmp.eq.s32.totalorder %s11, 1
    %p101 = por %p99, %p100
    %p102 = scmp.ne.s32.totalorder %s94, %s97
    %p103 = scmp.eq.s32.totalorder %s11, 0
    %p104 = por %p102, %p103
    %p105 = scmp.ne.s32.totalorder %s94, %s97
    %p106 = scmp.eq.s32.totalorder %s16, 1
    %p107 = por %p105, %p106
    %p108 = scmp.ne.s32.totalorder %s97, %s98
    %p109 = scmp.eq.s32.totalorder %s16, 0
    %p110 = por %p108, %p109
    %p111 = scmp.ne.s32.totalorder %s97, %s98
    %p112 = scmp.eq.s32.totalorder %s17, 1
    %p113 = por %p111, %p112
    %p115 = scmp.ne.s32.totalorder %s98, %s114
    %p116 = scmp.eq.s32.totalorder %s17, 0
    %p117 = por %p115, %p116
    %s118 = ssub.s32 %s11, %s18
    %p119 = scmp.eq.s32.totalorder %s118, 0
    %s121 = sadd.s32 %s120, 1
    %s122 = scalar_select %p119, %s120, %s121
    %p125 = pneg %p119
    %p126 = scmp.eq.s32.totalorder %s11, 1
    %p127 = por %p125, %p126
    %p128 = scmp.ne.s32.totalorder %s120, %s123
    %p129 = scmp.eq.s32.totalorder %s11, 0
    %p130 = por %p128, %p129
    %p131 = scmp.ne.s32.totalorder %s120, %s123
    %p132 = scmp.eq.s32.totalorder %s16, 1
    %p133 = por %p131, %p132
    %p134 = scmp.ne.s32.totalorder %s123, %s124
    %p135 = scmp.eq.s32.totalorder %s16, 0
    %p136 = por %p134, %p135
    %p137 = scmp.ne.s32.totalorder %s123, %s124
    %p138 = scmp.eq.s32.totalorder %s17, 1
    %p139 = por %p137, %p138
    %p141 = scmp.ne.s32.totalorder %s124, %s140
    %p142 = scmp.eq.s32.totalorder %s17, 0
    %p143 = por %p141, %p142
    %p144 = scmp.le.s32.totalorder 1, %s11
    %p145 = scmp.lt.s32.totalorder %s11, 3
    %p146 = pnand %p144, %p145
    %p147 = pneg %p146
    // Predicated region
    $region9: #{basic_block_forward.7} parent=5 // pred_check
      _
    $region10: #{basic_block_forward.7} parent=5 // pred_check_branch
      %149 = sbr.rel (%p146) target = $region12
    $region11: #{basic_block_forward.7} parent=5 // pred_region
      %s150 = ssub.s32 %s11, 1
      // Predicated region
      $region13: #{basic_block_forward.7} parent=11 // pred_check
        %p151 = pneg %p58
      $region14: #{basic_block_forward.7} parent=11 // pred_check_branch
        %153 = sbr.rel (%p151) target = $region16
      $region15: #{basic_block_forward.7} parent=11 // pred_region
        _
      $region16: #{basic_block_forward.7} parent=11 // pred_fallthru
        _
    $region12: #{basic_block_forward.7} parent=5 // pred_fallthru
      _
    %p154 = scmp.lt.s32.totalorder %s11, 2
    // Predicated region
    $region17: #{basic_block_forward.7} parent=5 // pred_check
      %p155 = pneg %p154
    $region18: #{basic_block_forward.7} parent=5 // pred_check_branch
      %157 = sbr.rel (%p155) target = $region20
    $region19: #{basic_block_forward.7} parent=5 // pred_region
      // Predicated region
      $region21: #{basic_block_forward.7} parent=19 // pred_check
        %p158 = pneg %p31
      $region22: #{basic_block_forward.7} parent=19 // pred_check_branch
        %160 = sbr.rel (%p158) target = $region24
      $region23: #{basic_block_forward.7} parent=19 // pred_region
        %p161 = scmp.lt.s32.totalorder %s11, 1
        %s162 = scalar_select %p161, %s11, 1
        %s163 = smul.addr %s162, 20
        %s164 = smul.addr %s163, 4
        %s165 = scalar_lea.vmem %s0, %s164
      $region24: #{basic_block_forward.7} parent=19 // pred_fallthru
        _
    $region20: #{basic_block_forward.7} parent=5 // pred_fallthru
      _
    %p166 = scmp.le.s32.totalorder 1, %s11
    %p167 = scmp.lt.s32.totalorder %s11, 3
    %p168 = pnand %p166, %p167
    %p169 = pneg %p168
    // Predicated region
    $region25: #{basic_block_forward.7} parent=5 // pred_check
      _
    $region26: #{basic_block_forward.7} parent=5 // pred_check_branch
      %171 = sbr.rel (%p168) target = $region28
    $region27: #{basic_block_forward.7} parent=5 // pred_region
      %s172 = ssub.s32 %s11, 1
      %p173 = scmp.lt.s32.totalorder %s16, 1
      %s174 = scalar_select %p173, %s16, 1
      %s175 = smul.addr %s174, 20
      %s176 = smul.addr %s175, 4
      %s177 = scalar_lea.vmem %s0, %s176
      %p178 = pneg %p37
      %p179 = pneg %p34
      %p180 = pneg %p58
      %p181 = pneg %p55
      %p182 = pneg %p84
      %p183 = pneg %p81
      %s184 = smul.u32 8, %s16
      %p185 = scmp.lt.s32.totalorder %s184, 15
      %s186 = scalar_select %p185, %s184, 15
      %s187 = smul.addr %s186, 8
      %s188 = scalar_lea.vmem %s2, %s187
      %p189 = pneg %p110
      %p190 = pneg %p107
      %p191 = scmp.lt.s32.totalorder %s16, 1
      %s192 = scalar_select %p191, %s16, 1
      %s193 = smul.addr %s192, 8
      %s194 = scalar_lea.vmem %s3, %s193
      %p195 = pneg %p136
      %p196 = pneg %p133
      %p197 = scmp.lt.s32.totalorder %s16, 1
      %s198 = scalar_select %p197, %s16, 1
      %s199 = smul.addr %s198, 8
      %s200 = scalar_lea.vmem %s4, %s199
      %p201 = scmp.lt.s32.totalorder %s16, 1
      %s202 = scalar_select %p201, %s16, 1
      %s203 = smul.addr %s202, 20
      %s204 = smul.addr %s203, 4
      %s205 = scalar_lea.vmem %s0, %s204
      %s206 = smul.u32 8, %s16
      %p207 = scmp.lt.s32.totalorder %s206, 15
      %s208 = scalar_select %p207, %s206, 15
      %s209 = smul.addr %s208, 8
      %s210 = scalar_lea.vmem %s2, %s209
      %s211 = smul.u32 8, %s16
      %p212 = scmp.lt.s32.totalorder %s16, 1
      %s213 = scalar_select %p212, %s16, 1
      %s214 = smul.addr %s213, 8
      %s215 = scalar_lea.vmem %s3, %s214
      %p216 = scmp.lt.s32.totalorder %s16, 1
      %s217 = scalar_select %p216, %s16, 1
      %s218 = smul.addr %s217, 8
      %s219 = scalar_lea.vmem %s4, %s218
      %v221 = vld [vmem:[%s205] sm:$0xf]
      %v222 = vld [vmem:[%s205 + $0x8] sm:$0xf]
      %v223 = vld [vmem:[%s205 + $0x10] sm:$0xf]
      %v224 = vld [vmem:[%s205 + $0x18] sm:$0xf]
      %v225 = vld [vmem:[%s205 + $0x20] sm:$0xf]
      %v226 = vld [vmem:[%s205 + $0x28] sm:$0xf]
      %v227 = vld [vmem:[%s205 + $0x30] sm:$0xf]
      %v228 = vld [vmem:[%s205 + $0x38] sm:$0xf]
      %v229 = vld [vmem:[%s1] sm:$0xf]
      %v230 = vld [vmem:[%s1 + $0x4] sm:$0xf]
      %v231 = vld [vmem:[%s1 + $0x8] sm:$0xf]
      %v232 = vld [vmem:[%s1 + $0xc] sm:$0xf]
      %v233 = vld [vmem:[%s1 + $0x10] sm:$0xf]
      %v234 = vld [vmem:[%s1 + $0x14] sm:$0xf]
      %v235 = vld [vmem:[%s1 + $0x18] sm:$0xf]
      %v236 = vld [vmem:[%s1 + $0x1c] sm:$0xf]
      %v237 = vld [vmem:[%s1 + $0x20] sm:$0xf]
      %v238 = vld [vmem:[%s1 + $0x24] sm:$0xf]
      %v239 = vld [vmem:[%s1 + $0x28] sm:$0xf]
      %v240 = vld [vmem:[%s1 + $0x2c] sm:$0xf]
      %v241 = vld [vmem:[%s1 + $0x30] sm:$0xf]
      %v242 = vld [vmem:[%s1 + $0x34] sm:$0xf]
      %v243 = vld [vmem:[%s1 + $0x38] sm:$0xf]
      %v244 = vld [vmem:[%s1 + $0x3c] sm:$0xf]
      %v245 = vld [vmem:[%s205 + $0x4] sm:$0x1]
      %v246 = vld [vmem:[%s205 + $0xc] sm:$0x1]
      %v247 = vld [vmem:[%s205 + $0x14] sm:$0x1]
      %v248 = vld [vmem:[%s205 + $0x1c] sm:$0x1]
      %v249 = vld [vmem:[%s205 + $0x24] sm:$0x1]
      %v250 = vld [vmem:[%s205 + $0x2c] sm:$0x1]
      %v251 = vld [vmem:[%s205 + $0x34] sm:$0x1]
      %v252 = vld [vmem:[%s205 + $0x3c] sm:$0x1]
      %vm253 = vsmask.f32 3328
      %vm254 = vsmask.f32 7440
      %vm255 = vmor %vm253, %vm254
      %v257 = vshrl.u32 %v221, 16
      %v259 = vrot.slane %v257, 4
      %v260 = vshll.u32 %v221, 16
      %v262 = vrot.slane %v260, 5
      %v263 = vor.u32 %v259, %v262
      %v264 = vrot.slane %v263, 4
      %v266 = vshll.u32 %v245, 16
      %v268 = vrot.slane %v266, 5
      %v269 = vsel %vm255, %v264, %v268
      %v271 = vshrl.u32 %v222, 16
      %v273 = vrot.slane %v271, 4
      %v274 = vshll.u32 %v222, 16
      %v276 = vrot.slane %v274, 5
      %v277 = vor.u32 %v273, %v276
      %v278 = vrot.slane %v277, 4
      %v280 = vshll.u32 %v246, 16
      %v282 = vrot.slane %v280, 5
      %v283 = vsel %vm255, %v278, %v282
      %v285 = vshrl.u32 %v223, 16
      %v287 = vrot.slane %v285, 4
      %v288 = vshll.u32 %v223, 16
      %v290 = vrot.slane %v288, 5
      %v291 = vor.u32 %v287, %v290
      %v292 = vrot.slane %v291, 4
      %v294 = vshll.u32 %v247, 16
      %v296 = vrot.slane %v294, 5
      %v297 = vsel %vm255, %v292, %v296
      %v299 = vshrl.u32 %v224, 16
      %v301 = vrot.slane %v299, 4
      %v302 = vshll.u32 %v224, 16
      %v304 = vrot.slane %v302, 5
      %v305 = vor.u32 %v301, %v304
      %v306 = vrot.slane %v305, 4
      %v308 = vshll.u32 %v248, 16
      %v310 = vrot.slane %v308, 5
      %v311 = vsel %vm255, %v306, %v310
      %v313 = vshrl.u32 %v225, 16
      %v315 = vrot.slane %v313, 4
      %v316 = vshll.u32 %v225, 16
      %v318 = vrot.slane %v316, 5
      %v319 = vor.u32 %v315, %v318
      %v320 = vrot.slane %v319, 4
      %v322 = vshll.u32 %v249, 16
      %v324 = vrot.slane %v322, 5
      %v325 = vsel %vm255, %v320, %v324
      %v327 = vshrl.u32 %v226, 16
      %v329 = vrot.slane %v327, 4
      %v330 = vshll.u32 %v226, 16
      %v332 = vrot.slane %v330, 5
      %v333 = vor.u32 %v329, %v332
      %v334 = vrot.slane %v333, 4
      %v336 = vshll.u32 %v250, 16
      %v338 = vrot.slane %v336, 5
      %v339 = vsel %vm255, %v334, %v338
      %v341 = vshrl.u32 %v227, 16
      %v343 = vrot.slane %v341, 4
      %v344 = vshll.u32 %v227, 16
      %v346 = vrot.slane %v344, 5
      %v347 = vor.u32 %v343, %v346
      %v348 = vrot.slane %v347, 4
      %v350 = vshll.u32 %v251, 16
      %v352 = vrot.slane %v350, 5
      %v353 = vsel %vm255, %v348, %v352
      %v355 = vshrl.u32 %v228, 16
      %v357 = vrot.slane %v355, 4
      %v358 = vshll.u32 %v228, 16
      %v360 = vrot.slane %v358, 5
      %v361 = vor.u32 %v357, %v360
      %v362 = vrot.slane %v361, 4
      %v364 = vshll.u32 %v252, 16
      %v366 = vrot.slane %v364, 5
      %v367 = vsel %vm255, %v362, %v366
      %s368 = scalar_lea.vmem %s1, 64
      %v369 = vld [vmem:[%s368] sm:$0xf]
      %v370 = vld [vmem:[%s368 + $0x4] sm:$0xf]
      %v371 = vld [vmem:[%s368 + $0x8] sm:$0xf]
      %v372 = vld [vmem:[%s368 + $0xc] sm:$0xf]
      %v373 = vld [vmem:[%s368 + $0x10] sm:$0xf]
      %v374 = vld [vmem:[%s368 + $0x14] sm:$0xf]
      %v375 = vld [vmem:[%s368 + $0x18] sm:$0xf]
      %v376 = vld [vmem:[%s368 + $0x1c] sm:$0xf]
      %v377 = vld [vmem:[%s368 + $0x20] sm:$0xf]
      %v378 = vld [vmem:[%s368 + $0x24] sm:$0xf]
      %v379 = vld [vmem:[%s368 + $0x28] sm:$0xf]
      %v380 = vld [vmem:[%s368 + $0x2c] sm:$0xf]
      %v381 = vld [vmem:[%s368 + $0x30] sm:$0xf]
      %v382 = vld [vmem:[%s368 + $0x34] sm:$0xf]
      %v383 = vld [vmem:[%s368 + $0x38] sm:$0xf]
      %v384 = vld [vmem:[%s368 + $0x3c] sm:$0xf]
      %v385 = vunpack.c.l.b16 %v269
      %v386 = vunpack.c.l.b16 %v283
      %v387 = vunpack.c.l.b16 %v297
      %v388 = vunpack.c.l.b16 %v311
      %v389 = vunpack.c.l.b16 %v325
      %v390 = vunpack.c.l.b16 %v339
      %v391 = vunpack.c.l.b16 %v353
      %v392 = vunpack.c.l.b16 %v367
      %v393 = vpack.c.b16 %v386, %v385
      %v394 = vpack.c.b16 %v388, %v387
      %v395 = vpack.c.b16 %v390, %v389
      %v396 = vpack.c.b16 %v392, %v391
      %v417 = vunpack.c.l.b16 %v369
      %v418 = vunpack.c.l.b16 %v370
      %v419 = vunpack.c.l.b16 %v371
      %v420 = vunpack.c.l.b16 %v372
      %v421 = vunpack.c.l.b16 %v373
      %v422 = vunpack.c.l.b16 %v374
      %v423 = vunpack.c.l.b16 %v375
      %v424 = vunpack.c.l.b16 %v376
      %v425 = vunpack.c.l.b16 %v377
      %v426 = vunpack.c.l.b16 %v378
      %v427 = vunpack.c.l.b16 %v379
      %v428 = vunpack.c.l.b16 %v380
      %v429 = vunpack.c.l.b16 %v381
      %v430 = vunpack.c.l.b16 %v382
      %v431 = vunpack.c.l.b16 %v383
      %v432 = vunpack.c.l.b16 %v384
      %v433 = vpack.c.b16 %v418, %v417
      %v434 = vpack.c.b16 %v420, %v419
      %v435 = vpack.c.b16 %v422, %v421
      %v436 = vpack.c.b16 %v424, %v423
      %v437 = vpack.c.b16 %v426, %v425
      %v438 = vpack.c.b16 %v428, %v427
      %v439 = vpack.c.b16 %v430, %v429
      %v440 = vpack.c.b16 %v432, %v431
      %449 = vmatprep.subr.bf16.mxu0 0
      %450 = vmatpush1.bf16.msra.mxu0 %v440
      %451 = vmatprep.subr.bf16.mxu0 0
      %452 = vmatpush1.bf16.msra.mxu0 %v439
      %453 = vmatprep.subr.bf16.mxu0 0
      %454 = vmatpush1.bf16.msra.mxu0 %v438
      %455 = vmatprep.subr.bf16.mxu0 0
      %456 = vmatpush1.bf16.msra.mxu0 %v437
      %457 = vmatprep.subr.bf16.mxu0 0
      %458 = vmatpush1.bf16.msra.mxu0 %v436
      %459 = vmatprep.subr.bf16.mxu0 0
      %460 = vmatpush1.bf16.msra.mxu0 %v435
      %461 = vmatprep.subr.bf16.mxu0 0
      %462 = vmatpush1.bf16.msra.mxu0 %v434
      %463 = vmatprep.subr.bf16.mxu0 0
      %464 = vmatpush1.bf16.msra.mxu0 %v433
      %465 = vmatprep.subr.bf16.mxu0 0
      %466 = vmatpush2.bf16.msra.mxu0 0
      %467 = vmatprep.subr.bf16.mxu0 0
      %468 = vmatpush2.bf16.msra.mxu0 0
      %469 = vmatprep.subr.bf16.mxu0 0
      %470 = vmatpush2.bf16.msra.mxu0 0
      %471 = vmatprep.subr.bf16.mxu0 0
      %472 = vmatpush2.bf16.msra.mxu0 0
      %473 = vmatprep.subr.bf16.mxu0 0
      %474 = vmatpush2.bf16.msra.mxu0 0
      %475 = vmatprep.subr.bf16.mxu0 0
      %476 = vmatpush2.bf16.msra.mxu0 0
      %477 = vmatprep.subr.bf16.mxu0 0
      %478 = vmatpush2.bf16.msra.mxu0 0
      %479 = vmatprep.subr.bf16.mxu0 0
      %480 = vmatpush2.bf16.msra.mxu0 0
      %481 = vmatprep.mubr.bf16.mxu0 0
      %482 = vmatmul.mubr.bf16.gmra.mxu0 %v393
      %v483 = vpop.f32.mrf.mxu0
      %v484 = vadd.f32 0.0, %v483
      %v485 = vpop.f32.mrf.mxu0
      %v486 = vpop.f32.mrf.mxu0
      %v487 = vadd.f32 0.0, %v486
      %v488 = vpop.f32.mrf.mxu0
      %489 = vmatprep.mubr.bf16.mxu0 0
      %490 = vmatmul.mubr.bf16.gmra.mxu0 %v394
      %v491 = vpop.f32.mrf.mxu0
      %v492 = vadd.f32 0.0, %v491
      %v493 = vpop.f32.mrf.mxu0
      %v494 = vpop.f32.mrf.mxu0
      %v495 = vadd.f32 0.0, %v494
      %v496 = vpop.f32.mrf.mxu0
      %497 = vmatprep.mubr.bf16.mxu0 0
      %498 = vmatmul.mubr.bf16.gmra.mxu0 %v395
      %v499 = vpop.f32.mrf.mxu0
      %v500 = vadd.f32 0.0, %v499
      %v501 = vpop.f32.mrf.mxu0
      %v502 = vpop.f32.mrf.mxu0
      %v503 = vadd.f32 0.0, %v502
      %v504 = vpop.f32.mrf.mxu0
      %505 = vmatprep.mubr.bf16.mxu0 0
      %506 = vmatmul.mubr.bf16.gmra.mxu0 %v396
      %v507 = vpop.f32.mrf.mxu0
      %v508 = vadd.f32 0.0, %v507
      %v509 = vpop.f32.mrf.mxu0
      %v510 = vpop.f32.mrf.mxu0
      %v511 = vadd.f32 0.0, %v510
      %v512 = vpop.f32.mrf.mxu0
      %513 = vdwg.mxu0
      %v522 = vunpack.c.l.b16 %v221
      %v523 = vunpack.c.l.b16 %v222
      %v524 = vunpack.c.l.b16 %v223
      %v525 = vunpack.c.l.b16 %v224
      %v526 = vunpack.c.l.b16 %v225
      %v527 = vunpack.c.l.b16 %v226
      %v528 = vunpack.c.l.b16 %v227
      %v529 = vunpack.c.l.b16 %v228
      %v530 = vpack.c.b16 %v523, %v522
      %v531 = vpack.c.b16 %v525, %v524
      %v532 = vpack.c.b16 %v527, %v526
      %v533 = vpack.c.b16 %v529, %v528
      %v554 = vunpack.c.l.b16 %v229
      %v555 = vunpack.c.l.b16 %v230
      %v556 = vunpack.c.l.b16 %v231
      %v557 = vunpack.c.l.b16 %v232
      %v558 = vunpack.c.l.b16 %v233
      %v559 = vunpack.c.l.b16 %v234
      %v560 = vunpack.c.l.b16 %v235
      %v561 = vunpack.c.l.b16 %v236
      %v562 = vunpack.c.l.b16 %v237
      %v563 = vunpack.c.l.b16 %v238
      %v564 = vunpack.c.l.b16 %v239
      %v565 = vunpack.c.l.b16 %v240
      %v566 = vunpack.c.l.b16 %v241
      %v567 = vunpack.c.l.b16 %v242
      %v568 = vunpack.c.l.b16 %v243
      %v569 = vunpack.c.l.b16 %v244
      %v570 = vpack.c.b16 %v555, %v554
      %v571 = vpack.c.b16 %v557, %v556
      %v572 = vpack.c.b16 %v559, %v558
      %v573 = vpack.c.b16 %v561, %v560
      %v574 = vpack.c.b16 %v563, %v562
      %v575 = vpack.c.b16 %v565, %v564
      %v576 = vpack.c.b16 %v567, %v566
      %v577 = vpack.c.b16 %v569, %v568
      %586 = vmatprep.subr.bf16.mxu0 0
      %587 = vmatpush1.bf16.msra.mxu0 %v577
      %588 = vmatprep.subr.bf16.mxu0 0
      %589 = vmatpush1.bf16.msra.mxu0 %v576
      %590 = vmatprep.subr.bf16.mxu0 0
      %591 = vmatpush1.bf16.msra.mxu0 %v575
      %592 = vmatprep.subr.bf16.mxu0 0
      %593 = vmatpush1.bf16.msra.mxu0 %v574
      %594 = vmatprep.subr.bf16.mxu0 0
      %595 = vmatpush1.bf16.msra.mxu0 %v573
      %596 = vmatprep.subr.bf16.mxu0 0
      %597 = vmatpush1.bf16.msra.mxu0 %v572
      %598 = vmatprep.subr.bf16.mxu0 0
      %599 = vmatpush1.bf16.msra.mxu0 %v571
      %600 = vmatprep.subr.bf16.mxu0 0
      %601 = vmatpush1.bf16.msra.mxu0 %v570
      %602 = vmatprep.subr.bf16.mxu0 0
      %603 = vmatpush2.bf16.msra.mxu0 0
      %604 = vmatprep.subr.bf16.mxu0 0
      %605 = vmatpush2.bf16.msra.mxu0 0
      %606 = vmatprep.subr.bf16.mxu0 0
      %607 = vmatpush2.bf16.msra.mxu0 0
      %608 = vmatprep.subr.bf16.mxu0 0
      %609 = vmatpush2.bf16.msra.mxu0 0
      %610 = vmatprep.subr.bf16.mxu0 0
      %611 = vmatpush2.bf16.msra.mxu0 0
      %612 = vmatprep.subr.bf16.mxu0 0
      %613 = vmatpush2.bf16.msra.mxu0 0
      %614 = vmatprep.subr.bf16.mxu0 0
      %615 = vmatpush2.bf16.msra.mxu0 0
      %616 = vmatprep.subr.bf16.mxu0 0
      %617 = vmatpush2.bf16.msra.mxu0 0
      %618 = vmatprep.mubr.bf16.mxu0 0
      %619 = vmatmul.mubr.bf16.gmra.mxu0 %v530
      %v620 = vpop.f32.mrf.mxu0
      %v621 = vadd.f32 %v484, %v620
      %v622 = vpop.f32.mrf.mxu0
      %v623 = vpop.f32.mrf.mxu0
      %v624 = vadd.f32 %v487, %v623
      %v625 = vpop.f32.mrf.mxu0
      %626 = vmatprep.mubr.bf16.mxu0 0
      %627 = vmatmul.mubr.bf16.gmra.mxu0 %v531
      %v628 = vpop.f32.mrf.mxu0
      %v629 = vadd.f32 %v492, %v628
      %v630 = vpop.f32.mrf.mxu0
      %v631 = vpop.f32.mrf.mxu0
      %v632 = vadd.f32 %v495, %v631
      %v633 = vpop.f32.mrf.mxu0
      %634 = vmatprep.mubr.bf16.mxu0 0
      %635 = vmatmul.mubr.bf16.gmra.mxu0 %v532
      %v636 = vpop.f32.mrf.mxu0
      %v637 = vadd.f32 %v500, %v636
      %v638 = vpop.f32.mrf.mxu0
      %v639 = vpop.f32.mrf.mxu0
      %v640 = vadd.f32 %v503, %v639
      %v641 = vpop.f32.mrf.mxu0
      %642 = vmatprep.mubr.bf16.mxu0 0
      %643 = vmatmul.mubr.bf16.gmra.mxu0 %v533
      %v644 = vpop.f32.mrf.mxu0
      %v645 = vadd.f32 %v508, %v644
      %v646 = vpop.f32.mrf.mxu0
      %v647 = vpop.f32.mrf.mxu0
      %v648 = vadd.f32 %v511, %v647
      %v649 = vpop.f32.mrf.mxu0
      %650 = vdwg.mxu0
      %v651 = vld [vmem:[%s205] sm:$0xe]
      %v652 = vld [vmem:[%s205 + $0x8] sm:$0xe]
      %v653 = vld [vmem:[%s205 + $0x10] sm:$0xe]
      %v654 = vld [vmem:[%s205 + $0x18] sm:$0xe]
      %v655 = vld [vmem:[%s205 + $0x20] sm:$0xe]
      %v656 = vld [vmem:[%s205 + $0x28] sm:$0xe]
      %v657 = vld [vmem:[%s205 + $0x30] sm:$0xe]
      %v658 = vld [vmem:[%s205 + $0x38] sm:$0xe]
      %vm675 = vcmask 1042432
      %vm676 = vcmask 1046532
      %vm677 = vmor %vm675, %vm676
      %v678 = vrot.slane %v651, 5
      %v679 = vrot.slane %v678, 4
      %v680 = vrot.slane %v245, 5
      %v681 = vsel %vm677, %v679, %v680
      %v682 = vrot.slane %v652, 5
      %v683 = vrot.slane %v682, 4
      %v684 = vrot.slane %v246, 5
      %v685 = vsel %vm677, %v683, %v684
      %v686 = vrot.slane %v653, 5
      %v687 = vrot.slane %v686, 4
      %v688 = vrot.slane %v247, 5
      %v689 = vsel %vm677, %v687, %v688
      %v690 = vrot.slane %v654, 5
      %v691 = vrot.slane %v690, 4
      %v692 = vrot.slane %v248, 5
      %v693 = vsel %vm677, %v691, %v692
      %v694 = vrot.slane %v655, 5
      %v695 = vrot.slane %v694, 4
      %v696 = vrot.slane %v249, 5
      %v697 = vsel %vm677, %v695, %v696
      %v698 = vrot.slane %v656, 5
      %v699 = vrot.slane %v698, 4
      %v700 = vrot.slane %v250, 5
      %v701 = vsel %vm677, %v699, %v700
      %v702 = vrot.slane %v657, 5
      %v703 = vrot.slane %v702, 4
      %v704 = vrot.slane %v251, 5
      %v705 = vsel %vm677, %v703, %v704
      %v706 = vrot.slane %v658, 5
      %v707 = vrot.slane %v706, 4
      %v708 = vrot.slane %v252, 5
      %v709 = vsel %vm677, %v707, %v708
      %s710 = scalar_lea.vmem %s1, 128
      %v711 = vld [vmem:[%s710] sm:$0xf]
      %v712 = vld [vmem:[%s710 + $0x4] sm:$0xf]
      %v713 = vld [vmem:[%s710 + $0x8] sm:$0xf]
      %v714 = vld [vmem:[%s710 + $0xc] sm:$0xf]
      %v715 = vld [vmem:[%s710 + $0x10] sm:$0xf]
      %v716 = vld [vmem:[%s710 + $0x14] sm:$0xf]
      %v717 = vld [vmem:[%s710 + $0x18] sm:$0xf]
      %v718 = vld [vmem:[%s710 + $0x1c] sm:$0xf]
      %v719 = vld [vmem:[%s710 + $0x20] sm:$0xf]
      %v720 = vld [vmem:[%s710 + $0x24] sm:$0xf]
      %v721 = vld [vmem:[%s710 + $0x28] sm:$0xf]
      %v722 = vld [vmem:[%s710 + $0x2c] sm:$0xf]
      %v723 = vld [vmem:[%s710 + $0x30] sm:$0xf]
      %v724 = vld [vmem:[%s710 + $0x34] sm:$0xf]
      %v725 = vld [vmem:[%s710 + $0x38] sm:$0xf]
      %v726 = vld [vmem:[%s710 + $0x3c] sm:$0xf]
      %v727 = vunpack.c.l.b16 %v681
      %v728 = vunpack.c.l.b16 %v685
      %v729 = vunpack.c.l.b16 %v689
      %v730 = vunpack.c.l.b16 %v693
      %v731 = vunpack.c.l.b16 %v697
      %v732 = vunpack.c.l.b16 %v701
      %v733 = vunpack.c.l.b16 %v705
      %v734 = vunpack.c.l.b16 %v709
      %v735 = vpack.c.b16 %v728, %v727
      %v736 = vpack.c.b16 %v730, %v729
      %v737 = vpack.c.b16 %v732, %v731
      %v738 = vpack.c.b16 %v734, %v733
      %v759 = vunpack.c.l.b16 %v711
      %v760 = vunpack.c.l.b16 %v712
      %v761 = vunpack.c.l.b16 %v713
      %v762 = vunpack.c.l.b16 %v714
      %v763 = vunpack.c.l.b16 %v715
      %v764 = vunpack.c.l.b16 %v716
      %v765 = vunpack.c.l.b16 %v717
      %v766 = vunpack.c.l.b16 %v718
      %v767 = vunpack.c.l.b16 %v719
      %v768 = vunpack.c.l.b16 %v720
      %v769 = vunpack.c.l.b16 %v721
      %v770 = vunpack.c.l.b16 %v722
      %v771 = vunpack.c.l.b16 %v723
      %v772 = vunpack.c.l.b16 %v724
      %v773 = vunpack.c.l.b16 %v725
      %v774 = vunpack.c.l.b16 %v726
      %v775 = vpack.c.b16 %v760, %v759
      %v776 = vpack.c.b16 %v762, %v761
      %v777 = vpack.c.b16 %v764, %v763
      %v778 = vpack.c.b16 %v766, %v765
      %v779 = vpack.c.b16 %v768, %v767
      %v780 = vpack.c.b16 %v770, %v769
      %v781 = vpack.c.b16 %v772, %v771
      %v782 = vpack.c.b16 %v774, %v773
      %791 = vmatprep.subr.bf16.mxu0 0
      %792 = vmatpush1.bf16.msra.mxu0 %v782
      %793 = vmatprep.subr.bf16.mxu0 0
      %794 = vmatpush1.bf16.msra.mxu0 %v781
      %795 = vmatprep.subr.bf16.mxu0 0
      %796 = vmatpush1.bf16.msra.mxu0 %v780
      %797 = vmatprep.subr.bf16.mxu0 0
      %798 = vmatpush1.bf16.msra.mxu0 %v779
      %799 = vmatprep.subr.bf16.mxu0 0
      %800 = vmatpush1.bf16.msra.mxu0 %v778
      %801 = vmatprep.subr.bf16.mxu0 0
      %802 = vmatpush1.bf16.msra.mxu0 %v777
      %803 = vmatprep.subr.bf16.mxu0 0
      %804 = vmatpush1.bf16.msra.mxu0 %v776
      %805 = vmatprep.subr.bf16.mxu0 0
      %806 = vmatpush1.bf16.msra.mxu0 %v775
      %807 = vmatprep.subr.bf16.mxu0 0
      %808 = vmatpush2.bf16.msra.mxu0 0
      %809 = vmatprep.subr.bf16.mxu0 0
      %810 = vmatpush2.bf16.msra.mxu0 0
      %811 = vmatprep.subr.bf16.mxu0 0
      %812 = vmatpush2.bf16.msra.mxu0 0
      %813 = vmatprep.subr.bf16.mxu0 0
      %814 = vmatpush2.bf16.msra.mxu0 0
      %815 = vmatprep.subr.bf16.mxu0 0
      %816 = vmatpush2.bf16.msra.mxu0 0
      %817 = vmatprep.subr.bf16.mxu0 0
      %818 = vmatpush2.bf16.msra.mxu0 0
      %819 = vmatprep.subr.bf16.mxu0 0
      %820 = vmatpush2.bf16.msra.mxu0 0
      %821 = vmatprep.subr.bf16.mxu0 0
      %822 = vmatpush2.bf16.msra.mxu0 0
      %823 = vmatprep.mubr.bf16.mxu0 0
      %824 = vmatmul.mubr.bf16.gmra.mxu0 %v735
      %v825 = vpop.f32.mrf.mxu0
      %v826 = vadd.f32 0.0, %v825
      %v827 = vpop.f32.mrf.mxu0
      %v828 = vpop.f32.mrf.mxu0
      %v829 = vadd.f32 0.0, %v828
      %v830 = vpop.f32.mrf.mxu0
      %831 = vmatprep.mubr.bf16.mxu0 0
      %832 = vmatmul.mubr.bf16.gmra.mxu0 %v736
      %v833 = vpop.f32.mrf.mxu0
      %v834 = vadd.f32 0.0, %v833
      %v835 = vpop.f32.mrf.mxu0
      %v836 = vpop.f32.mrf.mxu0
      %v837 = vadd.f32 0.0, %v836
      %v838 = vpop.f32.mrf.mxu0
      %839 = vmatprep.mubr.bf16.mxu0 0
      %840 = vmatmul.mubr.bf16.gmra.mxu0 %v737
      %v841 = vpop.f32.mrf.mxu0
      %v842 = vadd.f32 0.0, %v841
      %v843 = vpop.f32.mrf.mxu0
      %v844 = vpop.f32.mrf.mxu0
      %v845 = vadd.f32 0.0, %v844
      %v846 = vpop.f32.mrf.mxu0
      %847 = vmatprep.mubr.bf16.mxu0 0
      %848 = vmatmul.mubr.bf16.gmra.mxu0 %v738
      %v849 = vpop.f32.mrf.mxu0
      %v850 = vadd.f32 0.0, %v849
      %v851 = vpop.f32.mrf.mxu0
      %v852 = vpop.f32.mrf.mxu0
      %v853 = vadd.f32 0.0, %v852
      %v854 = vpop.f32.mrf.mxu0
      %855 = vdwg.mxu0
      %v856 = vadd.f32 %v621, %v826
      %v857 = vadd.f32 %v624, %v829
      %v858 = vadd.f32 %v629, %v834
      %v859 = vadd.f32 %v632, %v837
      %v860 = vadd.f32 %v637, %v842
      %v861 = vadd.f32 %v640, %v845
      %v862 = vadd.f32 %v645, %v850
      %v863 = vadd.f32 %v648, %v853
      %s864 = scalar_lea.vmem %s205, 8
      %v865 = vld [vmem:[%s864] sm:$0xf]
      %v866 = vld [vmem:[%s864 + $0x8] sm:$0xf]
      %v867 = vld [vmem:[%s864 + $0x10] sm:$0xf]
      %v868 = vld [vmem:[%s864 + $0x18] sm:$0xf]
      %v869 = vld [vmem:[%s864 + $0x20] sm:$0xf]
      %v870 = vld [vmem:[%s864 + $0x28] sm:$0xf]
      %v871 = vld [vmem:[%s864 + $0x30] sm:$0xf]
      %v872 = vld [vmem:[%s864 + $0x38] sm:$0xf]
      %s873 = scalar_lea.vmem %s1, 192
      %v874 = vld [vmem:[%s873] sm:$0xf]
      %v875 = vld [vmem:[%s873 + $0x4] sm:$0xf]
      %v876 = vld [vmem:[%s873 + $0x8] sm:$0xf]
      %v877 = vld [vmem:[%s873 + $0xc] sm:$0xf]
      %v878 = vld [vmem:[%s873 + $0x10] sm:$0xf]
      %v879 = vld [vmem:[%s873 + $0x14] sm:$0xf]
      %v880 = vld [vmem:[%s873 + $0x18] sm:$0xf]
      %v881 = vld [vmem:[%s873 + $0x1c] sm:$0xf]
      %v882 = vld [vmem:[%s873 + $0x20] sm:$0xf]
      %v883 = vld [vmem:[%s873 + $0x24] sm:$0xf]
      %v884 = vld [vmem:[%s873 + $0x28] sm:$0xf]
      %v885 = vld [vmem:[%s873 + $0x2c] sm:$0xf]
      %v886 = vld [vmem:[%s873 + $0x30] sm:$0xf]
      %v887 = vld [vmem:[%s873 + $0x34] sm:$0xf]
      %v888 = vld [vmem:[%s873 + $0x38] sm:$0xf]
      %v889 = vld [vmem:[%s873 + $0x3c] sm:$0xf]
      %v898 = vunpack.c.l.b16 %v865
      %v899 = vunpack.c.l.b16 %v866
      %v900 = vunpack.c.l.b16 %v867
      %v901 = vunpack.c.l.b16 %v868
      %v902 = vunpack.c.l.b16 %v869
      %v903 = vunpack.c.l.b16 %v870
      %v904 = vunpack.c.l.b16 %v871
      %v905 = vunpack.c.l.b16 %v872
      %v906 = vpack.c.b16 %v899, %v898
      %v907 = vpack.c.b16 %v901, %v900
      %v908 = vpack.c.b16 %v903, %v902
      %v909 = vpack.c.b16 %v905, %v904
      %v930 = vunpack.c.l.b16 %v874
      %v931 = vunpack.c.l.b16 %v875
      %v932 = vunpack.c.l.b16 %v876
      %v933 = vunpack.c.l.b16 %v877
      %v934 = vunpack.c.l.b16 %v878
      %v935 = vunpack.c.l.b16 %v879
      %v936 = vunpack.c.l.b16 %v880
      %v937 = vunpack.c.l.b16 %v881
      %v938 = vunpack.c.l.b16 %v882
      %v939 = vunpack.c.l.b16 %v883
      %v940 = vunpack.c.l.b16 %v884
      %v941 = vunpack.c.l.b16 %v885
      %v942 = vunpack.c.l.b16 %v886
      %v943 = vunpack.c.l.b16 %v887
      %v944 = vunpack.c.l.b16 %v888
      %v945 = vunpack.c.l.b16 %v889
      %v946 = vpack.c.b16 %v931, %v930
      %v947 = vpack.c.b16 %v933, %v932
      %v948 = vpack.c.b16 %v935, %v934
      %v949 = vpack.c.b16 %v937, %v936
      %v950 = vpack.c.b16 %v939, %v938
      %v951 = vpack.c.b16 %v941, %v940
      %v952 = vpack.c.b16 %v943, %v942
      %v953 = vpack.c.b16 %v945, %v944
      %962 = vmatprep.subr.bf16.mxu0 0
      %963 = vmatpush1.bf16.msra.mxu0 %v953
      %964 = vmatprep.subr.bf16.mxu0 0
      %965 = vmatpush1.bf16.msra.mxu0 %v952
      %966 = vmatprep.subr.bf16.mxu0 0
      %967 = vmatpush1.bf16.msra.mxu0 %v951
      %968 = vmatprep.subr.bf16.mxu0 0
      %969 = vmatpush1.bf16.msra.mxu0 %v950
      %970 = vmatprep.subr.bf16.mxu0 0
      %971 = vmatpush1.bf16.msra.mxu0 %v949
      %972 = vmatprep.subr.bf16.mxu0 0
      %973 = vmatpush1.bf16.msra.mxu0 %v948
      %974 = vmatprep.subr.bf16.mxu0 0
      %975 = vmatpush1.bf16.msra.mxu0 %v947
      %976 = vmatprep.subr.bf16.mxu0 0
      %977 = vmatpush1.bf16.msra.mxu0 %v946
      %978 = vmatprep.subr.bf16.mxu0 0
      %979 = vmatpush2.bf16.msra.mxu0 0
      %980 = vmatprep.subr.bf16.mxu0 0
      %981 = vmatpush2.bf16.msra.mxu0 0
      %982 = vmatprep.subr.bf16.mxu0 0
      %983 = vmatpush2.bf16.msra.mxu0 0
      %984 = vmatprep.subr.bf16.mxu0 0
      %985 = vmatpush2.bf16.msra.mxu0 0
      %986 = vmatprep.subr.bf16.mxu0 0
      %987 = vmatpush2.bf16.msra.mxu0 0
      %988 = vmatprep.subr.bf16.mxu0 0
      %989 = vmatpush2.bf16.msra.mxu0 0
      %990 = vmatprep.subr.bf16.mxu0 0
      %991 = vmatpush2.bf16.msra.mxu0 0
      %992 = vmatprep.subr.bf16.mxu0 0
      %993 = vmatpush2.bf16.msra.mxu0 0
      %994 = vmatprep.mubr.bf16.mxu0 0
      %995 = vmatmul.mubr.bf16.gmra.mxu0 %v906
      %v996 = vpop.f32.mrf.mxu0
      %v997 = vadd.f32 0.0, %v996
      %v998 = vpop.f32.mrf.mxu0
      %v999 = vpop.f32.mrf.mxu0
      %v1000 = vadd.f32 0.0, %v999
      %v1001 = vpop.f32.mrf.mxu0
      %1002 = vmatprep.mubr.bf16.mxu0 0
      %1003 = vmatmul.mubr.bf16.gmra.mxu0 %v907
      %v1004 = vpop.f32.mrf.mxu0
      %v1005 = vadd.f32 0.0, %v1004
      %v1006 = vpop.f32.mrf.mxu0
      %v1007 = vpop.f32.mrf.mxu0
      %v1008 = vadd.f32 0.0, %v1007
      %v1009 = vpop.f32.mrf.mxu0
      %1010 = vmatprep.mubr.bf16.mxu0 0
      %1011 = vmatmul.mubr.bf16.gmra.mxu0 %v908
      %v1012 = vpop.f32.mrf.mxu0
      %v1013 = vadd.f32 0.0, %v1012
      %v1014 = vpop.f32.mrf.mxu0
      %v1015 = vpop.f32.mrf.mxu0
      %v1016 = vadd.f32 0.0, %v1015
      %v1017 = vpop.f32.mrf.mxu0
      %1018 = vmatprep.mubr.bf16.mxu0 0
      %1019 = vmatmul.mubr.bf16.gmra.mxu0 %v909
      %v1020 = vpop.f32.mrf.mxu0
      %v1021 = vadd.f32 0.0, %v1020
      %v1022 = vpop.f32.mrf.mxu0
      %v1023 = vpop.f32.mrf.mxu0
      %v1024 = vadd.f32 0.0, %v1023
      %v1025 = vpop.f32.mrf.mxu0
      %1026 = vdwg.mxu0
      %v1027 = vadd.f32 %v856, %v997
      %v1028 = vadd.f32 %v857, %v1000
      %v1029 = vadd.f32 %v858, %v1005
      %v1030 = vadd.f32 %v859, %v1008
      %v1031 = vadd.f32 %v860, %v1013
      %v1032 = vadd.f32 %v861, %v1016
      %v1033 = vadd.f32 %v862, %v1021
      %v1034 = vadd.f32 %v863, %v1024
      %v1035 = vld [vmem:[%s864] sm:$0xf]
      %v1036 = vld [vmem:[%s864 + $0x4] sm:$0x1]
      %v1037 = vld [vmem:[%s864 + $0x8] sm:$0xf]
      %v1038 = vld [vmem:[%s864 + $0xc] sm:$0x1]
      %v1039 = vld [vmem:[%s864 + $0x10] sm:$0xf]
      %v1040 = vld [vmem:[%s864 + $0x14] sm:$0x1]
      %v1041 = vld [vmem:[%s864 + $0x18] sm:$0xf]
      %v1042 = vld [vmem:[%s864 + $0x1c] sm:$0x1]
      %v1043 = vld [vmem:[%s864 + $0x20] sm:$0xf]
      %v1044 = vld [vmem:[%s864 + $0x24] sm:$0x1]
      %v1045 = vld [vmem:[%s864 + $0x28] sm:$0xf]
      %v1046 = vld [vmem:[%s864 + $0x2c] sm:$0x1]
      %v1047 = vld [vmem:[%s864 + $0x30] sm:$0xf]
      %v1048 = vld [vmem:[%s864 + $0x34] sm:$0x1]
      %v1049 = vld [vmem:[%s864 + $0x38] sm:$0xf]
      %v1050 = vld [vmem:[%s864 + $0x3c] sm:$0x1]
      %v1052 = vshrl.u32 %v1035, 16
      %v1054 = vrot.slane %v1052, 4
      %v1055 = vshll.u32 %v1035, 16
      %v1057 = vrot.slane %v1055, 5
      %v1058 = vor.u32 %v1054, %v1057
      %v1059 = vrot.slane %v1058, 4
      %v1061 = vshll.u32 %v1036, 16
      %v1063 = vrot.slane %v1061, 5
      %v1064 = vsel %vm255, %v1059, %v1063
      %v1066 = vshrl.u32 %v1037, 16
      %v1068 = vrot.slane %v1066, 4
      %v1069 = vshll.u32 %v1037, 16
      %v1071 = vrot.slane %v1069, 5
      %v1072 = vor.u32 %v1068, %v1071
      %v1073 = vrot.slane %v1072, 4
      %v1075 = vshll.u32 %v1038, 16
      %v1077 = vrot.slane %v1075, 5
      %v1078 = vsel %vm255, %v1073, %v1077
      %v1080 = vshrl.u32 %v1039, 16
      %v1082 = vrot.slane %v1080, 4
      %v1083 = vshll.u32 %v1039, 16
      %v1085 = vrot.slane %v1083, 5
      %v1086 = vor.u32 %v1082, %v1085
      %v1087 = vrot.slane %v1086, 4
      %v1089 = vshll.u32 %v1040, 16
      %v1091 = vrot.slane %v1089, 5
      %v1092 = vsel %vm255, %v1087, %v1091
      %v1094 = vshrl.u32 %v1041, 16
      %v1096 = vrot.slane %v1094, 4
      %v1097 = vshll.u32 %v1041, 16
      %v1099 = vrot.slane %v1097, 5
      %v1100 = vor.u32 %v1096, %v1099
      %v1101 = vrot.slane %v1100, 4
      %v1103 = vshll.u32 %v1042, 16
      %v1105 = vrot.slane %v1103, 5
      %v1106 = vsel %vm255, %v1101, %v1105
      %v1108 = vshrl.u32 %v1043, 16
      %v1110 = vrot.slane %v1108, 4
      %v1111 = vshll.u32 %v1043, 16
      %v1113 = vrot.slane %v1111, 5
      %v1114 = vor.u32 %v1110, %v1113
      %v1115 = vrot.slane %v1114, 4
      %v1117 = vshll.u32 %v1044, 16
      %v1119 = vrot.slane %v1117, 5
      %v1120 = vsel %vm255, %v1115, %v1119
      %v1122 = vshrl.u32 %v1045, 16
      %v1124 = vrot.slane %v1122, 4
      %v1125 = vshll.u32 %v1045, 16
      %v1127 = vrot.slane %v1125, 5
      %v1128 = vor.u32 %v1124, %v1127
      %v1129 = vrot.slane %v1128, 4
      %v1131 = vshll.u32 %v1046, 16
      %v1133 = vrot.slane %v1131, 5
      %v1134 = vsel %vm255, %v1129, %v1133
      %v1136 = vshrl.u32 %v1047, 16
      %v1138 = vrot.slane %v1136, 4
      %v1139 = vshll.u32 %v1047, 16
      %v1141 = vrot.slane %v1139, 5
      %v1142 = vor.u32 %v1138, %v1141
      %v1143 = vrot.slane %v1142, 4
      %v1145 = vshll.u32 %v1048, 16
      %v1147 = vrot.slane %v1145, 5
      %v1148 = vsel %vm255, %v1143, %v1147
      %v1150 = vshrl.u32 %v1049, 16
      %v1152 = vrot.slane %v1150, 4
      %v1153 = vshll.u32 %v1049, 16
      %v1155 = vrot.slane %v1153, 5
      %v1156 = vor.u32 %v1152, %v1155
      %v1157 = vrot.slane %v1156, 4
      %v1159 = vshll.u32 %v1050, 16
      %v1161 = vrot.slane %v1159, 5
      %v1162 = vsel %vm255, %v1157, %v1161
      %s1163 = scalar_lea.vmem %s1, 256
      %v1164 = vld [vmem:[%s1163] sm:$0xf]
      %v1165 = vld [vmem:[%s1163 + $0x4] sm:$0xf]
      %v1166 = vld [vmem:[%s1163 + $0x8] sm:$0xf]
      %v1167 = vld [vmem:[%s1163 + $0xc] sm:$0xf]
      %v1168 = vld [vmem:[%s1163 + $0x10] sm:$0xf]
      %v1169 = vld [vmem:[%s1163 + $0x14] sm:$0xf]
      %v1170 = vld [vmem:[%s1163 + $0x18] sm:$0xf]
      %v1171 = vld [vmem:[%s1163 + $0x1c] sm:$0xf]
      %v1172 = vld [vmem:[%s1163 + $0x20] sm:$0xf]
      %v1173 = vld [vmem:[%s1163 + $0x24] sm:$0xf]
      %v1174 = vld [vmem:[%s1163 + $0x28] sm:$0xf]
      %v1175 = vld [vmem:[%s1163 + $0x2c] sm:$0xf]
      %v1176 = vld [vmem:[%s1163 + $0x30] sm:$0xf]
      %v1177 = vld [vmem:[%s1163 + $0x34] sm:$0xf]
      %v1178 = vld [vmem:[%s1163 + $0x38] sm:$0xf]
      %v1179 = vld [vmem:[%s1163 + $0x3c] sm:$0xf]
      %v1180 = vunpack.c.l.b16 %v1064
      %v1181 = vunpack.c.l.b16 %v1078
      %v1182 = vunpack.c.l.b16 %v1092
      %v1183 = vunpack.c.l.b16 %v1106
      %v1184 = vunpack.c.l.b16 %v1120
      %v1185 = vunpack.c.l.b16 %v1134
      %v1186 = vunpack.c.l.b16 %v1148
      %v1187 = vunpack.c.l.b16 %v1162
      %v1188 = vpack.c.b16 %v1181, %v1180
      %v1189 = vpack.c.b16 %v1183, %v1182
      %v1190 = vpack.c.b16 %v1185, %v1184
      %v1191 = vpack.c.b16 %v1187, %v1186
      %v1212 = vunpack.c.l.b16 %v1164
      %v1213 = vunpack.c.l.b16 %v1165
      %v1214 = vunpack.c.l.b16 %v1166
      %v1215 = vunpack.c.l.b16 %v1167
      %v1216 = vunpack.c.l.b16 %v1168
      %v1217 = vunpack.c.l.b16 %v1169
      %v1218 = vunpack.c.l.b16 %v1170
      %v1219 = vunpack.c.l.b16 %v1171
      %v1220 = vunpack.c.l.b16 %v1172
      %v1221 = vunpack.c.l.b16 %v1173
      %v1222 = vunpack.c.l.b16 %v1174
      %v1223 = vunpack.c.l.b16 %v1175
      %v1224 = vunpack.c.l.b16 %v1176
      %v1225 = vunpack.c.l.b16 %v1177
      %v1226 = vunpack.c.l.b16 %v1178
      %v1227 = vunpack.c.l.b16 %v1179
      %v1228 = vpack.c.b16 %v1213, %v1212
      %v1229 = vpack.c.b16 %v1215, %v1214
      %v1230 = vpack.c.b16 %v1217, %v1216
      %v1231 = vpack.c.b16 %v1219, %v1218
      %v1232 = vpack.c.b16 %v1221, %v1220
      %v1233 = vpack.c.b16 %v1223, %v1222
      %v1234 = vpack.c.b16 %v1225, %v1224
      %v1235 = vpack.c.b16 %v1227, %v1226
      %1244 = vmatprep.subr.bf16.mxu0 0
      %1245 = vmatpush1.bf16.msra.mxu0 %v1235
      %1246 = vmatprep.subr.bf16.mxu0 0
      %1247 = vmatpush1.bf16.msra.mxu0 %v1234
      %1248 = vmatprep.subr.bf16.mxu0 0
      %1249 = vmatpush1.bf16.msra.mxu0 %v1233
      %1250 = vmatprep.subr.bf16.mxu0 0
      %1251 = vmatpush1.bf16.msra.mxu0 %v1232
      %1252 = vmatprep.subr.bf16.mxu0 0
      %1253 = vmatpush1.bf16.msra.mxu0 %v1231
      %1254 = vmatprep.subr.bf16.mxu0 0
      %1255 = vmatpush1.bf16.msra.mxu0 %v1230
      %1256 = vmatprep.subr.bf16.mxu0 0
      %1257 = vmatpush1.bf16.msra.mxu0 %v1229
      %1258 = vmatprep.subr.bf16.mxu0 0
      %1259 = vmatpush1.bf16.msra.mxu0 %v1228
      %1260 = vmatprep.subr.bf16.mxu0 0
      %1261 = vmatpush2.bf16.msra.mxu0 0
      %1262 = vmatprep.subr.bf16.mxu0 0
      %1263 = vmatpush2.bf16.msra.mxu0 0
      %1264 = vmatprep.subr.bf16.mxu0 0
      %1265 = vmatpush2.bf16.msra.mxu0 0
      %1266 = vmatprep.subr.bf16.mxu0 0
      %1267 = vmatpush2.bf16.msra.mxu0 0
      %1268 = vmatprep.subr.bf16.mxu0 0
      %1269 = vmatpush2.bf16.msra.mxu0 0
      %1270 = vmatprep.subr.bf16.mxu0 0
      %1271 = vmatpush2.bf16.msra.mxu0 0
      %1272 = vmatprep.subr.bf16.mxu0 0
      %1273 = vmatpush2.bf16.msra.mxu0 0
      %1274 = vmatprep.subr.bf16.mxu0 0
      %1275 = vmatpush2.bf16.msra.mxu0 0
      %1276 = vmatprep.mubr.bf16.mxu0 0
      %1277 = vmatmul.mubr.bf16.gmra.mxu0 %v1188
      %v1278 = vpop.f32.mrf.mxu0
      %v1279 = vadd.f32 0.0, %v1278
      %v1280 = vpop.f32.mrf.mxu0
      %v1281 = vpop.f32.mrf.mxu0
      %v1282 = vadd.f32 0.0, %v1281
      %v1283 = vpop.f32.mrf.mxu0
      %1284 = vmatprep.mubr.bf16.mxu0 0
      %1285 = vmatmul.mubr.bf16.gmra.mxu0 %v1189
      %v1286 = vpop.f32.mrf.mxu0
      %v1287 = vadd.f32 0.0, %v1286
      %v1288 = vpop.f32.mrf.mxu0
      %v1289 = vpop.f32.mrf.mxu0
      %v1290 = vadd.f32 0.0, %v1289
      %v1291 = vpop.f32.mrf.mxu0
      %1292 = vmatprep.mubr.bf16.mxu0 0
      %1293 = vmatmul.mubr.bf16.gmra.mxu0 %v1190
      %v1294 = vpop.f32.mrf.mxu0
      %v1295 = vadd.f32 0.0, %v1294
      %v1296 = vpop.f32.mrf.mxu0
      %v1297 = vpop.f32.mrf.mxu0
      %v1298 = vadd.f32 0.0, %v1297
      %v1299 = vpop.f32.mrf.mxu0
      %1300 = vmatprep.mubr.bf16.mxu0 0
      %1301 = vmatmul.mubr.bf16.gmra.mxu0 %v1191
      %v1302 = vpop.f32.mrf.mxu0
      %v1303 = vadd.f32 0.0, %v1302
      %v1304 = vpop.f32.mrf.mxu0
      %v1305 = vpop.f32.mrf.mxu0
      %v1306 = vadd.f32 0.0, %v1305
      %v1307 = vpop.f32.mrf.mxu0
      %1308 = vdwg.mxu0
      %v1309 = vadd.f32 %v1027, %v1279
      %v1310 = vadd.f32 %v1028, %v1282
      %v1311 = vadd.f32 %v1029, %v1287
      %v1312 = vadd.f32 %v1030, %v1290
      %v1313 = vadd.f32 %v1031, %v1295
      %v1314 = vadd.f32 %v1032, %v1298
      %v1315 = vadd.f32 %v1033, %v1303
      %v1316 = vadd.f32 %v1034, %v1306
      %v1317 = vld [vmem:[%s864] sm:$0xe]
      %v1318 = vld [vmem:[%s864 + $0x8] sm:$0xe]
      %v1319 = vld [vmem:[%s864 + $0x10] sm:$0xe]
      %v1320 = vld [vmem:[%s864 + $0x18] sm:$0xe]
      %v1321 = vld [vmem:[%s864 + $0x20] sm:$0xe]
      %v1322 = vld [vmem:[%s864 + $0x28] sm:$0xe]
      %v1323 = vld [vmem:[%s864 + $0x30] sm:$0xe]
      %v1324 = vld [vmem:[%s864 + $0x38] sm:$0xe]
      %v1341 = vrot.slane %v1317, 5
      %v1342 = vrot.slane %v1341, 4
      %v1343 = vrot.slane %v1036, 5
      %v1344 = vsel %vm677, %v1342, %v1343
      %v1345 = vrot.slane %v1318, 5
      %v1346 = vrot.slane %v1345, 4
      %v1347 = vrot.slane %v1038, 5
      %v1348 = vsel %vm677, %v1346, %v1347
      %v1349 = vrot.slane %v1319, 5
      %v1350 = vrot.slane %v1349, 4
      %v1351 = vrot.slane %v1040, 5
      %v1352 = vsel %vm677, %v1350, %v1351
      %v1353 = vrot.slane %v1320, 5
      %v1354 = vrot.slane %v1353, 4
      %v1355 = vrot.slane %v1042, 5
      %v1356 = vsel %vm677, %v1354, %v1355
      %v1357 = vrot.slane %v1321, 5
      %v1358 = vrot.slane %v1357, 4
      %v1359 = vrot.slane %v1044, 5
      %v1360 = vsel %vm677, %v1358, %v1359
      %v1361 = vrot.slane %v1322, 5
      %v1362 = vrot.slane %v1361, 4
      %v1363 = vrot.slane %v1046, 5
      %v1364 = vsel %vm677, %v1362, %v1363
      %v1365 = vrot.slane %v1323, 5
      %v1366 = vrot.slane %v1365, 4
      %v1367 = vrot.slane %v1048, 5
      %v1368 = vsel %vm677, %v1366, %v1367
      %v1369 = vrot.slane %v1324, 5
      %v1370 = vrot.slane %v1369, 4
      %v1371 = vrot.slane %v1050, 5
      %v1372 = vsel %vm677, %v1370, %v1371
      %s1373 = scalar_lea.vmem %s1, 320
      %v1374 = vld [vmem:[%s1373] sm:$0xf]
      %v1375 = vld [vmem:[%s1373 + $0x4] sm:$0xf]
      %v1376 = vld [vmem:[%s1373 + $0x8] sm:$0xf]
      %v1377 = vld [vmem:[%s1373 + $0xc] sm:$0xf]
      %v1378 = vld [vmem:[%s1373 + $0x10] sm:$0xf]
      %v1379 = vld [vmem:[%s1373 + $0x14] sm:$0xf]
      %v1380 = vld [vmem:[%s1373 + $0x18] sm:$0xf]
      %v1381 = vld [vmem:[%s1373 + $0x1c] sm:$0xf]
      %v1382 = vld [vmem:[%s1373 + $0x20] sm:$0xf]
      %v1383 = vld [vmem:[%s1373 + $0x24] sm:$0xf]
      %v1384 = vld [vmem:[%s1373 + $0x28] sm:$0xf]
      %v1385 = vld [vmem:[%s1373 + $0x2c] sm:$0xf]
      %v1386 = vld [vmem:[%s1373 + $0x30] sm:$0xf]
      %v1387 = vld [vmem:[%s1373 + $0x34] sm:$0xf]
      %v1388 = vld [vmem:[%s1373 + $0x38] sm:$0xf]
      %v1389 = vld [vmem:[%s1373 + $0x3c] sm:$0xf]
      %v1390 = vunpack.c.l.b16 %v1344
      %v1391 = vunpack.c.l.b16 %v1348
      %v1392 = vunpack.c.l.b16 %v1352
      %v1393 = vunpack.c.l.b16 %v1356
      %v1394 = vunpack.c.l.b16 %v1360
      %v1395 = vunpack.c.l.b16 %v1364
      %v1396 = vunpack.c.l.b16 %v1368
      %v1397 = vunpack.c.l.b16 %v1372
      %v1398 = vpack.c.b16 %v1391, %v1390
      %v1399 = vpack.c.b16 %v1393, %v1392
      %v1400 = vpack.c.b16 %v1395, %v1394
      %v1401 = vpack.c.b16 %v1397, %v1396
      %v1422 = vunpack.c.l.b16 %v1374
      %v1423 = vunpack.c.l.b16 %v1375
      %v1424 = vunpack.c.l.b16 %v1376
      %v1425 = vunpack.c.l.b16 %v1377
      %v1426 = vunpack.c.l.b16 %v1378
      %v1427 = vunpack.c.l.b16 %v1379
      %v1428 = vunpack.c.l.b16 %v1380
      %v1429 = vunpack.c.l.b16 %v1381
      %v1430 = vunpack.c.l.b16 %v1382
      %v1431 = vunpack.c.l.b16 %v1383
      %v1432 = vunpack.c.l.b16 %v1384
      %v1433 = vunpack.c.l.b16 %v1385
      %v1434 = vunpack.c.l.b16 %v1386
      %v1435 = vunpack.c.l.b16 %v1387
      %v1436 = vunpack.c.l.b16 %v1388
      %v1437 = vunpack.c.l.b16 %v1389
      %v1438 = vpack.c.b16 %v1423, %v1422
      %v1439 = vpack.c.b16 %v1425, %v1424
      %v1440 = vpack.c.b16 %v1427, %v1426
      %v1441 = vpack.c.b16 %v1429, %v1428
      %v1442 = vpack.c.b16 %v1431, %v1430
      %v1443 = vpack.c.b16 %v1433, %v1432
      %v1444 = vpack.c.b16 %v1435, %v1434
      %v1445 = vpack.c.b16 %v1437, %v1436
      %1454 = vmatprep.subr.bf16.mxu0 0
      %1455 = vmatpush1.bf16.msra.mxu0 %v1445
      %1456 = vmatprep.subr.bf16.mxu0 0
      %1457 = vmatpush1.bf16.msra.mxu0 %v1444
      %1458 = vmatprep.subr.bf16.mxu0 0
      %1459 = vmatpush1.bf16.msra.mxu0 %v1443
      %1460 = vmatprep.subr.bf16.mxu0 0
      %1461 = vmatpush1.bf16.msra.mxu0 %v1442
      %1462 = vmatprep.subr.bf16.mxu0 0
      %1463 = vmatpush1.bf16.msra.mxu0 %v1441
      %1464 = vmatprep.subr.bf16.mxu0 0
      %1465 = vmatpush1.bf16.msra.mxu0 %v1440
      %1466 = vmatprep.subr.bf16.mxu0 0
      %1467 = vmatpush1.bf16.msra.mxu0 %v1439
      %1468 = vmatprep.subr.bf16.mxu0 0
      %1469 = vmatpush1.bf16.msra.mxu0 %v1438
      %1470 = vmatprep.subr.bf16.mxu0 0
      %1471 = vmatpush2.bf16.msra.mxu0 0
      %1472 = vmatprep.subr.bf16.mxu0 0
      %1473 = vmatpush2.bf16.msra.mxu0 0
      %1474 = vmatprep.subr.bf16.mxu0 0
      %1475 = vmatpush2.bf16.msra.mxu0 0
      %1476 = vmatprep.subr.bf16.mxu0 0
      %1477 = vmatpush2.bf16.msra.mxu0 0
      %1478 = vmatprep.subr.bf16.mxu0 0
      %1479 = vmatpush2.bf16.msra.mxu0 0
      %1480 = vmatprep.subr.bf16.mxu0 0
      %1481 = vmatpush2.bf16.msra.mxu0 0
      %1482 = vmatprep.subr.bf16.mxu0 0
      %1483 = vmatpush2.bf16.msra.mxu0 0
      %1484 = vmatprep.subr.bf16.mxu0 0
      %1485 = vmatpush2.bf16.msra.mxu0 0
      %1486 = vmatprep.mubr.bf16.mxu0 0
      %1487 = vmatmul.mubr.bf16.gmra.mxu0 %v1398
      %v1488 = vpop.f32.mrf.mxu0
      %v1489 = vadd.f32 0.0, %v1488
      %v1490 = vpop.f32.mrf.mxu0
      %v1491 = vpop.f32.mrf.mxu0
      %v1492 = vadd.f32 0.0, %v1491
      %v1493 = vpop.f32.mrf.mxu0
      %1494 = vmatprep.mubr.bf16.mxu0 0
      %1495 = vmatmul.mubr.bf16.gmra.mxu0 %v1399
      %v1496 = vpop.f32.mrf.mxu0
      %v1497 = vadd.f32 0.0, %v1496
      %v1498 = vpop.f32.mrf.mxu0
      %v1499 = vpop.f32.mrf.mxu0
      %v1500 = vadd.f32 0.0, %v1499
      %v1501 = vpop.f32.mrf.mxu0
      %1502 = vmatprep.mubr.bf16.mxu0 0
      %1503 = vmatmul.mubr.bf16.gmra.mxu0 %v1400
      %v1504 = vpop.f32.mrf.mxu0
      %v1505 = vadd.f32 0.0, %v1504
      %v1506 = vpop.f32.mrf.mxu0
      %v1507 = vpop.f32.mrf.mxu0
      %v1508 = vadd.f32 0.0, %v1507
      %v1509 = vpop.f32.mrf.mxu0
      %1510 = vmatprep.mubr.bf16.mxu0 0
      %1511 = vmatmul.mubr.bf16.gmra.mxu0 %v1401
      %v1512 = vpop.f32.mrf.mxu0
      %v1513 = vadd.f32 0.0, %v1512
      %v1514 = vpop.f32.mrf.mxu0
      %v1515 = vpop.f32.mrf.mxu0
      %v1516 = vadd.f32 0.0, %v1515
      %v1517 = vpop.f32.mrf.mxu0
      %1518 = vdwg.mxu0
      %v1519 = vadd.f32 %v1309, %v1489
      %v1520 = vadd.f32 %v1310, %v1492
      %v1521 = vadd.f32 %v1311, %v1497
      %v1522 = vadd.f32 %v1312, %v1500
      %v1523 = vadd.f32 %v1313, %v1505
      %v1524 = vadd.f32 %v1314, %v1508
      %v1525 = vadd.f32 %v1315, %v1513
      %v1526 = vadd.f32 %v1316, %v1516
      %s1527 = scalar_lea.vmem %s205, 16
      %v1528 = vld [vmem:[%s1527] sm:$0xf]
      %v1529 = vld [vmem:[%s1527 + $0x8] sm:$0xf]
      %v1530 = vld [vmem:[%s1527 + $0x10] sm:$0xf]
      %v1531 = vld [vmem:[%s1527 + $0x18] sm:$0xf]
      %v1532 = vld [vmem:[%s1527 + $0x20] sm:$0xf]
      %v1533 = vld [vmem:[%s1527 + $0x28] sm:$0xf]
      %v1534 = vld [vmem:[%s1527 + $0x30] sm:$0xf]
      %v1535 = vld [vmem:[%s1527 + $0x38] sm:$0xf]
      %s1536 = scalar_lea.vmem %s1, 384
      %v1537 = vld [vmem:[%s1536] sm:$0xf]
      %v1538 = vld [vmem:[%s1536 + $0x4] sm:$0xf]
      %v1539 = vld [vmem:[%s1536 + $0x8] sm:$0xf]
      %v1540 = vld [vmem:[%s1536 + $0xc] sm:$0xf]
      %v1541 = vld [vmem:[%s1536 + $0x10] sm:$0xf]
      %v1542 = vld [vmem:[%s1536 + $0x14] sm:$0xf]
      %v1543 = vld [vmem:[%s1536 + $0x18] sm:$0xf]
      %v1544 = vld [vmem:[%s1536 + $0x1c] sm:$0xf]
      %v1545 = vld [vmem:[%s1536 + $0x20] sm:$0xf]
      %v1546 = vld [vmem:[%s1536 + $0x24] sm:$0xf]
      %v1547 = vld [vmem:[%s1536 + $0x28] sm:$0xf]
      %v1548 = vld [vmem:[%s1536 + $0x2c] sm:$0xf]
      %v1549 = vld [vmem:[%s1536 + $0x30] sm:$0xf]
      %v1550 = vld [vmem:[%s1536 + $0x34] sm:$0xf]
      %v1551 = vld [vmem:[%s1536 + $0x38] sm:$0xf]
      %v1552 = vld [vmem:[%s1536 + $0x3c] sm:$0xf]
      %v1561 = vunpack.c.l.b16 %v1528
      %v1562 = vunpack.c.l.b16 %v1529
      %v1563 = vunpack.c.l.b16 %v1530
      %v1564 = vunpack.c.l.b16 %v1531
      %v1565 = vunpack.c.l.b16 %v1532
      %v1566 = vunpack.c.l.b16 %v1533
      %v1567 = vunpack.c.l.b16 %v1534
      %v1568 = vunpack.c.l.b16 %v1535
      %v1569 = vpack.c.b16 %v1562, %v1561
      %v1570 = vpack.c.b16 %v1564, %v1563
      %v1571 = vpack.c.b16 %v1566, %v1565
      %v1572 = vpack.c.b16 %v1568, %v1567
      %v1593 = vunpack.c.l.b16 %v1537
      %v1594 = vunpack.c.l.b16 %v1538
      %v1595 = vunpack.c.l.b16 %v1539
      %v1596 = vunpack.c.l.b16 %v1540
      %v1597 = vunpack.c.l.b16 %v1541
      %v1598 = vunpack.c.l.b16 %v1542
      %v1599 = vunpack.c.l.b16 %v1543
      %v1600 = vunpack.c.l.b16 %v1544
      %v1601 = vunpack.c.l.b16 %v1545
      %v1602 = vunpack.c.l.b16 %v1546
      %v1603 = vunpack.c.l.b16 %v1547
      %v1604 = vunpack.c.l.b16 %v1548
      %v1605 = vunpack.c.l.b16 %v1549
      %v1606 = vunpack.c.l.b16 %v1550
      %v1607 = vunpack.c.l.b16 %v1551
      %v1608 = vunpack.c.l.b16 %v1552
      %v1609 = vpack.c.b16 %v1594, %v1593
      %v1610 = vpack.c.b16 %v1596, %v1595
      %v1611 = vpack.c.b16 %v1598, %v1597
      %v1612 = vpack.c.b16 %v1600, %v1599
      %v1613 = vpack.c.b16 %v1602, %v1601
      %v1614 = vpack.c.b16 %v1604, %v1603
      %v1615 = vpack.c.b16 %v1606, %v1605
      %v1616 = vpack.c.b16 %v1608, %v1607
      %1625 = vmatprep.subr.bf16.mxu0 0
      %1626 = vmatpush1.bf16.msra.mxu0 %v1616
      %1627 = vmatprep.subr.bf16.mxu0 0
      %1628 = vmatpush1.bf16.msra.mxu0 %v1615
      %1629 = vmatprep.subr.bf16.mxu0 0
      %1630 = vmatpush1.bf16.msra.mxu0 %v1614
      %1631 = vmatprep.subr.bf16.mxu0 0
      %1632 = vmatpush1.bf16.msra.mxu0 %v1613
      %1633 = vmatprep.subr.bf16.mxu0 0
      %1634 = vmatpush1.bf16.msra.mxu0 %v1612
      %1635 = vmatprep.subr.bf16.mxu0 0
      %1636 = vmatpush1.bf16.msra.mxu0 %v1611
      %1637 = vmatprep.subr.bf16.mxu0 0
      %1638 = vmatpush1.bf16.msra.mxu0 %v1610
      %1639 = vmatprep.subr.bf16.mxu0 0
      %1640 = vmatpush1.bf16.msra.mxu0 %v1609
      %1641 = vmatprep.subr.bf16.mxu0 0
      %1642 = vmatpush2.bf16.msra.mxu0 0
      %1643 = vmatprep.subr.bf16.mxu0 0
      %1644 = vmatpush2.bf16.msra.mxu0 0
      %1645 = vmatprep.subr.bf16.mxu0 0
      %1646 = vmatpush2.bf16.msra.mxu0 0
      %1647 = vmatprep.subr.bf16.mxu0 0
      %1648 = vmatpush2.bf16.msra.mxu0 0
      %1649 = vmatprep.subr.bf16.mxu0 0
      %1650 = vmatpush2.bf16.msra.mxu0 0
      %1651 = vmatprep.subr.bf16.mxu0 0
      %1652 = vmatpush2.bf16.msra.mxu0 0
      %1653 = vmatprep.subr.bf16.mxu0 0
      %1654 = vmatpush2.bf16.msra.mxu0 0
      %1655 = vmatprep.subr.bf16.mxu0 0
      %1656 = vmatpush2.bf16.msra.mxu0 0
      %1657 = vmatprep.mubr.bf16.mxu0 0
      %1658 = vmatmul.mubr.bf16.gmra.mxu0 %v1569
      %v1659 = vpop.f32.mrf.mxu0
      %v1660 = vadd.f32 0.0, %v1659
      %v1661 = vpop.f32.mrf.mxu0
      %v1662 = vpop.f32.mrf.mxu0
      %v1663 = vadd.f32 0.0, %v1662
      %v1664 = vpop.f32.mrf.mxu0
      %1665 = vmatprep.mubr.bf16.mxu0 0
      %1666 = vmatmul.mubr.bf16.gmra.mxu0 %v1570
      %v1667 = vpop.f32.mrf.mxu0
      %v1668 = vadd.f32 0.0, %v1667
      %v1669 = vpop.f32.mrf.mxu0
      %v1670 = vpop.f32.mrf.mxu0
      %v1671 = vadd.f32 0.0, %v1670
      %v1672 = vpop.f32.mrf.mxu0
      %1673 = vmatprep.mubr.bf16.mxu0 0
      %1674 = vmatmul.mubr.bf16.gmra.mxu0 %v1571
      %v1675 = vpop.f32.mrf.mxu0
      %v1676 = vadd.f32 0.0, %v1675
      %v1677 = vpop.f32.mrf.mxu0
      %v1678 = vpop.f32.mrf.mxu0
      %v1679 = vadd.f32 0.0, %v1678
      %v1680 = vpop.f32.mrf.mxu0
      %1681 = vmatprep.mubr.bf16.mxu0 0
      %1682 = vmatmul.mubr.bf16.gmra.mxu0 %v1572
      %v1683 = vpop.f32.mrf.mxu0
      %v1684 = vadd.f32 0.0, %v1683
      %v1685 = vpop.f32.mrf.mxu0
      %v1686 = vpop.f32.mrf.mxu0
      %v1687 = vadd.f32 0.0, %v1686
      %v1688 = vpop.f32.mrf.mxu0
      %1689 = vdwg.mxu0
      %v1690 = vadd.f32 %v1519, %v1660
      %v1691 = vadd.f32 %v1520, %v1663
      %v1692 = vadd.f32 %v1521, %v1668
      %v1693 = vadd.f32 %v1522, %v1671
      %v1694 = vadd.f32 %v1523, %v1676
      %v1695 = vadd.f32 %v1524, %v1679
      %v1696 = vadd.f32 %v1525, %v1684
      %v1697 = vadd.f32 %v1526, %v1687
      %v1698 = vld [vmem:[%s1527] sm:$0xf]
      %v1699 = vld [vmem:[%s1527 + $0x4] sm:$0x1]
      %v1700 = vld [vmem:[%s1527 + $0x8] sm:$0xf]
      %v1701 = vld [vmem:[%s1527 + $0xc] sm:$0x1]
      %v1702 = vld [vmem:[%s1527 + $0x10] sm:$0xf]
      %v1703 = vld [vmem:[%s1527 + $0x14] sm:$0x1]
      %v1704 = vld [vmem:[%s1527 + $0x18] sm:$0xf]
      %v1705 = vld [vmem:[%s1527 + $0x1c] sm:$0x1]
      %v1706 = vld [vmem:[%s1527 + $0x20] sm:$0xf]
      %v1707 = vld [vmem:[%s1527 + $0x24] sm:$0x1]
      %v1708 = vld [vmem:[%s1527 + $0x28] sm:$0xf]
      %v1709 = vld [vmem:[%s1527 + $0x2c] sm:$0x1]
      %v1710 = vld [vmem:[%s1527 + $0x30] sm:$0xf]
      %v1711 = vld [vmem:[%s1527 + $0x34] sm:$0x1]
      %v1712 = vld [vmem:[%s1527 + $0x38] sm:$0xf]
      %v1713 = vld [vmem:[%s1527 + $0x3c] sm:$0x1]
      %v1715 = vshrl.u32 %v1698, 16
      %v1717 = vrot.slane %v1715, 4
      %v1718 = vshll.u32 %v1698, 16
      %v1720 = vrot.slane %v1718, 5
      %v1721 = vor.u32 %v1717, %v1720
      %v1722 = vrot.slane %v1721, 4
      %v1724 = vshll.u32 %v1699, 16
      %v1726 = vrot.slane %v1724, 5
      %v1727 = vsel %vm255, %v1722, %v1726
      %v1729 = vshrl.u32 %v1700, 16
      %v1731 = vrot.slane %v1729, 4
      %v1732 = vshll.u32 %v1700, 16
      %v1734 = vrot.slane %v1732, 5
      %v1735 = vor.u32 %v1731, %v1734
      %v1736 = vrot.slane %v1735, 4
      %v1738 = vshll.u32 %v1701, 16
      %v1740 = vrot.slane %v1738, 5
      %v1741 = vsel %vm255, %v1736, %v1740
      %v1743 = vshrl.u32 %v1702, 16
      %v1745 = vrot.slane %v1743, 4
      %v1746 = vshll.u32 %v1702, 16
      %v1748 = vrot.slane %v1746, 5
      %v1749 = vor.u32 %v1745, %v1748
      %v1750 = vrot.slane %v1749, 4
      %v1752 = vshll.u32 %v1703, 16
      %v1754 = vrot.slane %v1752, 5
      %v1755 = vsel %vm255, %v1750, %v1754
      %v1757 = vshrl.u32 %v1704, 16
      %v1759 = vrot.slane %v1757, 4
      %v1760 = vshll.u32 %v1704, 16
      %v1762 = vrot.slane %v1760, 5
      %v1763 = vor.u32 %v1759, %v1762
      %v1764 = vrot.slane %v1763, 4
      %v1766 = vshll.u32 %v1705, 16
      %v1768 = vrot.slane %v1766, 5
      %v1769 = vsel %vm255, %v1764, %v1768
      %v1771 = vshrl.u32 %v1706, 16
      %v1773 = vrot.slane %v1771, 4
      %v1774 = vshll.u32 %v1706, 16
      %v1776 = vrot.slane %v1774, 5
      %v1777 = vor.u32 %v1773, %v1776
      %v1778 = vrot.slane %v1777, 4
      %v1780 = vshll.u32 %v1707, 16
      %v1782 = vrot.slane %v1780, 5
      %v1783 = vsel %vm255, %v1778, %v1782
      %v1785 = vshrl.u32 %v1708, 16
      %v1787 = vrot.slane %v1785, 4
      %v1788 = vshll.u32 %v1708, 16
      %v1790 = vrot.slane %v1788, 5
      %v1791 = vor.u32 %v1787, %v1790
      %v1792 = vrot.slane %v1791, 4
      %v1794 = vshll.u32 %v1709, 16
      %v1796 = vrot.slane %v1794, 5
      %v1797 = vsel %vm255, %v1792, %v1796
      %v1799 = vshrl.u32 %v1710, 16
      %v1801 = vrot.slane %v1799, 4
      %v1802 = vshll.u32 %v1710, 16
      %v1804 = vrot.slane %v1802, 5
      %v1805 = vor.u32 %v1801, %v1804
      %v1806 = vrot.slane %v1805, 4
      %v1808 = vshll.u32 %v1711, 16
      %v1810 = vrot.slane %v1808, 5
      %v1811 = vsel %vm255, %v1806, %v1810
      %v1813 = vshrl.u32 %v1712, 16
      %v1815 = vrot.slane %v1813, 4
      %v1816 = vshll.u32 %v1712, 16
      %v1818 = vrot.slane %v1816, 5
      %v1819 = vor.u32 %v1815, %v1818
      %v1820 = vrot.slane %v1819, 4
      %v1822 = vshll.u32 %v1713, 16
      %v1824 = vrot.slane %v1822, 5
      %v1825 = vsel %vm255, %v1820, %v1824
      %s1826 = scalar_lea.vmem %s1, 448
      %v1827 = vld [vmem:[%s1826] sm:$0xf]
      %v1828 = vld [vmem:[%s1826 + $0x4] sm:$0xf]
      %v1829 = vld [vmem:[%s1826 + $0x8] sm:$0xf]
      %v1830 = vld [vmem:[%s1826 + $0xc] sm:$0xf]
      %v1831 = vld [vmem:[%s1826 + $0x10] sm:$0xf]
      %v1832 = vld [vmem:[%s1826 + $0x14] sm:$0xf]
      %v1833 = vld [vmem:[%s1826 + $0x18] sm:$0xf]
      %v1834 = vld [vmem:[%s1826 + $0x1c] sm:$0xf]
      %v1835 = vld [vmem:[%s1826 + $0x20] sm:$0xf]
      %v1836 = vld [vmem:[%s1826 + $0x24] sm:$0xf]
      %v1837 = vld [vmem:[%s1826 + $0x28] sm:$0xf]
      %v1838 = vld [vmem:[%s1826 + $0x2c] sm:$0xf]
      %v1839 = vld [vmem:[%s1826 + $0x30] sm:$0xf]
      %v1840 = vld [vmem:[%s1826 + $0x34] sm:$0xf]
      %v1841 = vld [vmem:[%s1826 + $0x38] sm:$0xf]
      %v1842 = vld [vmem:[%s1826 + $0x3c] sm:$0xf]
      %v1843 = vunpack.c.l.b16 %v1727
      %v1844 = vunpack.c.l.b16 %v1741
      %v1845 = vunpack.c.l.b16 %v1755
      %v1846 = vunpack.c.l.b16 %v1769
      %v1847 = vunpack.c.l.b16 %v1783
      %v1848 = vunpack.c.l.b16 %v1797
      %v1849 = vunpack.c.l.b16 %v1811
      %v1850 = vunpack.c.l.b16 %v1825
      %v1851 = vpack.c.b16 %v1844, %v1843
      %v1852 = vpack.c.b16 %v1846, %v1845
      %v1853 = vpack.c.b16 %v1848, %v1847
      %v1854 = vpack.c.b16 %v1850, %v1849
      %v1875 = vunpack.c.l.b16 %v1827
      %v1876 = vunpack.c.l.b16 %v1828
      %v1877 = vunpack.c.l.b16 %v1829
      %v1878 = vunpack.c.l.b16 %v1830
      %v1879 = vunpack.c.l.b16 %v1831
      %v1880 = vunpack.c.l.b16 %v1832
      %v1881 = vunpack.c.l.b16 %v1833
      %v1882 = vunpack.c.l.b16 %v1834
      %v1883 = vunpack.c.l.b16 %v1835
      %v1884 = vunpack.c.l.b16 %v1836
      %v1885 = vunpack.c.l.b16 %v1837
      %v1886 = vunpack.c.l.b16 %v1838
      %v1887 = vunpack.c.l.b16 %v1839
      %v1888 = vunpack.c.l.b16 %v1840
      %v1889 = vunpack.c.l.b16 %v1841
      %v1890 = vunpack.c.l.b16 %v1842
      %v1891 = vpack.c.b16 %v1876, %v1875
      %v1892 = vpack.c.b16 %v1878, %v1877
      %v1893 = vpack.c.b16 %v1880, %v1879
      %v1894 = vpack.c.b16 %v1882, %v1881
      %v1895 = vpack.c.b16 %v1884, %v1883
      %v1896 = vpack.c.b16 %v1886, %v1885
      %v1897 = vpack.c.b16 %v1888, %v1887
      %v1898 = vpack.c.b16 %v1890, %v1889
      %1907 = vmatprep.subr.bf16.mxu0 0
      %1908 = vmatpush1.bf16.msra.mxu0 %v1898
      %1909 = vmatprep.subr.bf16.mxu0 0
      %1910 = vmatpush1.bf16.msra.mxu0 %v1897
      %1911 = vmatprep.subr.bf16.mxu0 0
      %1912 = vmatpush1.bf16.msra.mxu0 %v1896
      %1913 = vmatprep.subr.bf16.mxu0 0
      %1914 = vmatpush1.bf16.msra.mxu0 %v1895
      %1915 = vmatprep.subr.bf16.mxu0 0
      %1916 = vmatpush1.bf16.msra.mxu0 %v1894
      %1917 = vmatprep.subr.bf16.mxu0 0
      %1918 = vmatpush1.bf16.msra.mxu0 %v1893
      %1919 = vmatprep.subr.bf16.mxu0 0
      %1920 = vmatpush1.bf16.msra.mxu0 %v1892
      %1921 = vmatprep.subr.bf16.mxu0 0
      %1922 = vmatpush1.bf16.msra.mxu0 %v1891
      %1923 = vmatprep.subr.bf16.mxu0 0
      %1924 = vmatpush2.bf16.msra.mxu0 0
      %1925 = vmatprep.subr.bf16.mxu0 0
      %1926 = vmatpush2.bf16.msra.mxu0 0
      %1927 = vmatprep.subr.bf16.mxu0 0
      %1928 = vmatpush2.bf16.msra.mxu0 0
      %1929 = vmatprep.subr.bf16.mxu0 0
      %1930 = vmatpush2.bf16.msra.mxu0 0
      %1931 = vmatprep.subr.bf16.mxu0 0
      %1932 = vmatpush2.bf16.msra.mxu0 0
      %1933 = vmatprep.subr.bf16.mxu0 0
      %1934 = vmatpush2.bf16.msra.mxu0 0
      %1935 = vmatprep.subr.bf16.mxu0 0
      %1936 = vmatpush2.bf16.msra.mxu0 0
      %1937 = vmatprep.subr.bf16.mxu0 0
      %1938 = vmatpush2.bf16.msra.mxu0 0
      %1939 = vmatprep.mubr.bf16.mxu0 0
      %1940 = vmatmul.mubr.bf16.gmra.mxu0 %v1851
      %v1941 = vpop.f32.mrf.mxu0
      %v1942 = vadd.f32 0.0, %v1941
      %v1943 = vpop.f32.mrf.mxu0
      %v1944 = vpop.f32.mrf.mxu0
      %v1945 = vadd.f32 0.0, %v1944
      %v1946 = vpop.f32.mrf.mxu0
      %1947 = vmatprep.mubr.bf16.mxu0 0
      %1948 = vmatmul.mubr.bf16.gmra.mxu0 %v1852
      %v1949 = vpop.f32.mrf.mxu0
      %v1950 = vadd.f32 0.0, %v1949
      %v1951 = vpop.f32.mrf.mxu0
      %v1952 = vpop.f32.mrf.mxu0
      %v1953 = vadd.f32 0.0, %v1952
      %v1954 = vpop.f32.mrf.mxu0
      %1955 = vmatprep.mubr.bf16.mxu0 0
      %1956 = vmatmul.mubr.bf16.gmra.mxu0 %v1853
      %v1957 = vpop.f32.mrf.mxu0
      %v1958 = vadd.f32 0.0, %v1957
      %v1959 = vpop.f32.mrf.mxu0
      %v1960 = vpop.f32.mrf.mxu0
      %v1961 = vadd.f32 0.0, %v1960
      %v1962 = vpop.f32.mrf.mxu0
      %1963 = vmatprep.mubr.bf16.mxu0 0
      %1964 = vmatmul.mubr.bf16.gmra.mxu0 %v1854
      %v1965 = vpop.f32.mrf.mxu0
      %v1966 = vadd.f32 0.0, %v1965
      %v1967 = vpop.f32.mrf.mxu0
      %v1968 = vpop.f32.mrf.mxu0
      %v1969 = vadd.f32 0.0, %v1968
      %v1970 = vpop.f32.mrf.mxu0
      %1971 = vdwg.mxu0
      %v1972 = vadd.f32 %v1690, %v1942
      %v1973 = vadd.f32 %v1691, %v1945
      %v1974 = vadd.f32 %v1692, %v1950
      %v1975 = vadd.f32 %v1693, %v1953
      %v1976 = vadd.f32 %v1694, %v1958
      %v1977 = vadd.f32 %v1695, %v1961
      %v1978 = vadd.f32 %v1696, %v1966
      %v1979 = vadd.f32 %v1697, %v1969
      %v1980 = vld [vmem:[%s1527] sm:$0xe]
      %v1981 = vld [vmem:[%s1527 + $0x8] sm:$0xe]
      %v1982 = vld [vmem:[%s1527 + $0x10] sm:$0xe]
      %v1983 = vld [vmem:[%s1527 + $0x18] sm:$0xe]
      %v1984 = vld [vmem:[%s1527 + $0x20] sm:$0xe]
      %v1985 = vld [vmem:[%s1527 + $0x28] sm:$0xe]
      %v1986 = vld [vmem:[%s1527 + $0x30] sm:$0xe]
      %v1987 = vld [vmem:[%s1527 + $0x38] sm:$0xe]
      %v2004 = vrot.slane %v1980, 5
      %v2005 = vrot.slane %v2004, 4
      %v2006 = vrot.slane %v1699, 5
      %v2007 = vsel %vm677, %v2005, %v2006
      %v2008 = vrot.slane %v1981, 5
      %v2009 = vrot.slane %v2008, 4
      %v2010 = vrot.slane %v1701, 5
      %v2011 = vsel %vm677, %v2009, %v2010
      %v2012 = vrot.slane %v1982, 5
      %v2013 = vrot.slane %v2012, 4
      %v2014 = vrot.slane %v1703, 5
      %v2015 = vsel %vm677, %v2013, %v2014
      %v2016 = vrot.slane %v1983, 5
      %v2017 = vrot.slane %v2016, 4
      %v2018 = vrot.slane %v1705, 5
      %v2019 = vsel %vm677, %v2017, %v2018
      %v2020 = vrot.slane %v1984, 5
      %v2021 = vrot.slane %v2020, 4
      %v2022 = vrot.slane %v1707, 5
      %v2023 = vsel %vm677, %v2021, %v2022
      %v2024 = vrot.slane %v1985, 5
      %v2025 = vrot.slane %v2024, 4
      %v2026 = vrot.slane %v1709, 5
      %v2027 = vsel %vm677, %v2025, %v2026
      %v2028 = vrot.slane %v1986, 5
      %v2029 = vrot.slane %v2028, 4
      %v2030 = vrot.slane %v1711, 5
      %v2031 = vsel %vm677, %v2029, %v2030
      %v2032 = vrot.slane %v1987, 5
      %v2033 = vrot.slane %v2032, 4
      %v2034 = vrot.slane %v1713, 5
      %v2035 = vsel %vm677, %v2033, %v2034
      %s2036 = scalar_lea.vmem %s1, 512
      %v2037 = vld [vmem:[%s2036] sm:$0xf]
      %v2038 = vld [vmem:[%s2036 + $0x4] sm:$0xf]
      %v2039 = vld [vmem:[%s2036 + $0x8] sm:$0xf]
      %v2040 = vld [vmem:[%s2036 + $0xc] sm:$0xf]
      %v2041 = vld [vmem:[%s2036 + $0x10] sm:$0xf]
      %v2042 = vld [vmem:[%s2036 + $0x14] sm:$0xf]
      %v2043 = vld [vmem:[%s2036 + $0x18] sm:$0xf]
      %v2044 = vld [vmem:[%s2036 + $0x1c] sm:$0xf]
      %v2045 = vld [vmem:[%s2036 + $0x20] sm:$0xf]
      %v2046 = vld [vmem:[%s2036 + $0x24] sm:$0xf]
      %v2047 = vld [vmem:[%s2036 + $0x28] sm:$0xf]
      %v2048 = vld [vmem:[%s2036 + $0x2c] sm:$0xf]
      %v2049 = vld [vmem:[%s2036 + $0x30] sm:$0xf]
      %v2050 = vld [vmem:[%s2036 + $0x34] sm:$0xf]
      %v2051 = vld [vmem:[%s2036 + $0x38] sm:$0xf]
      %v2052 = vld [vmem:[%s2036 + $0x3c] sm:$0xf]
      %v2053 = vunpack.c.l.b16 %v2007
      %v2054 = vunpack.c.l.b16 %v2011
      %v2055 = vunpack.c.l.b16 %v2015
      %v2056 = vunpack.c.l.b16 %v2019
      %v2057 = vunpack.c.l.b16 %v2023
      %v2058 = vunpack.c.l.b16 %v2027
      %v2059 = vunpack.c.l.b16 %v2031
      %v2060 = vunpack.c.l.b16 %v2035
      %v2061 = vpack.c.b16 %v2054, %v2053
      %v2062 = vpack.c.b16 %v2056, %v2055
      %v2063 = vpack.c.b16 %v2058, %v2057
      %v2064 = vpack.c.b16 %v2060, %v2059
      %v2085 = vunpack.c.l.b16 %v2037
      %v2086 = vunpack.c.l.b16 %v2038
      %v2087 = vunpack.c.l.b16 %v2039
      %v2088 = vunpack.c.l.b16 %v2040
      %v2089 = vunpack.c.l.b16 %v2041
      %v2090 = vunpack.c.l.b16 %v2042
      %v2091 = vunpack.c.l.b16 %v2043
      %v2092 = vunpack.c.l.b16 %v2044
      %v2093 = vunpack.c.l.b16 %v2045
      %v2094 = vunpack.c.l.b16 %v2046
      %v2095 = vunpack.c.l.b16 %v2047
      %v2096 = vunpack.c.l.b16 %v2048
      %v2097 = vunpack.c.l.b16 %v2049
      %v2098 = vunpack.c.l.b16 %v2050
      %v2099 = vunpack.c.l.b16 %v2051
      %v2100 = vunpack.c.l.b16 %v2052
      %v2101 = vpack.c.b16 %v2086, %v2085
      %v2102 = vpack.c.b16 %v2088, %v2087
      %v2103 = vpack.c.b16 %v2090, %v2089
      %v2104 = vpack.c.b16 %v2092, %v2091
      %v2105 = vpack.c.b16 %v2094, %v2093
      %v2106 = vpack.c.b16 %v2096, %v2095
      %v2107 = vpack.c.b16 %v2098, %v2097
      %v2108 = vpack.c.b16 %v2100, %v2099
      %2117 = vmatprep.subr.bf16.mxu0 0
      %2118 = vmatpush1.bf16.msra.mxu0 %v2108
      %2119 = vmatprep.subr.bf16.mxu0 0
      %2120 = vmatpush1.bf16.msra.mxu0 %v2107
      %2121 = vmatprep.subr.bf16.mxu0 0
      %2122 = vmatpush1.bf16.msra.mxu0 %v2106
      %2123 = vmatprep.subr.bf16.mxu0 0
      %2124 = vmatpush1.bf16.msra.mxu0 %v2105
      %2125 = vmatprep.subr.bf16.mxu0 0
      %2126 = vmatpush1.bf16.msra.mxu0 %v2104
      %2127 = vmatprep.subr.bf16.mxu0 0
      %2128 = vmatpush1.bf16.msra.mxu0 %v2103
      %2129 = vmatprep.subr.bf16.mxu0 0
      %2130 = vmatpush1.bf16.msra.mxu0 %v2102
      %2131 = vmatprep.subr.bf16.mxu0 0
      %2132 = vmatpush1.bf16.msra.mxu0 %v2101
      %2133 = vmatprep.subr.bf16.mxu0 0
      %2134 = vmatpush2.bf16.msra.mxu0 0
      %2135 = vmatprep.subr.bf16.mxu0 0
      %2136 = vmatpush2.bf16.msra.mxu0 0
      %2137 = vmatprep.subr.bf16.mxu0 0
      %2138 = vmatpush2.bf16.msra.mxu0 0
      %2139 = vmatprep.subr.bf16.mxu0 0
      %2140 = vmatpush2.bf16.msra.mxu0 0
      %2141 = vmatprep.subr.bf16.mxu0 0
      %2142 = vmatpush2.bf16.msra.mxu0 0
      %2143 = vmatprep.subr.bf16.mxu0 0
      %2144 = vmatpush2.bf16.msra.mxu0 0
      %2145 = vmatprep.subr.bf16.mxu0 0
      %2146 = vmatpush2.bf16.msra.mxu0 0
      %2147 = vmatprep.subr.bf16.mxu0 0
      %2148 = vmatpush2.bf16.msra.mxu0 0
      %2149 = vmatprep.mubr.bf16.mxu0 0
      %2150 = vmatmul.mubr.bf16.gmra.mxu0 %v2061
      %v2151 = vpop.f32.mrf.mxu0
      %v2152 = vadd.f32 0.0, %v2151
      %v2153 = vpop.f32.mrf.mxu0
      %v2154 = vpop.f32.mrf.mxu0
      %v2155 = vadd.f32 0.0, %v2154
      %v2156 = vpop.f32.mrf.mxu0
      %2157 = vmatprep.mubr.bf16.mxu0 0
      %2158 = vmatmul.mubr.bf16.gmra.mxu0 %v2062
      %v2159 = vpop.f32.mrf.mxu0
      %v2160 = vadd.f32 0.0, %v2159
      %v2161 = vpop.f32.mrf.mxu0
      %v2162 = vpop.f32.mrf.mxu0
      %v2163 = vadd.f32 0.0, %v2162
      %v2164 = vpop.f32.mrf.mxu0
      %2165 = vmatprep.mubr.bf16.mxu0 0
      %2166 = vmatmul.mubr.bf16.gmra.mxu0 %v2063
      %v2167 = vpop.f32.mrf.mxu0
      %v2168 = vadd.f32 0.0, %v2167
      %v2169 = vpop.f32.mrf.mxu0
      %v2170 = vpop.f32.mrf.mxu0
      %v2171 = vadd.f32 0.0, %v2170
      %v2172 = vpop.f32.mrf.mxu0
      %2173 = vmatprep.mubr.bf16.mxu0 0
      %2174 = vmatmul.mubr.bf16.gmra.mxu0 %v2064
      %v2175 = vpop.f32.mrf.mxu0
      %v2176 = vadd.f32 0.0, %v2175
      %v2177 = vpop.f32.mrf.mxu0
      %v2178 = vpop.f32.mrf.mxu0
      %v2179 = vadd.f32 0.0, %v2178
      %v2180 = vpop.f32.mrf.mxu0
      %2181 = vdwg.mxu0
      %v2182 = vadd.f32 %v1972, %v2152
      %v2183 = vadd.f32 %v1973, %v2155
      %v2184 = vadd.f32 %v1974, %v2160
      %v2185 = vadd.f32 %v1975, %v2163
      %v2186 = vadd.f32 %v1976, %v2168
      %v2187 = vadd.f32 %v1977, %v2171
      %v2188 = vadd.f32 %v1978, %v2176
      %v2189 = vadd.f32 %v1979, %v2179
      %2190 = vst [vmem:[%s210] sm:$0xff] %v2182
      %2191 = vst [vmem:[%s210 + $0x8] sm:$0xff] %v2183
      %2192 = vst [vmem:[%s210 + $0x10] sm:$0xff] %v2184
      %2193 = vst [vmem:[%s210 + $0x18] sm:$0xff] %v2185
      %2194 = vst [vmem:[%s210 + $0x20] sm:$0xff] %v2186
      %2195 = vst [vmem:[%s210 + $0x28] sm:$0xff] %v2187
      %2196 = vst [vmem:[%s210 + $0x30] sm:$0xff] %v2188
      %2197 = vst [vmem:[%s210 + $0x38] sm:$0xff] %v2189
      %v2198 = vadd.f32 %v2182, %v2183
      %v2199 = vadd.f32 %v2198, %v2184
      %v2200 = vadd.f32 %v2199, %v2185
      %v2201 = vadd.f32 %v2200, %v2186
      %v2202 = vadd.f32 %v2201, %v2187
      %v2203 = vadd.f32 %v2202, %v2188
      %v2204 = vadd.f32 %v2203, %v2189
      %v2205 = vrot.slane %v2204, 4
      %v2206 = vadd.f32 %v2204, %v2205
      %v2207 = vrot.slane %v2206, 2
      %v2208 = vadd.f32 %v2206, %v2207
      %v2209 = vrot.slane %v2208, 1
      %v2210 = vadd.f32 %v2208, %v2209
      %v2211 = vmul.f32 %v2182, %v2182
      %v2212 = vmul.f32 %v2183, %v2183
      %v2213 = vmul.f32 %v2184, %v2184
      %v2214 = vmul.f32 %v2185, %v2185
      %v2215 = vmul.f32 %v2186, %v2186
      %v2216 = vmul.f32 %v2187, %v2187
      %v2217 = vmul.f32 %v2188, %v2188
      %v2218 = vmul.f32 %v2189, %v2189
      %v2219 = vadd.f32 %v2211, %v2212
      %v2220 = vadd.f32 %v2219, %v2213
      %v2221 = vadd.f32 %v2220, %v2214
      %v2222 = vadd.f32 %v2221, %v2215
      %v2223 = vadd.f32 %v2222, %v2216
      %v2224 = vadd.f32 %v2223, %v2217
      %v2225 = vadd.f32 %v2224, %v2218
      %v2226 = vrot.slane %v2225, 4
      %v2227 = vadd.f32 %v2225, %v2226
      %v2228 = vrot.slane %v2227, 2
      %v2229 = vadd.f32 %v2227, %v2228
      %v2230 = vrot.slane %v2229, 1
      %v2231 = vadd.f32 %v2229, %v2230
      %2232 = vst [vmem:[%s215] sm:$0xff] %v2210
      %2233 = vst [vmem:[%s219] sm:$0xff] %v2231
      %s2234 = smul.u32 8, %s16
      %p2235 = scmp.lt.s32.totalorder %s2234, 15
      %s2236 = scalar_select %p2235, %s2234, 15
      %s2237 = smul.addr %s2236, 8
      %s2238 = scalar_lea.vmem %s2, %s2237
      %p2239 = scmp.lt.s32.totalorder %s16, 1
      %s2240 = scalar_select %p2239, %s16, 1
      %s2241 = smul.addr %s2240, 8
      %s2242 = scalar_lea.vmem %s3, %s2241
      %p2243 = scmp.lt.s32.totalorder %s16, 1
      %s2244 = scalar_select %p2243, %s16, 1
      %s2245 = smul.addr %s2244, 8
      %s2246 = scalar_lea.vmem %s4, %s2245
      // Predicated region
      $region29: #{basic_block_forward.7} parent=27 // pred_check
        %p2247 = pneg %p81
      $region30: #{basic_block_forward.7} parent=27 // pred_check_branch
        %2249 = sbr.rel (%p2247) target = $region32
      $region31: #{basic_block_forward.7} parent=27 // pred_region
        %s2250 = smul.u32 8, %s16
      $region32: #{basic_block_forward.7} parent=27 // pred_fallthru
        _
      // Predicated region
      $region33: #{basic_block_forward.7} parent=27 // pred_check
        %p2251 = pneg %p107
      $region34: #{basic_block_forward.7} parent=27 // pred_check_branch
        %2253 = sbr.rel (%p2251) target = $region36
      $region35: #{basic_block_forward.7} parent=27 // pred_region
        _
      $region36: #{basic_block_forward.7} parent=27 // pred_fallthru
        _
      // Predicated region
      $region37: #{basic_block_forward.7} parent=27 // pred_check
        %p2254 = pneg %p133
      $region38: #{basic_block_forward.7} parent=27 // pred_check_branch
        %2256 = sbr.rel (%p2254) target = $region40
      $region39: #{basic_block_forward.7} parent=27 // pred_region
        _
      $region40: #{basic_block_forward.7} parent=27 // pred_fallthru
        _
    $region28: #{basic_block_forward.7} parent=5 // pred_fallthru
      _
    %p2257 = scmp.le.s32.totalorder 2, %s11
    // Predicated region
    $region41: #{basic_block_forward.7} parent=5 // pred_check
      %p2258 = pneg %p2257
    $region42: #{basic_block_forward.7} parent=5 // pred_check_branch
      %2260 = sbr.rel (%p2258) target = $region44
    $region43: #{basic_block_forward.7} parent=5 // pred_region
      %s2261 = ssub.s32 %s11, 2
      // Predicated region
      $region45: #{basic_block_forward.7} parent=43 // pred_check
        %p2262 = pneg %p87
      $region46: #{basic_block_forward.7} parent=43 // pred_check_branch
        %2264 = sbr.rel (%p2262) target = $region48
      $region47: #{basic_block_forward.7} parent=43 // pred_region
        %s2265 = smul.u32 8, %s17
        %p2266 = scmp.lt.s32.totalorder %s2265, 15
        %s2267 = scalar_select %p2266, %s2265, 15
        %s2268 = smul.addr %s2267, 8
        %s2269 = scalar_lea.vmem %s2, %s2268
      $region48: #{basic_block_forward.7} parent=43 // pred_fallthru
        _
      // Predicated region
      $region49: #{basic_block_forward.7} parent=43 // pred_check
        %p2270 = pneg %p113
      $region50: #{basic_block_forward.7} parent=43 // pred_check_branch
        %2272 = sbr.rel (%p2270) target = $region52
      $region51: #{basic_block_forward.7} parent=43 // pred_region
        %p2273 = scmp.lt.s32.totalorder %s17, 1
        %s2274 = scalar_select %p2273, %s17, 1
        %s2275 = smul.addr %s2274, 8
        %s2276 = scalar_lea.vmem %s3, %s2275
      $region52: #{basic_block_forward.7} parent=43 // pred_fallthru
        _
      // Predicated region
      $region53: #{basic_block_forward.7} parent=43 // pred_check
        %p2277 = pneg %p139
      $region54: #{basic_block_forward.7} parent=43 // pred_check_branch
        %2279 = sbr.rel (%p2277) target = $region56
      $region55: #{basic_block_forward.7} parent=43 // pred_region
        %p2280 = scmp.lt.s32.totalorder %s17, 1
        %s2281 = scalar_select %p2280, %s17, 1
        %s2282 = smul.addr %s2281, 8
        %s2283 = scalar_lea.vmem %s4, %s2282
      $region56: #{basic_block_forward.7} parent=43 // pred_fallthru
        _
    $region44: #{basic_block_forward.7} parent=5 // pred_fallthru
      _
  $region6: #{basic_block_forward.7} parent=0 // loop_footer
    %s15 = sadd.s32 1, %s11
  $region7: #{basic_block_forward.7} parent=0 // loop_footer_branch
    %10 = sbr.rel target = $region3
  $region8: #{basic_block_forward.7} parent=0 // loop_exit
    _

</llo_original>
